<compile_context>
chip_gen: v5e
topology: v5e:2x2
jax: 0.10.0
libtpu: 0.0.40
codegen_flags: <defaults>
</compile_context>

<pallas_src>
import functools

import jax
import jax.numpy as jnp
from jax.experimental import pallas as pl
from jax.experimental.pallas import tpu as pltpu


def _round_up(x, m):
    return (x + m - 1) // m * m


def _largest_divisor(n, cap, step=8):
    """Largest multiple of `step` dividing `n` (n % step == 0) that is <= cap."""
    best = step
    d = step
    cap = min(n, cap)
    while d <= cap:
        if n % d == 0:
            best = d
        d += step
    return best


def _vmem_budget(*nbytes):
    """Scoped-VMEM request derived from actual tile sizes (+50% & 2 MiB slack)."""
    need = sum(int(b) for b in nbytes)
    return int(min(max(need * 3 // 2 + (2 << 20), 8 << 20), 120 << 20))


def _weight_spec(shape, index_map, single_buffer):
    """BlockSpec for a grid-invariant operand; single-buffered when requested."""
    if single_buffer:
        return pl.BlockSpec(shape, index_map, pipeline_mode=pl.Buffered(1))
    return pl.BlockSpec(shape, index_map)


# ---------------------------------------------------------------------------
# Kernel 1: batched input projection for ALL time steps:  I = X @ W_ih_f + b_f
# ---------------------------------------------------------------------------
def input_proj_kernel(x_ref, w_ref, b_ref, o_ref):
    # x_ref: (m_blk, Ep)  w_ref: (Ep, n_blk)  b_ref: (1, n_blk)  o_ref: (m_blk, n_blk)
    acc = jnp.dot(x_ref[...], w_ref[...], preferred_element_type=jnp.float32)
    o_ref[...] = (acc + b_ref[...]).astype(o_ref.dtype)


# ---------------------------------------------------------------------------
# Kernel 2: serial GRU recurrence + fused classification head on last chunk
# ---------------------------------------------------------------------------
def gru_kernel(i_ref, whh_ref, bhn_ref, wlin_ref, blin_ref, out_ref, h_ref,
               *, seq_len, mask_tail):
    """
    i_ref:   (t_blk, b_blk, 3Hp) precomputed input-gate pre-activations
    whh_ref: (Hp, 3Hp)           fused hidden->gate weights (bf16 or f32)
    bhn_ref: (1, Hp)             b_hh of the n gate (must stay inside r * (.))
    wlin_ref:(Hp, Lp)            final linear weight
    blin_ref:(1, Lp)             final linear bias
    out_ref: (b_blk, Lp)         sigmoid(linear(h_last))
    h_ref:   (b_blk, Hp)         VMEM scratch hidden state (f32), carried
                                 across time chunks of one batch block.
    """
    t = pl.program_id(1)
    nt = pl.num_programs(1)
    t_blk, b_blk = i_ref.shape[0], i_ref.shape[1]
    hp = h_ref.shape[-1]

    @pl.when(t == 0)
    def _():
        h_ref[...] = jnp.zeros_like(h_ref)
        out_ref[...] = jnp.zeros_like(out_ref)   # defensive: never left undefined

    w_hh = whh_ref[...]                          # hoisted out of the unrolled loop
    w_dtype = w_hh.dtype
    # Hoist the n-gate hidden-bias broadcast (JAX does not CSE broadcasts).
    b_hn = jnp.broadcast_to(bhn_ref[...], (b_blk, hp)).astype(jnp.float32)

    def step(k, h):
        gx = i_ref[k].astype(jnp.float32)        # (b_blk, 3Hp); b_ih + b_hh(r,z) folded in
        hg = jnp.dot(h.astype(w_dtype), w_hh, preferred_element_type=jnp.float32)
        # sigmoid(x) == 0.5*tanh(0.5*x) + 0.5 : one EUP op per gate element.
        r = 0.5 * jnp.tanh(0.5 * (gx[:, :hp] + hg[:, :hp])) + 0.5
        z = 0.5 * jnp.tanh(0.5 * (gx[:, hp:2 * hp] + hg[:, hp:2 * hp])) + 0.5
        n = jnp.tanh(gx[:, 2 * hp:] + r * (hg[:, 2 * hp:] + b_hn))
        h_new = (1.0 - z) * n + z * h
        if mask_tail:
            keep = ((t * t_blk + k) < seq_len).astype(jnp.float32)
            h_new = keep * h_new + (1.0 - keep) * h
        return h_new

    h = jax.lax.fori_loop(0, t_blk, step, h_ref[...], unroll=True)
    h_ref[...] = h

    @pl.when(t == nt - 1)
    def _():
        # dropout(p) on outputs[-1] is identity at inference time.
        logits = jnp.dot(h.astype(w_dtype), wlin_ref[...],
                         preferred_element_type=jnp.float32) + blin_ref[...]
        out_ref[...] = jax.nn.sigmoid(logits)


# ---------------------------------------------------------------------------
# Wrapper
# ---------------------------------------------------------------------------
@functools.partial(jax.jit,
                   static_argnames=("t_blk", "use_bf16", "b_blk_cap",
                                    "single_buffer_weights"))
def rnn_gru_forward(input_seqs, params, *, t_blk=16, use_bf16=True,
                    b_blk_cap=256, single_buffer_weights=True):
    """input_seqs: (seq_len, batch) int32 token ids (0 = padding).
    Returns (batch, num_labels) sigmoid probabilities."""
    embed = params["embed"]            # (vocab+1, E)
    w_ih = params["w_ih"]              # (3, E, H)  gate order (r, z, n)
    w_hh = params["w_hh"]              # (3, H, H)
    b_ih = params["b_ih"]              # (3, 1, H)
    b_hh = params["b_hh"]              # (3, 1, H)
    w_lin = params["w_lin"]            # (H, L)
    b_lin = params["b_lin"]            # (1, L)

    S, B = input_seqs.shape
    E = embed.shape[1]
    H = w_hh.shape[-1]
    L = w_lin.shape[-1]

    w_dtype = jnp.bfloat16 if use_bf16 else jnp.float32
    gates_dtype = jnp.bfloat16 if use_bf16 else jnp.float32
    w_bytes = 2 if use_bf16 else 4
    g_bytes = 2 if use_bf16 else 4

    # ---- vreg-friendly padded sizes --------------------------------------
    Bp = _round_up(B, 8)
    Ep = _round_up(E, 128)
    Hp = _round_up(H, 128)
    Lp = _round_up(L, 128)
    G = 3 * Hp

    # Batch block for the serial recurrence: feed as many rows into the MXU as
    # possible, but keep >=2 blocks when batch allows so v7x's 2 TCs both work.
    b_blk = _largest_divisor(Bp, b_blk_cap)
    if Bp // b_blk < 2 and Bp >= 16:
        b_blk = _largest_divisor(Bp, Bp // 2)

    # Ragged time handling: pad S up to a multiple of t_blk; mask tail in-kernel.
    t_blk = max(1, min(t_blk, S))
    S_pad = _round_up(S, t_blk)
    mask_tail = S_pad != S

    def pad_last(a, tgt):
        return jnp.pad(a, [(0, 0)] * (a.ndim - 1) + [(0, tgt - a.shape[-1])])

    # ---- fused / padded weights (each gate padded to Hp, then concatenated)
    w_ih_f = jnp.concatenate([pad_last(w_ih[g], Hp) for g in range(3)], -1)  # (E, G)
    w_ih_f = jnp.pad(w_ih_f, ((0, Ep - E), (0, 0))).astype(w_dtype)          # (Ep, G)
    w_hh_f = jnp.concatenate([pad_last(w_hh[g], Hp) for g in range(3)], -1)  # (H, G)
    w_hh_f = jnp.pad(w_hh_f, ((0, Hp - H), (0, 0))).astype(w_dtype)          # (Hp, G)

    # Biases folded where legal: r/z get b_ih+b_hh up front; the n gate's
    # hidden bias must stay inside the r * (h @ W_hn + b_hn) term.
    b_in = jnp.concatenate([pad_last(b_ih[0] + b_hh[0], Hp),
                            pad_last(b_ih[1] + b_hh[1], Hp),
                            pad_last(b_ih[2], Hp)], -1).astype(jnp.float32)  # (1, G)
    b_hn = pad_last(b_hh[2], Hp).astype(jnp.float32)                         # (1, Hp)

    w_lin_p = jnp.pad(w_lin, ((0, Hp - H), (0, Lp - L))).astype(w_dtype)     # (Hp, Lp)
    b_lin_p = pad_last(b_lin, Lp).astype(jnp.float32)                        # (1, Lp)

    # ---- embedding: gather first (table pre-cast), pad after ---------------
    # TODO(synk): the data-dependent embedding gather stays as plain-JAX glue.
    emb = embed.astype(w_dtype)[input_seqs]                        # (S, B, E)
    emb = jnp.pad(emb, ((0, S_pad - S), (0, Bp - B), (0, Ep - E)))  # (S_pad, Bp, Ep)
    rows = S_pad * Bp
    x2d = emb.reshape(rows, Ep)

    # ---- Kernel 1: input projection, own 2-D (rows, N) grid ----------------
    m_blk = min(512, rows)                    # rows is a multiple of 8
    rows_p = _round_up(rows, m_blk)
    if rows_p != rows:
        x2d = jnp.pad(x2d, ((0, rows_p - rows), (0, 0)))
    n_blk = Hp                                # divides G = 3*Hp exactly

    k1_vmem = _vmem_budget(
        2 * m_blk * Ep * w_bytes,             # x tiles (double-buffered)
        2 * Ep * n_blk * w_bytes,             # W_ih tiles (index varies with n)
        2 * 8 * n_blk * 4,                    # bias tiles (sublane-padded)
        2 * m_blk * n_blk * g_bytes,          # output tiles
    )
    gates_flat = pl.pallas_call(
        input_proj_kernel,
        out_shape=jax.ShapeDtypeStruct((rows_p, G), gates_dtype),
        grid_spec=pltpu.PrefetchScalarGridSpec(
            num_scalar_prefetch=0,
            grid=(rows_p // m_blk, G // n_blk),
            in_specs=[
                pl.BlockSpec((m_blk, Ep), lambda m, n: (m, 0)),
                pl.BlockSpec((Ep, n_blk), lambda m, n: (0, n)),
                pl.BlockSpec((1, n_blk), lambda m, n: (0, n)),
            ],
            out_specs=pl.BlockSpec((m_blk, n_blk), lambda m, n: (m, n)),
        ),
        compiler_params=pltpu.CompilerParams(
            dimension_semantics=("parallel", "parallel"),
            vmem_limit_bytes=k1_vmem),
    )(x2d, w_ih_f, b_in)
    gates_x = gates_flat[:rows].reshape(S_pad, Bp, G)

    # ---- Kernel 2: serial recurrence (only h @ W_hh on the critical path) --
    wbuf = 1 if single_buffer_weights else 2
    k2_vmem = _vmem_budget(
        2 * t_blk * b_blk * G * g_bytes,      # i_ref tiles (double-buffered)
        wbuf * Hp * G * w_bytes,              # W_hh (grid-invariant)
        wbuf * 8 * Hp * 4,                    # b_hn
        wbuf * Hp * Lp * w_bytes,             # W_lin
        wbuf * 8 * Lp * 4,                    # b_lin
        2 * b_blk * Lp * 4,                   # output tiles
        b_blk * Hp * 4,                       # hidden-state scratch
    )
    ws = functools.partial(_weight_spec, single_buffer=single_buffer_weights)
    out_p = pl.pallas_call(
        functools.partial(gru_kernel, seq_len=S, mask_tail=mask_tail),
        out_shape=jax.ShapeDtypeStruct((Bp, Lp), jnp.float32),
        grid_spec=pltpu.PrefetchScalarGridSpec(
            num_scalar_prefetch=0,
            grid=(Bp // b_blk, S_pad // t_blk),   # (batch parallel, time serial)
            in_specs=[
                pl.BlockSpec((t_blk, b_blk, G), lambda b, t: (t, b, 0)),
                ws((Hp, G), lambda b, t: (0, 0)),
                ws((1, Hp), lambda b, t: (0, 0)),
                ws((Hp, Lp), lambda b, t: (0, 0)),
                ws((1, Lp), lambda b, t: (0, 0)),
            ],
            out_specs=pl.BlockSpec((b_blk, Lp), lambda b, t: (b, 0)),
            scratch_shapes=[pltpu.VMEM((b_blk, Hp), jnp.float32)],
        ),
        compiler_params=pltpu.CompilerParams(
            dimension_semantics=("parallel", "arbitrary"),
            vmem_limit_bytes=k2_vmem),
    )(gates_x, w_hh_f, b_hn, w_lin_p, b_lin_p)

    return out_p[:B, :L]


# ---------------------------------------------------------------------------
# Parameters + pure-JAX reference (PyTorch nn.GRU semantics, f32)
# ---------------------------------------------------------------------------
def make_params(key, vocab_size, emb_dim, hidden_size, num_labels):
    ks = jax.random.split(key, 7)
    scale = 1.0 / jnp.sqrt(hidden_size)
    embed = jax.random.normal(ks[0], (vocab_size + 1, emb_dim), jnp.float32) * 0.1
    embed = embed.at[0].set(0.0)  # padding_idx=0
    w_ih = jax.random.uniform(ks[1], (3, emb_dim, hidden_size), jnp.float32, -scale, scale)
    w_hh = jax.random.uniform(ks[2], (3, hidden_size, hidden_size), jnp.float32, -scale, scale)
    b_ih = jax.random.uniform(ks[3], (3, 1, hidden_size), jnp.float32, -scale, scale)
    b_hh = jax.random.uniform(ks[4], (3, 1, hidden_size), jnp.float32, -scale, scale)
    w_lin = jax.random.uniform(ks[5], (hidden_size, num_labels), jnp.float32, -scale, scale)
    b_lin = jax.random.uniform(ks[6], (1, num_labels), jnp.float32, -scale, scale)
    return dict(embed=embed, w_ih=w_ih, w_hh=w_hh, b_ih=b_ih, b_hh=b_hh,
                w_lin=w_lin, b_lin=b_lin)


def ref_forward(input_seqs, p):
    emb = p["embed"][input_seqs]  # (S, B, E)
    B = emb.shape[1]
    H = p["w_hh"].shape[-1]

    def step(h, x):
        i_r = x @ p["w_ih"][0] + p["b_ih"][0]
        i_z = x @ p["w_ih"][1] + p["b_ih"][1]
        i_n = x @ p["w_ih"][2] + p["b_ih"][2]
        h_r = h @ p["w_hh"][0] + p["b_hh"][0]
        h_z = h @ p["w_hh"][1] + p["b_hh"][1]
        h_n = h @ p["w_hh"][2] + p["b_hh"][2]
        r = jax.nn.sigmoid(i_r + h_r)
        z = jax.nn.sigmoid(i_z + h_z)
        n = jnp.tanh(i_n + r * h_n)
        return (1.0 - z) * n + z * h, None

    h0 = jnp.zeros((B, H), jnp.float32)
    h_last, _ = jax.lax.scan(step, h0, emb)
    return jax.nn.sigmoid(h_last @ p["w_lin"] + p["b_lin"])


if __name__ == "__main__":
    vocab_size = 50
    emb_dim = 32
    hidden_size = 32
    num_labels = 10
    seq_len = 8
    batch = 2

    key = jax.random.PRNGKey(0)
    k_param, k_data = jax.random.split(key)
    params = make_params(k_param, vocab_size, emb_dim, hidden_size, num_labels)
    input_seqs = jax.random.randint(
        k_data, (seq_len, batch), 0, vocab_size + 1, dtype=jnp.int32)

    ref = ref_forward(input_seqs, params)

    def run_all(single_buffer_weights):
        # f32 mode: faithful to the PyTorch module's f32 forward.
        out_f32 = jax.block_until_ready(rnn_gru_forward(
            input_seqs, params, t_blk=4, use_bf16=False,
            single_buffer_weights=single_buffer_weights))
        assert out_f32.shape == (batch, num_labels)
        assert jnp.allclose(out_f32, ref, atol=1e-4, rtol=1e-4), "f32 mismatch vs reference"

        # Ragged time chunking (S=8, t_blk=3 -> padded to 9, masked tail step).
        out_rag = jax.block_until_ready(rnn_gru_forward(
            input_seqs, params, t_blk=3, use_bf16=False,
            single_buffer_weights=single_buffer_weights))
        assert jnp.allclose(out_rag, ref, atol=1e-4, rtol=1e-4), "ragged-tail mismatch"

        # bf16 MXU operands + bf16 gates (f32 accumulation / gate math).
        out_bf16 = jax.block_until_ready(rnn_gru_forward(
            input_seqs, params, t_blk=4, use_bf16=True,
            single_buffer_weights=single_buffer_weights))
        assert out_bf16.shape == (batch, num_labels)
        assert jnp.allclose(out_bf16, ref, atol=2e-2), "bf16 mismatch vs reference"

    try:
        # Preferred: single-buffered (pl.Buffered(1)) grid-invariant weights.
        run_all(True)
    except Exception:
        # Fall back to default double buffering if this jax build rejects
        # pipeline_mode=pl.Buffered(1) on TPU pallas_call.
        run_all(False)

    print("KERNEL_OK")
</pallas_src>

<mosaic_0001>
module attributes {stable_mosaic.version = 11 : i64} {
  func.func @input_proj_kernel(%arg0: i32, %arg1: i32, %arg2: memref<64x128xf32, #tpu.memory_space<vmem>>, %arg3: memref<128x128xf32, #tpu.memory_space<vmem>>, %arg4: memref<1x128xf32, #tpu.memory_space<vmem>>, %arg5: memref<64x128xf32, #tpu.memory_space<vmem>>) attributes {dimension_semantics = [#tpu.dimension_semantics<parallel>, #tpu.dimension_semantics<parallel>], iteration_bounds = array<i64: 1, 3>, scalar_prefetch = 0 : i64, scratch_operands = 0 : i64, tpu.core_type = #tpu.core_type<tc>, window_params = [{transform_indices = @transform_0, window_bounds = array<i64: 64, 128>}, {transform_indices = @transform_1, window_bounds = array<i64: 128, 128>}, {transform_indices = @transform_2, window_bounds = array<i64: 1, 128>}, {transform_indices = @transform_3, window_bounds = array<i64: 64, 128>}]} {
    %c0 = arith.constant 0 : index
    %c0_0 = arith.constant 0 : index
    %0 = vector.load %arg2[%c0, %c0_0] : memref<64x128xf32, #tpu.memory_space<vmem>>, vector<64x128xf32>
    %c0_1 = arith.constant 0 : index
    %c0_2 = arith.constant 0 : index
    %1 = vector.load %arg3[%c0_1, %c0_2] : memref<128x128xf32, #tpu.memory_space<vmem>>, vector<128x128xf32>
    %cst = arith.constant dense<0.000000e+00> : vector<64x128xf32>
    %2 = tpu.matmul %0, %1, %cst {dimension_numbers = #tpu.dot_dimension_numbers<[1], [0], [0], [1], [0, 0, 1, 1], [], []>} : vector<64x128xf32>, vector<128x128xf32>, vector<64x128xf32> -> vector<64x128xf32>
    %c0_3 = arith.constant 0 : index
    %c0_4 = arith.constant 0 : index
    %3 = vector.load %arg4[%c0_3, %c0_4] : memref<1x128xf32, #tpu.memory_space<vmem>>, vector<1x128xf32>
    %4 = vector.broadcast %3 : vector<1x128xf32> to vector<64x128xf32>
    %5 = arith.addf %2, %4 : vector<64x128xf32>
    %c0_5 = arith.constant 0 : index
    %c0_6 = arith.constant 0 : index
    %6 = vector.load %arg5[%c0_5, %c0_6] : memref<64x128xf32, #tpu.memory_space<vmem>>, vector<64x128xf32>
    tpu.vector_store %arg5[%c0_5, %c0_6], %5 {strides = array<i32>} : memref<64x128xf32, #tpu.memory_space<vmem>>, vector<64x128xf32>,
    return
  }
  func.func @transform_0(%arg0: i32, %arg1: i32) -> (i32, i32) {
    %c0_i32 = arith.constant 0 : i32
    %c0_i32_0 = arith.constant 0 : i32
    return %arg0, %c0_i32 : i32, i32
  }
  func.func @transform_1(%arg0: i32, %arg1: i32) -> (i32, i32) {
    %c0_i32 = arith.constant 0 : i32
    %c0_i32_0 = arith.constant 0 : i32
    return %c0_i32, %arg1 : i32, i32
  }
  func.func @transform_2(%arg0: i32, %arg1: i32) -> (i32, i32) {
    %c0_i32 = arith.constant 0 : i32
    %c0_i32_0 = arith.constant 0 : i32
    return %c0_i32, %arg1 : i32, i32
  }
  func.func @transform_3(%arg0: i32, %arg1: i32) -> (i32, i32) {
    %c0_i32 = arith.constant 0 : i32
    return %arg0, %arg1 : i32, i32
  }
}

module attributes {stable_mosaic.version = 11 : i64} {
  func.func @gru_kernel(%arg0: i32, %arg1: i32, %arg2: memref<4x8x384xf32, #tpu.memory_space<vmem>>, %arg3: memref<128x384xf32, #tpu.memory_space<vmem>>, %arg4: memref<1x128xf32, #tpu.memory_space<vmem>>, %arg5: memref<128x128xf32, #tpu.memory_space<vmem>>, %arg6: memref<1x128xf32, #tpu.memory_space<vmem>>, %arg7: memref<8x128xf32, #tpu.memory_space<vmem>>, %arg8: memref<8x128xf32, #tpu.memory_space<vmem>>) attributes {dimension_semantics = [#tpu.dimension_semantics<parallel>, #tpu.dimension_semantics<arbitrary>], iteration_bounds = array<i64: 1, 2>, scalar_prefetch = 0 : i64, scratch_operands = 1 : i64, tpu.core_type = #tpu.core_type<tc>, window_params = [{transform_indices = @transform_0, window_bounds = array<i64: 4, 8, 384>}, {pipeline_mode = #tpu.pipeline_mode<synchronous>, transform_indices = @transform_1, window_bounds = array<i64: 128, 384>}, {pipeline_mode = #tpu.pipeline_mode<synchronous>, transform_indices = @transform_2, window_bounds = array<i64: 1, 128>}, {pipeline_mode = #tpu.pipeline_mode<synchronous>, transform_indices = @transform_3, window_bounds = array<i64: 128, 128>}, {pipeline_mode = #tpu.pipeline_mode<synchronous>, transform_indices = @transform_4, window_bounds = array<i64: 1, 128>}, {transform_indices = @transform_5, window_bounds = array<i64: 8, 128>}]} {
    %c0_i32 = arith.constant 0 : i32
    %0 = arith.cmpi eq, %arg1, %c0_i32 : i32
    %1 = arith.extui %0 : i1 to i32
    %c0_i32_0 = arith.constant 0 : i32
    %2 = arith.cmpi ne, %1, %c0_i32_0 : i32
    scf.if %2 {
      %cst_50 = arith.constant 0.000000e+00 : f32
      %152 = vector.broadcast %cst_50 : f32 to vector<8x128xf32>
      %c0_51 = arith.constant 0 : index
      %c0_52 = arith.constant 0 : index
      %153 = vector.load %arg8[%c0_51, %c0_52] : memref<8x128xf32, #tpu.memory_space<vmem>>, vector<8x128xf32>
      tpu.vector_store %arg8[%c0_51, %c0_52], %152 {strides = array<i32>} : memref<8x128xf32, #tpu.memory_space<vmem>>, vector<8x128xf32>,
      %cst_53 = arith.constant 0.000000e+00 : f32
      %154 = vector.broadcast %cst_53 : f32 to vector<8x128xf32>
      %c0_54 = arith.constant 0 : index
      %c0_55 = arith.constant 0 : index
      %155 = vector.load %arg7[%c0_54, %c0_55] : memref<8x128xf32, #tpu.memory_space<vmem>>, vector<8x128xf32>
      tpu.vector_store %arg7[%c0_54, %c0_55], %154 {strides = array<i32>} : memref<8x128xf32, #tpu.memory_space<vmem>>, vector<8x128xf32>,
    } else {
    }
    %c0 = arith.constant 0 : index
    %c0_1 = arith.constant 0 : index
    %3 = vector.load %arg3[%c0, %c0_1] : memref<128x384xf32, #tpu.memory_space<vmem>>, vector<128x384xf32>
    %c0_2 = arith.constant 0 : index
    %c0_3 = arith.constant 0 : index
    %4 = vector.load %arg4[%c0_2, %c0_3] : memref<1x128xf32, #tpu.memory_space<vmem>>, vector<1x128xf32>
    %5 = vector.shape_cast %4 : vector<1x128xf32> to vector<1x128xf32>
    %6 = vector.broadcast %5 : vector<1x128xf32> to vector<8x128xf32>
    %c0_4 = arith.constant 0 : index
    %c0_5 = arith.constant 0 : index
    %7 = vector.load %arg8[%c0_4, %c0_5] : memref<8x128xf32, #tpu.memory_space<vmem>>, vector<8x128xf32>
    %c0_i32_6 = arith.constant 0 : i32
    %8 = arith.index_cast %c0_i32_6 : i32 to index
    %c0_7 = arith.constant 0 : index
    %c0_8 = arith.constant 0 : index
    %9 = vector.load %arg2[%8, %c0_7, %c0_8] : memref<4x8x384xf32, #tpu.memory_space<vmem>>, vector<1x8x384xf32>
    %10 = vector.shape_cast %9 : vector<1x8x384xf32> to vector<8x384xf32>
    %cst = arith.constant dense<0.000000e+00> : vector<8x384xf32>
    %11 = tpu.matmul %7, %3, %cst {dimension_numbers = #tpu.dot_dimension_numbers<[1], [0], [0], [1], [0, 0, 1, 1], [], []>} : vector<8x128xf32>, vector<128x384xf32>, vector<8x384xf32> -> vector<8x384xf32>
    %12 = vector.extract_strided_slice %10 {offsets = [0, 0], sizes = [8, 128], strides = [1, 1]} : vector<8x384xf32> to vector<8x128xf32>
    %13 = vector.extract_strided_slice %11 {offsets = [0, 0], sizes = [8, 128], strides = [1, 1]} : vector<8x384xf32> to vector<8x128xf32>
    %14 = arith.addf %12, %13 : vector<8x128xf32>
    %cst_9 = arith.constant 5.000000e-01 : f32
    %15 = vector.broadcast %cst_9 : f32 to vector<8x128xf32>
    %16 = arith.mulf %15, %14 : vector<8x128xf32>
    %17 = math.tanh %16 : vector<8x128xf32>
    %cst_10 = arith.constant 5.000000e-01 : f32
    %18 = vector.broadcast %cst_10 : f32 to vector<8x128xf32>
    %19 = arith.mulf %18, %17 : vector<8x128xf32>
    %cst_11 = arith.constant 5.000000e-01 : f32
    %20 = vector.broadcast %cst_11 : f32 to vector<8x128xf32>
    %21 = arith.addf %19, %20 : vector<8x128xf32>
    %22 = vector.extract_strided_slice %10 {offsets = [0, 128], sizes = [8, 128], strides = [1, 1]} : vector<8x384xf32> to vector<8x128xf32>
    %23 = vector.extract_strided_slice %11 {offsets = [0, 128], sizes = [8, 128], strides = [1, 1]} : vector<8x384xf32> to vector<8x128xf32>
    %24 = arith.addf %22, %23 : vector<8x128xf32>
    %cst_12 = arith.constant 5.000000e-01 : f32
    %25 = vector.broadcast %cst_12 : f32 to vector<8x128xf32>
    %26 = arith.mulf %25, %24 : vector<8x128xf32>
    %27 = math.tanh %26 : vector<8x128xf32>
    %cst_13 = arith.constant 5.000000e-01 : f32
    %28 = vector.broadcast %cst_13 : f32 to vector<8x128xf32>
    %29 = arith.mulf %28, %27 : vector<8x128xf32>
    %cst_14 = arith.constant 5.000000e-01 : f32
    %30 = vector.broadcast %cst_14 : f32 to vector<8x128xf32>
    %31 = arith.addf %29, %30 : vector<8x128xf32>
    %32 = vector.extract_strided_slice %10 {offsets = [0, 256], sizes = [8, 128], strides = [1, 1]} : vector<8x384xf32> to vector<8x128xf32>
    %33 = vector.extract_strided_slice %11 {offsets = [0, 256], sizes = [8, 128], strides = [1, 1]} : vector<8x384xf32> to vector<8x128xf32>
    %34 = arith.addf %33, %6 : vector<8x128xf32>
    %35 = arith.mulf %21, %34 : vector<8x128xf32>
    %36 = arith.addf %32, %35 : vector<8x128xf32>
    %37 = math.tanh %36 : vector<8x128xf32>
    %cst_15 = arith.constant 1.000000e+00 : f32
    %38 = vector.broadcast %cst_15 : f32 to vector<8x128xf32>
    %39 = arith.subf %38, %31 : vector<8x128xf32>
    %40 = arith.mulf %39, %37 : vector<8x128xf32>
    %41 = arith.mulf %31, %7 : vector<8x128xf32>
    %42 = arith.addf %40, %41 : vector<8x128xf32>
    %c1_i32 = arith.constant 1 : i32
    %43 = arith.index_cast %c1_i32 : i32 to index
    %c0_16 = arith.constant 0 : index
    %c0_17 = arith.constant 0 : index
    %44 = vector.load %arg2[%43, %c0_16, %c0_17] : memref<4x8x384xf32, #tpu.memory_space<vmem>>, vector<1x8x384xf32>
    %45 = vector.shape_cast %44 : vector<1x8x384xf32> to vector<8x384xf32>
    %cst_18 = arith.constant dense<0.000000e+00> : vector<8x384xf32>
    %46 = tpu.matmul %42, %3, %cst_18 {dimension_numbers = #tpu.dot_dimension_numbers<[1], [0], [0], [1], [0, 0, 1, 1], [], []>} : vector<8x128xf32>, vector<128x384xf32>, vector<8x384xf32> -> vector<8x384xf32>
    %47 = vector.extract_strided_slice %45 {offsets = [0, 0], sizes = [8, 128], strides = [1, 1]} : vector<8x384xf32> to vector<8x128xf32>
    %48 = vector.extract_strided_slice %46 {offsets = [0, 0], sizes = [8, 128], strides = [1, 1]} : vector<8x384xf32> to vector<8x128xf32>
    %49 = arith.addf %47, %48 : vector<8x128xf32>
    %cst_19 = arith.constant 5.000000e-01 : f32
    %50 = vector.broadcast %cst_19 : f32 to vector<8x128xf32>
    %51 = arith.mulf %50, %49 : vector<8x128xf32>
    %52 = math.tanh %51 : vector<8x128xf32>
    %cst_20 = arith.constant 5.000000e-01 : f32
    %53 = vector.broadcast %cst_20 : f32 to vector<8x128xf32>
    %54 = arith.mulf %53, %52 : vector<8x128xf32>
    %cst_21 = arith.constant 5.000000e-01 : f32
    %55 = vector.broadcast %cst_21 : f32 to vector<8x128xf32>
    %56 = arith.addf %54, %55 : vector<8x128xf32>
    %57 = vector.extract_strided_slice %45 {offsets = [0, 128], sizes = [8, 128], strides = [1, 1]} : vector<8x384xf32> to vector<8x128xf32>
    %58 = vector.extract_strided_slice %46 {offsets = [0, 128], sizes = [8, 128], strides = [1, 1]} : vector<8x384xf32> to vector<8x128xf32>
    %59 = arith.addf %57, %58 : vector<8x128xf32>
    %cst_22 = arith.constant 5.000000e-01 : f32
    %60 = vector.broadcast %cst_22 : f32 to vector<8x128xf32>
    %61 = arith.mulf %60, %59 : vector<8x128xf32>
    %62 = math.tanh %61 : vector<8x128xf32>
    %cst_23 = arith.constant 5.000000e-01 : f32
    %63 = vector.broadcast %cst_23 : f32 to vector<8x128xf32>
    %64 = arith.mulf %63, %62 : vector<8x128xf32>
    %cst_24 = arith.constant 5.000000e-01 : f32
    %65 = vector.broadcast %cst_24 : f32 to vector<8x128xf32>
    %66 = arith.addf %64, %65 : vector<8x128xf32>
    %67 = vector.extract_strided_slice %45 {offsets = [0, 256], sizes = [8, 128], strides = [1, 1]} : vector<8x384xf32> to vector<8x128xf32>
    %68 = vector.extract_strided_slice %46 {offsets = [0, 256], sizes = [8, 128], strides = [1, 1]} : vector<8x384xf32> to vector<8x128xf32>
    %69 = arith.addf %68, %6 : vector<8x128xf32>
    %70 = arith.mulf %56, %69 : vector<8x128xf32>
    %71 = arith.addf %67, %70 : vector<8x128xf32>
    %72 = math.tanh %71 : vector<8x128xf32>
    %cst_25 = arith.constant 1.000000e+00 : f32
    %73 = vector.broadcast %cst_25 : f32 to vector<8x128xf32>
    %74 = arith.subf %73, %66 : vector<8x128xf32>
    %75 = arith.mulf %74, %72 : vector<8x128xf32>
    %76 = arith.mulf %66, %42 : vector<8x128xf32>
    %77 = arith.addf %75, %76 : vector<8x128xf32>
    %c2_i32 = arith.constant 2 : i32
    %78 = arith.index_cast %c2_i32 : i32 to index
    %c0_26 = arith.constant 0 : index
    %c0_27 = arith.constant 0 : index
    %79 = vector.load %arg2[%78, %c0_26, %c0_27] : memref<4x8x384xf32, #tpu.memory_space<vmem>>, vector<1x8x384xf32>
    %80 = vector.shape_cast %79 : vector<1x8x384xf32> to vector<8x384xf32>
    %cst_28 = arith.constant dense<0.000000e+00> : vector<8x384xf32>
    %81 = tpu.matmul %77, %3, %cst_28 {dimension_numbers = #tpu.dot_dimension_numbers<[1], [0], [0], [1], [0, 0, 1, 1], [], []>} : vector<8x128xf32>, vector<128x384xf32>, vector<8x384xf32> -> vector<8x384xf32>
    %82 = vector.extract_strided_slice %80 {offsets = [0, 0], sizes = [8, 128], strides = [1, 1]} : vector<8x384xf32> to vector<8x128xf32>
    %83 = vector.extract_strided_slice %81 {offsets = [0, 0], sizes = [8, 128], strides = [1, 1]} : vector<8x384xf32> to vector<8x128xf32>
    %84 = arith.addf %82, %83 : vector<8x128xf32>
    %cst_29 = arith.constant 5.000000e-01 : f32
    %85 = vector.broadcast %cst_29 : f32 to vector<8x128xf32>
    %86 = arith.mulf %85, %84 : vector<8x128xf32>
    %87 = math.tanh %86 : vector<8x128xf32>
    %cst_30 = arith.constant 5.000000e-01 : f32
    %88 = vector.broadcast %cst_30 : f32 to vector<8x128xf32>
    %89 = arith.mulf %88, %87 : vector<8x128xf32>
    %cst_31 = arith.constant 5.000000e-01 : f32
    %90 = vector.broadcast %cst_31 : f32 to vector<8x128xf32>
    %91 = arith.addf %89, %90 : vector<8x128xf32>
    %92 = vector.extract_strided_slice %80 {offsets = [0, 128], sizes = [8, 128], strides = [1, 1]} : vector<8x384xf32> to vector<8x128xf32>
    %93 = vector.extract_strided_slice %81 {offsets = [0, 128], sizes = [8, 128], strides = [1, 1]} : vector<8x384xf32> to vector<8x128xf32>
    %94 = arith.addf %92, %93 : vector<8x128xf32>
    %cst_32 = arith.constant 5.000000e-01 : f32
    %95 = vector.broadcast %cst_32 : f32 to vector<8x128xf32>
    %96 = arith.mulf %95, %94 : vector<8x128xf32>
    %97 = math.tanh %96 : vector<8x128xf32>
    %cst_33 = arith.constant 5.000000e-01 : f32
    %98 = vector.broadcast %cst_33 : f32 to vector<8x128xf32>
    %99 = arith.mulf %98, %97 : vector<8x128xf32>
    %cst_34 = arith.constant 5.000000e-01 : f32
    %100 = vector.broadcast %cst_34 : f32 to vector<8x128xf32>
    %101 = arith.addf %99, %100 : vector<8x128xf32>
    %102 = vector.extract_strided_slice %80 {offsets = [0, 256], sizes = [8, 128], strides = [1, 1]} : vector<8x384xf32> to vector<8x128xf32>
    %103 = vector.extract_strided_slice %81 {offsets = [0, 256], sizes = [8, 128], strides = [1, 1]} : vector<8x384xf32> to vector<8x128xf32>
    %104 = arith.addf %103, %6 : vector<8x128xf32>
    %105 = arith.mulf %91, %104 : vector<8x128xf32>
    %106 = arith.addf %102, %105 : vector<8x128xf32>
    %107 = math.tanh %106 : vector<8x128xf32>
    %cst_35 = arith.constant 1.000000e+00 : f32
    %108 = vector.broadcast %cst_35 : f32 to vector<8x128xf32>
    %109 = arith.subf %108, %101 : vector<8x128xf32>
    %110 = arith.mulf %109, %107 : vector<8x128xf32>
    %111 = arith.mulf %101, %77 : vector<8x128xf32>
    %112 = arith.addf %110, %111 : vector<8x128xf32>
    %c3_i32 = arith.constant 3 : i32
    %113 = arith.index_cast %c3_i32 : i32 to index
    %c0_36 = arith.constant 0 : index
    %c0_37 = arith.constant 0 : index
    %114 = vector.load %arg2[%113, %c0_36, %c0_37] : memref<4x8x384xf32, #tpu.memory_space<vmem>>, vector<1x8x384xf32>
    %115 = vector.shape_cast %114 : vector<1x8x384xf32> to vector<8x384xf32>
    %cst_38 = arith.constant dense<0.000000e+00> : vector<8x384xf32>
    %116 = tpu.matmul %112, %3, %cst_38 {dimension_numbers = #tpu.dot_dimension_numbers<[1], [0], [0], [1], [0, 0, 1, 1], [], []>} : vector<8x128xf32>, vector<128x384xf32>, vector<8x384xf32> -> vector<8x384xf32>
    %117 = vector.extract_strided_slice %115 {offsets = [0, 0], sizes = [8, 128], strides = [1, 1]} : vector<8x384xf32> to vector<8x128xf32>
    %118 = vector.extract_strided_slice %116 {offsets = [0, 0], sizes = [8, 128], strides = [1, 1]} : vector<8x384xf32> to vector<8x128xf32>
    %119 = arith.addf %117, %118 : vector<8x128xf32>
    %cst_39 = arith.constant 5.000000e-01 : f32
    %120 = vector.broadcast %cst_39 : f32 to vector<8x128xf32>
    %121 = arith.mulf %120, %119 : vector<8x128xf32>
    %122 = math.tanh %121 : vector<8x128xf32>
    %cst_40 = arith.constant 5.000000e-01 : f32
    %123 = vector.broadcast %cst_40 : f32 to vector<8x128xf32>
    %124 = arith.mulf %123, %122 : vector<8x128xf32>
    %cst_41 = arith.constant 5.000000e-01 : f32
    %125 = vector.broadcast %cst_41 : f32 to vector<8x128xf32>
    %126 = arith.addf %124, %125 : vector<8x128xf32>
    %127 = vector.extract_strided_slice %115 {offsets = [0, 128], sizes = [8, 128], strides = [1, 1]} : vector<8x384xf32> to vector<8x128xf32>
    %128 = vector.extract_strided_slice %116 {offsets = [0, 128], sizes = [8, 128], strides = [1, 1]} : vector<8x384xf32> to vector<8x128xf32>
    %129 = arith.addf %127, %128 : vector<8x128xf32>
    %cst_42 = arith.constant 5.000000e-01 : f32
    %130 = vector.broadcast %cst_42 : f32 to vector<8x128xf32>
    %131 = arith.mulf %130, %129 : vector<8x128xf32>
    %132 = math.tanh %131 : vector<8x128xf32>
    %cst_43 = arith.constant 5.000000e-01 : f32
    %133 = vector.broadcast %cst_43 : f32 to vector<8x128xf32>
    %134 = arith.mulf %133, %132 : vector<8x128xf32>
    %cst_44 = arith.constant 5.000000e-01 : f32
    %135 = vector.broadcast %cst_44 : f32 to vector<8x128xf32>
    %136 = arith.addf %134, %135 : vector<8x128xf32>
    %137 = vector.extract_strided_slice %115 {offsets = [0, 256], sizes = [8, 128], strides = [1, 1]} : vector<8x384xf32> to vector<8x128xf32>
    %138 = vector.extract_strided_slice %116 {offsets = [0, 256], sizes = [8, 128], strides = [1, 1]} : vector<8x384xf32> to vector<8x128xf32>
    %139 = arith.addf %138, %6 : vector<8x128xf32>
    %140 = arith.mulf %126, %139 : vector<8x128xf32>
    %141 = arith.addf %137, %140 : vector<8x128xf32>
    %142 = math.tanh %141 : vector<8x128xf32>
    %cst_45 = arith.constant 1.000000e+00 : f32
    %143 = vector.broadcast %cst_45 : f32 to vector<8x128xf32>
    %144 = arith.subf %143, %136 : vector<8x128xf32>
    %145 = arith.mulf %144, %142 : vector<8x128xf32>
    %146 = arith.mulf %136, %112 : vector<8x128xf32>
    %147 = arith.addf %145, %146 : vector<8x128xf32>
    %c4_i32 = arith.constant 4 : i32
    %c0_46 = arith.constant 0 : index
    %c0_47 = arith.constant 0 : index
    %148 = vector.load %arg8[%c0_46, %c0_47] : memref<8x128xf32, #tpu.memory_space<vmem>>, vector<8x128xf32>
    tpu.vector_store %arg8[%c0_46, %c0_47], %147 {strides = array<i32>} : memref<8x128xf32, #tpu.memory_space<vmem>>, vector<8x128xf32>,
    %c1_i32_48 = arith.constant 1 : i32
    %149 = arith.cmpi eq, %arg1, %c1_i32_48 : i32
    %150 = arith.extui %149 : i1 to i32
    %c0_i32_49 = arith.constant 0 : i32
    %151 = arith.cmpi ne, %150, %c0_i32_49 : i32
    scf.if %151 {
      %c0_50 = arith.constant 0 : index
      %c0_51 = arith.constant 0 : index
      %152 = vector.load %arg5[%c0_50, %c0_51] : memref<128x128xf32, #tpu.memory_space<vmem>>, vector<128x128xf32>
      %cst_52 = arith.constant dense<0.000000e+00> : vector<8x128xf32>
      %153 = tpu.matmul %147, %152, %cst_52 {dimension_numbers = #tpu.dot_dimension_numbers<[1], [0], [0], [1], [0, 0, 1, 1], [], []>} : vector<8x128xf32>, vector<128x128xf32>, vector<8x128xf32> -> vector<8x128xf32>
      %c0_53 = arith.constant 0 : index
      %c0_54 = arith.constant 0 : index
      %154 = vector.load %arg6[%c0_53, %c0_54] : memref<1x128xf32, #tpu.memory_space<vmem>>, vector<1x128xf32>
      %155 = vector.broadcast %154 : vector<1x128xf32> to vector<8x128xf32>
      %156 = arith.addf %153, %155 : vector<8x128xf32>
      %157 = arith.negf %156 : vector<8x128xf32>
      %158 = math.exp %157 : vector<8x128xf32>
      %cst_55 = arith.constant 1.000000e+00 : f32
      %159 = vector.broadcast %cst_55 : f32 to vector<8x128xf32>
      %160 = arith.addf %159, %158 : vector<8x128xf32>
      %161 = arith.divf %159, %160 : vector<8x128xf32>
      %c0_56 = arith.constant 0 : index
      %c0_57 = arith.constant 0 : index
      %162 = vector.load %arg7[%c0_56, %c0_57] : memref<8x128xf32, #tpu.memory_space<vmem>>, vector<8x128xf32>
      tpu.vector_store %arg7[%c0_56, %c0_57], %161 {strides = array<i32>} : memref<8x128xf32, #tpu.memory_space<vmem>>, vector<8x128xf32>,
    } else {
    }
    return
  }
  func.func @transform_0(%arg0: i32, %arg1: i32) -> (i32, i32, i32) {
    %c0_i32 = arith.constant 0 : i32
    %c0_i32_0 = arith.constant 0 : i32
    return %arg1, %arg0, %c0_i32 : i32, i32, i32
  }
  func.func @transform_1(%arg0: i32, %arg1: i32) -> (i32, i32) {
    %c0_i32 = arith.constant 0 : i32
    %c0_i32_0 = arith.constant 0 : i32
    %c0_i32_1 = arith.constant 0 : i32
    return %c0_i32, %c0_i32_0 : i32, i32
  }
  func.func @transform_2(%arg0: i32, %arg1: i32) -> (i32, i32) {
    %c0_i32 = arith.constant 0 : i32
    %c0_i32_0 = arith.constant 0 : i32
    %c0_i32_1 = arith.constant 0 : i32
    return %c0_i32, %c0_i32_0 : i32, i32
  }
  func.func @transform_3(%arg0: i32, %arg1: i32) -> (i32, i32) {
    %c0_i32 = arith.constant 0 : i32
    %c0_i32_0 = arith.constant 0 : i32
    %c0_i32_1 = arith.constant 0 : i32
    return %c0_i32, %c0_i32_0 : i32, i32
  }
  func.func @transform_4(%arg0: i32, %arg1: i32) -> (i32, i32) {
    %c0_i32 = arith.constant 0 : i32
    %c0_i32_0 = arith.constant 0 : i32
    %c0_i32_1 = arith.constant 0 : i32
    return %c0_i32, %c0_i32_0 : i32, i32
  }
  func.func @transform_5(%arg0: i32, %arg1: i32) -> (i32, i32) {
    %c0_i32 = arith.constant 0 : i32
    %c0_i32_0 = arith.constant 0 : i32
    return %arg0, %c0_i32 : i32, i32
  }
}

module attributes {stable_mosaic.version = 11 : i64} {
  func.func @input_proj_kernel(%arg0: i32, %arg1: i32, %arg2: memref<64x128xf32, #tpu.memory_space<vmem>>, %arg3: memref<128x128xf32, #tpu.memory_space<vmem>>, %arg4: memref<1x128xf32, #tpu.memory_space<vmem>>, %arg5: memref<64x128xf32, #tpu.memory_space<vmem>>) attributes {dimension_semantics = [#tpu.dimension_semantics<parallel>, #tpu.dimension_semantics<parallel>], iteration_bounds = array<i64: 1, 3>, scalar_prefetch = 0 : i64, scratch_operands = 0 : i64, tpu.core_type = #tpu.core_type<tc>, window_params = [{transform_indices = @transform_0, window_bounds = array<i64: 64, 128>}, {transform_indices = @transform_1, window_bounds = array<i64: 128, 128>}, {transform_indices = @transform_2, window_bounds = array<i64: 1, 128>}, {transform_indices = @transform_3, window_bounds = array<i64: 64, 128>}]} {
    %c0 = arith.constant 0 : index
    %c0_0 = arith.constant 0 : index
    %0 = vector.load %arg2[%c0, %c0_0] : memref<64x128xf32, #tpu.memory_space<vmem>>, vector<64x128xf32>
    %c0_1 = arith.constant 0 : index
    %c0_2 = arith.constant 0 : index
    %1 = vector.load %arg3[%c0_1, %c0_2] : memref<128x128xf32, #tpu.memory_space<vmem>>, vector<128x128xf32>
    %cst = arith.constant dense<0.000000e+00> : vector<64x128xf32>
    %2 = tpu.matmul %0, %1, %cst {dimension_numbers = #tpu.dot_dimension_numbers<[1], [0], [0], [1], [0, 0, 1, 1], [], []>} : vector<64x128xf32>, vector<128x128xf32>, vector<64x128xf32> -> vector<64x128xf32>
    %c0_3 = arith.constant 0 : index
    %c0_4 = arith.constant 0 : index
    %3 = vector.load %arg4[%c0_3, %c0_4] : memref<1x128xf32, #tpu.memory_space<vmem>>, vector<1x128xf32>
    %4 = vector.broadcast %3 : vector<1x128xf32> to vector<64x128xf32>
    %5 = arith.addf %2, %4 : vector<64x128xf32>
    %c0_5 = arith.constant 0 : index
    %c0_6 = arith.constant 0 : index
    %6 = vector.load %arg5[%c0_5, %c0_6] : memref<64x128xf32, #tpu.memory_space<vmem>>, vector<64x128xf32>
    tpu.vector_store %arg5[%c0_5, %c0_6], %5 {strides = array<i32>} : memref<64x128xf32, #tpu.memory_space<vmem>>, vector<64x128xf32>,
    return
  }
  func.func @transform_0(%arg0: i32, %arg1: i32) -> (i32, i32) {
    %c0_i32 = arith.constant 0 : i32
    %c0_i32_0 = arith.constant 0 : i32
    return %arg0, %c0_i32 : i32, i32
  }
  func.func @transform_1(%arg0: i32, %arg1: i32) -> (i32, i32) {
    %c0_i32 = arith.constant 0 : i32
    %c0_i32_0 = arith.constant 0 : i32
    return %c0_i32, %arg1 : i32, i32
  }
  func.func @transform_2(%arg0: i32, %arg1: i32) -> (i32, i32) {
    %c0_i32 = arith.constant 0 : i32
    %c0_i32_0 = arith.constant 0 : i32
    return %c0_i32, %arg1 : i32, i32
  }
  func.func @transform_3(%arg0: i32, %arg1: i32) -> (i32, i32) {
    %c0_i32 = arith.constant 0 : i32
    return %arg0, %arg1 : i32, i32
  }
}

module attributes {stable_mosaic.version = 11 : i64} {
  func.func @gru_kernel(%arg0: i32, %arg1: i32, %arg2: memref<4x8x384xf32, #tpu.memory_space<vmem>>, %arg3: memref<128x384xf32, #tpu.memory_space<vmem>>, %arg4: memref<1x128xf32, #tpu.memory_space<vmem>>, %arg5: memref<128x128xf32, #tpu.memory_space<vmem>>, %arg6: memref<1x128xf32, #tpu.memory_space<vmem>>, %arg7: memref<8x128xf32, #tpu.memory_space<vmem>>, %arg8: memref<8x128xf32, #tpu.memory_space<vmem>>) attributes {dimension_semantics = [#tpu.dimension_semantics<parallel>, #tpu.dimension_semantics<arbitrary>], iteration_bounds = array<i64: 1, 2>, scalar_prefetch = 0 : i64, scratch_operands = 1 : i64, tpu.core_type = #tpu.core_type<tc>, window_params = [{transform_indices = @transform_0, window_bounds = array<i64: 4, 8, 384>}, {pipeline_mode = #tpu.pipeline_mode<synchronous>, transform_indices = @transform_1, window_bounds = array<i64: 128, 384>}, {pipeline_mode = #tpu.pipeline_mode<synchronous>, transform_indices = @transform_2, window_bounds = array<i64: 1, 128>}, {pipeline_mode = #tpu.pipeline_mode<synchronous>, transform_indices = @transform_3, window_bounds = array<i64: 128, 128>}, {pipeline_mode = #tpu.pipeline_mode<synchronous>, transform_indices = @transform_4, window_bounds = array<i64: 1, 128>}, {transform_indices = @transform_5, window_bounds = array<i64: 8, 128>}]} {
    %c0_i32 = arith.constant 0 : i32
    %0 = arith.cmpi eq, %arg1, %c0_i32 : i32
    %1 = arith.extui %0 : i1 to i32
    %c0_i32_0 = arith.constant 0 : i32
    %2 = arith.cmpi ne, %1, %c0_i32_0 : i32
    scf.if %2 {
      %cst_50 = arith.constant 0.000000e+00 : f32
      %152 = vector.broadcast %cst_50 : f32 to vector<8x128xf32>
      %c0_51 = arith.constant 0 : index
      %c0_52 = arith.constant 0 : index
      %153 = vector.load %arg8[%c0_51, %c0_52] : memref<8x128xf32, #tpu.memory_space<vmem>>, vector<8x128xf32>
      tpu.vector_store %arg8[%c0_51, %c0_52], %152 {strides = array<i32>} : memref<8x128xf32, #tpu.memory_space<vmem>>, vector<8x128xf32>,
      %cst_53 = arith.constant 0.000000e+00 : f32
      %154 = vector.broadcast %cst_53 : f32 to vector<8x128xf32>
      %c0_54 = arith.constant 0 : index
      %c0_55 = arith.constant 0 : index
      %155 = vector.load %arg7[%c0_54, %c0_55] : memref<8x128xf32, #tpu.memory_space<vmem>>, vector<8x128xf32>
      tpu.vector_store %arg7[%c0_54, %c0_55], %154 {strides = array<i32>} : memref<8x128xf32, #tpu.memory_space<vmem>>, vector<8x128xf32>,
    } else {
    }
    %c0 = arith.constant 0 : index
    %c0_1 = arith.constant 0 : index
    %3 = vector.load %arg3[%c0, %c0_1] : memref<128x384xf32, #tpu.memory_space<vmem>>, vector<128x384xf32>
    %c0_2 = arith.constant 0 : index
    %c0_3 = arith.constant 0 : index
    %4 = vector.load %arg4[%c0_2, %c0_3] : memref<1x128xf32, #tpu.memory_space<vmem>>, vector<1x128xf32>
    %5 = vector.shape_cast %4 : vector<1x128xf32> to vector<1x128xf32>
    %6 = vector.broadcast %5 : vector<1x128xf32> to vector<8x128xf32>
    %c0_4 = arith.constant 0 : index
    %c0_5 = arith.constant 0 : index
    %7 = vector.load %arg8[%c0_4, %c0_5] : memref<8x128xf32, #tpu.memory_space<vmem>>, vector<8x128xf32>
    %c0_i32_6 = arith.constant 0 : i32
    %8 = arith.index_cast %c0_i32_6 : i32 to index
    %c0_7 = arith.constant 0 : index
    %c0_8 = arith.constant 0 : index
    %9 = vector.load %arg2[%8, %c0_7, %c0_8] : memref<4x8x384xf32, #tpu.memory_space<vmem>>, vector<1x8x384xf32>
    %10 = vector.shape_cast %9 : vector<1x8x384xf32> to vector<8x384xf32>
    %cst = arith.constant dense<0.000000e+00> : vector<8x384xf32>
    %11 = tpu.matmul %7, %3, %cst {dimension_numbers = #tpu.dot_dimension_numbers<[1], [0], [0], [1], [0, 0, 1, 1], [], []>} : vector<8x128xf32>, vector<128x384xf32>, vector<8x384xf32> -> vector<8x384xf32>
    %12 = vector.extract_strided_slice %10 {offsets = [0, 0], sizes = [8, 128], strides = [1, 1]} : vector<8x384xf32> to vector<8x128xf32>
    %13 = vector.extract_strided_slice %11 {offsets = [0, 0], sizes = [8, 128], strides = [1, 1]} : vector<8x384xf32> to vector<8x128xf32>
    %14 = arith.addf %12, %13 : vector<8x128xf32>
    %cst_9 = arith.constant 5.000000e-01 : f32
    %15 = vector.broadcast %cst_9 : f32 to vector<8x128xf32>
    %16 = arith.mulf %15, %14 : vector<8x128xf32>
    %17 = math.tanh %16 : vector<8x128xf32>
    %cst_10 = arith.constant 5.000000e-01 : f32
    %18 = vector.broadcast %cst_10 : f32 to vector<8x128xf32>
    %19 = arith.mulf %18, %17 : vector<8x128xf32>
    %cst_11 = arith.constant 5.000000e-01 : f32
    %20 = vector.broadcast %cst_11 : f32 to vector<8x128xf32>
    %21 = arith.addf %19, %20 : vector<8x128xf32>
    %22 = vector.extract_strided_slice %10 {offsets = [0, 128], sizes = [8, 128], strides = [1, 1]} : vector<8x384xf32> to vector<8x128xf32>
    %23 = vector.extract_strided_slice %11 {offsets = [0, 128], sizes = [8, 128], strides = [1, 1]} : vector<8x384xf32> to vector<8x128xf32>
    %24 = arith.addf %22, %23 : vector<8x128xf32>
    %cst_12 = arith.constant 5.000000e-01 : f32
    %25 = vector.broadcast %cst_12 : f32 to vector<8x128xf32>
    %26 = arith.mulf %25, %24 : vector<8x128xf32>
    %27 = math.tanh %26 : vector<8x128xf32>
    %cst_13 = arith.constant 5.000000e-01 : f32
    %28 = vector.broadcast %cst_13 : f32 to vector<8x128xf32>
    %29 = arith.mulf %28, %27 : vector<8x128xf32>
    %cst_14 = arith.constant 5.000000e-01 : f32
    %30 = vector.broadcast %cst_14 : f32 to vector<8x128xf32>
    %31 = arith.addf %29, %30 : vector<8x128xf32>
    %32 = vector.extract_strided_slice %10 {offsets = [0, 256], sizes = [8, 128], strides = [1, 1]} : vector<8x384xf32> to vector<8x128xf32>
    %33 = vector.extract_strided_slice %11 {offsets = [0, 256], sizes = [8, 128], strides = [1, 1]} : vector<8x384xf32> to vector<8x128xf32>
    %34 = arith.addf %33, %6 : vector<8x128xf32>
    %35 = arith.mulf %21, %34 : vector<8x128xf32>
    %36 = arith.addf %32, %35 : vector<8x128xf32>
    %37 = math.tanh %36 : vector<8x128xf32>
    %cst_15 = arith.constant 1.000000e+00 : f32
    %38 = vector.broadcast %cst_15 : f32 to vector<8x128xf32>
    %39 = arith.subf %38, %31 : vector<8x128xf32>
    %40 = arith.mulf %39, %37 : vector<8x128xf32>
    %41 = arith.mulf %31, %7 : vector<8x128xf32>
    %42 = arith.addf %40, %41 : vector<8x128xf32>
    %c1_i32 = arith.constant 1 : i32
    %43 = arith.index_cast %c1_i32 : i32 to index
    %c0_16 = arith.constant 0 : index
    %c0_17 = arith.constant 0 : index
    %44 = vector.load %arg2[%43, %c0_16, %c0_17] : memref<4x8x384xf32, #tpu.memory_space<vmem>>, vector<1x8x384xf32>
    %45 = vector.shape_cast %44 : vector<1x8x384xf32> to vector<8x384xf32>
    %cst_18 = arith.constant dense<0.000000e+00> : vector<8x384xf32>
    %46 = tpu.matmul %42, %3, %cst_18 {dimension_numbers = #tpu.dot_dimension_numbers<[1], [0], [0], [1], [0, 0, 1, 1], [], []>} : vector<8x128xf32>, vector<128x384xf32>, vector<8x384xf32> -> vector<8x384xf32>
    %47 = vector.extract_strided_slice %45 {offsets = [0, 0], sizes = [8, 128], strides = [1, 1]} : vector<8x384xf32> to vector<8x128xf32>
    %48 = vector.extract_strided_slice %46 {offsets = [0, 0], sizes = [8, 128], strides = [1, 1]} : vector<8x384xf32> to vector<8x128xf32>
    %49 = arith.addf %47, %48 : vector<8x128xf32>
    %cst_19 = arith.constant 5.000000e-01 : f32
    %50 = vector.broadcast %cst_19 : f32 to vector<8x128xf32>
    %51 = arith.mulf %50, %49 : vector<8x128xf32>
    %52 = math.tanh %51 : vector<8x128xf32>
    %cst_20 = arith.constant 5.000000e-01 : f32
    %53 = vector.broadcast %cst_20 : f32 to vector<8x128xf32>
    %54 = arith.mulf %53, %52 : vector<8x128xf32>
    %cst_21 = arith.constant 5.000000e-01 : f32
    %55 = vector.broadcast %cst_21 : f32 to vector<8x128xf32>
    %56 = arith.addf %54, %55 : vector<8x128xf32>
    %57 = vector.extract_strided_slice %45 {offsets = [0, 128], sizes = [8, 128], strides = [1, 1]} : vector<8x384xf32> to vector<8x128xf32>
    %58 = vector.extract_strided_slice %46 {offsets = [0, 128], sizes = [8, 128], strides = [1, 1]} : vector<8x384xf32> to vector<8x128xf32>
    %59 = arith.addf %57, %58 : vector<8x128xf32>
    %cst_22 = arith.constant 5.000000e-01 : f32
    %60 = vector.broadcast %cst_22 : f32 to vector<8x128xf32>
    %61 = arith.mulf %60, %59 : vector<8x128xf32>
    %62 = math.tanh %61 : vector<8x128xf32>
    %cst_23 = arith.constant 5.000000e-01 : f32
    %63 = vector.broadcast %cst_23 : f32 to vector<8x128xf32>
    %64 = arith.mulf %63, %62 : vector<8x128xf32>
    %cst_24 = arith.constant 5.000000e-01 : f32
    %65 = vector.broadcast %cst_24 : f32 to vector<8x128xf32>
    %66 = arith.addf %64, %65 : vector<8x128xf32>
    %67 = vector.extract_strided_slice %45 {offsets = [0, 256], sizes = [8, 128], strides = [1, 1]} : vector<8x384xf32> to vector<8x128xf32>
    %68 = vector.extract_strided_slice %46 {offsets = [0, 256], sizes = [8, 128], strides = [1, 1]} : vector<8x384xf32> to vector<8x128xf32>
    %69 = arith.addf %68, %6 : vector<8x128xf32>
    %70 = arith.mulf %56, %69 : vector<8x128xf32>
    %71 = arith.addf %67, %70 : vector<8x128xf32>
    %72 = math.tanh %71 : vector<8x128xf32>
    %cst_25 = arith.constant 1.000000e+00 : f32
    %73 = vector.broadcast %cst_25 : f32 to vector<8x128xf32>
    %74 = arith.subf %73, %66 : vector<8x128xf32>
    %75 = arith.mulf %74, %72 : vector<8x128xf32>
    %76 = arith.mulf %66, %42 : vector<8x128xf32>
    %77 = arith.addf %75, %76 : vector<8x128xf32>
    %c2_i32 = arith.constant 2 : i32
    %78 = arith.index_cast %c2_i32 : i32 to index
    %c0_26 = arith.constant 0 : index
    %c0_27 = arith.constant 0 : index
    %79 = vector.load %arg2[%78, %c0_26, %c0_27] : memref<4x8x384xf32, #tpu.memory_space<vmem>>, vector<1x8x384xf32>
    %80 = vector.shape_cast %79 : vector<1x8x384xf32> to vector<8x384xf32>
    %cst_28 = arith.constant dense<0.000000e+00> : vector<8x384xf32>
    %81 = tpu.matmul %77, %3, %cst_28 {dimension_numbers = #tpu.dot_dimension_numbers<[1], [0], [0], [1], [0, 0, 1, 1], [], []>} : vector<8x128xf32>, vector<128x384xf32>, vector<8x384xf32> -> vector<8x384xf32>
    %82 = vector.extract_strided_slice %80 {offsets = [0, 0], sizes = [8, 128], strides = [1, 1]} : vector<8x384xf32> to vector<8x128xf32>
    %83 = vector.extract_strided_slice %81 {offsets = [0, 0], sizes = [8, 128], strides = [1, 1]} : vector<8x384xf32> to vector<8x128xf32>
    %84 = arith.addf %82, %83 : vector<8x128xf32>
    %cst_29 = arith.constant 5.000000e-01 : f32
    %85 = vector.broadcast %cst_29 : f32 to vector<8x128xf32>
    %86 = arith.mulf %85, %84 : vector<8x128xf32>
    %87 = math.tanh %86 : vector<8x128xf32>
    %cst_30 = arith.constant 5.000000e-01 : f32
    %88 = vector.broadcast %cst_30 : f32 to vector<8x128xf32>
    %89 = arith.mulf %88, %87 : vector<8x128xf32>
    %cst_31 = arith.constant 5.000000e-01 : f32
    %90 = vector.broadcast %cst_31 : f32 to vector<8x128xf32>
    %91 = arith.addf %89, %90 : vector<8x128xf32>
    %92 = vector.extract_strided_slice %80 {offsets = [0, 128], sizes = [8, 128], strides = [1, 1]} : vector<8x384xf32> to vector<8x128xf32>
    %93 = vector.extract_strided_slice %81 {offsets = [0, 128], sizes = [8, 128], strides = [1, 1]} : vector<8x384xf32> to vector<8x128xf32>
    %94 = arith.addf %92, %93 : vector<8x128xf32>
    %cst_32 = arith.constant 5.000000e-01 : f32
    %95 = vector.broadcast %cst_32 : f32 to vector<8x128xf32>
    %96 = arith.mulf %95, %94 : vector<8x128xf32>
    %97 = math.tanh %96 : vector<8x128xf32>
    %cst_33 = arith.constant 5.000000e-01 : f32
    %98 = vector.broadcast %cst_33 : f32 to vector<8x128xf32>
    %99 = arith.mulf %98, %97 : vector<8x128xf32>
    %cst_34 = arith.constant 5.000000e-01 : f32
    %100 = vector.broadcast %cst_34 : f32 to vector<8x128xf32>
    %101 = arith.addf %99, %100 : vector<8x128xf32>
    %102 = vector.extract_strided_slice %80 {offsets = [0, 256], sizes = [8, 128], strides = [1, 1]} : vector<8x384xf32> to vector<8x128xf32>
    %103 = vector.extract_strided_slice %81 {offsets = [0, 256], sizes = [8, 128], strides = [1, 1]} : vector<8x384xf32> to vector<8x128xf32>
    %104 = arith.addf %103, %6 : vector<8x128xf32>
    %105 = arith.mulf %91, %104 : vector<8x128xf32>
    %106 = arith.addf %102, %105 : vector<8x128xf32>
    %107 = math.tanh %106 : vector<8x128xf32>
    %cst_35 = arith.constant 1.000000e+00 : f32
    %108 = vector.broadcast %cst_35 : f32 to vector<8x128xf32>
    %109 = arith.subf %108, %101 : vector<8x128xf32>
    %110 = arith.mulf %109, %107 : vector<8x128xf32>
    %111 = arith.mulf %101, %77 : vector<8x128xf32>
    %112 = arith.addf %110, %111 : vector<8x128xf32>
    %c3_i32 = arith.constant 3 : i32
    %113 = arith.index_cast %c3_i32 : i32 to index
    %c0_36 = arith.constant 0 : index
    %c0_37 = arith.constant 0 : index
    %114 = vector.load %arg2[%113, %c0_36, %c0_37] : memref<4x8x384xf32, #tpu.memory_space<vmem>>, vector<1x8x384xf32>
    %115 = vector.shape_cast %114 : vector<1x8x384xf32> to vector<8x384xf32>
    %cst_38 = arith.constant dense<0.000000e+00> : vector<8x384xf32>
    %116 = tpu.matmul %112, %3, %cst_38 {dimension_numbers = #tpu.dot_dimension_numbers<[1], [0], [0], [1], [0, 0, 1, 1], [], []>} : vector<8x128xf32>, vector<128x384xf32>, vector<8x384xf32> -> vector<8x384xf32>
    %117 = vector.extract_strided_slice %115 {offsets = [0, 0], sizes = [8, 128], strides = [1, 1]} : vector<8x384xf32> to vector<8x128xf32>
    %118 = vector.extract_strided_slice %116 {offsets = [0, 0], sizes = [8, 128], strides = [1, 1]} : vector<8x384xf32> to vector<8x128xf32>
    %119 = arith.addf %117, %118 : vector<8x128xf32>
    %cst_39 = arith.constant 5.000000e-01 : f32
    %120 = vector.broadcast %cst_39 : f32 to vector<8x128xf32>
    %121 = arith.mulf %120, %119 : vector<8x128xf32>
    %122 = math.tanh %121 : vector<8x128xf32>
    %cst_40 = arith.constant 5.000000e-01 : f32
    %123 = vector.broadcast %cst_40 : f32 to vector<8x128xf32>
    %124 = arith.mulf %123, %122 : vector<8x128xf32>
    %cst_41 = arith.constant 5.000000e-01 : f32
    %125 = vector.broadcast %cst_41 : f32 to vector<8x128xf32>
    %126 = arith.addf %124, %125 : vector<8x128xf32>
    %127 = vector.extract_strided_slice %115 {offsets = [0, 128], sizes = [8, 128], strides = [1, 1]} : vector<8x384xf32> to vector<8x128xf32>
    %128 = vector.extract_strided_slice %116 {offsets = [0, 128], sizes = [8, 128], strides = [1, 1]} : vector<8x384xf32> to vector<8x128xf32>
    %129 = arith.addf %127, %128 : vector<8x128xf32>
    %cst_42 = arith.constant 5.000000e-01 : f32
    %130 = vector.broadcast %cst_42 : f32 to vector<8x128xf32>
    %131 = arith.mulf %130, %129 : vector<8x128xf32>
    %132 = math.tanh %131 : vector<8x128xf32>
    %cst_43 = arith.constant 5.000000e-01 : f32
    %133 = vector.broadcast %cst_43 : f32 to vector<8x128xf32>
    %134 = arith.mulf %133, %132 : vector<8x128xf32>
    %cst_44 = arith.constant 5.000000e-01 : f32
    %135 = vector.broadcast %cst_44 : f32 to vector<8x128xf32>
    %136 = arith.addf %134, %135 : vector<8x128xf32>
    %137 = vector.extract_strided_slice %115 {offsets = [0, 256], sizes = [8, 128], strides = [1, 1]} : vector<8x384xf32> to vector<8x128xf32>
    %138 = vector.extract_strided_slice %116 {offsets = [0, 256], sizes = [8, 128], strides = [1, 1]} : vector<8x384xf32> to vector<8x128xf32>
    %139 = arith.addf %138, %6 : vector<8x128xf32>
    %140 = arith.mulf %126, %139 : vector<8x128xf32>
    %141 = arith.addf %137, %140 : vector<8x128xf32>
    %142 = math.tanh %141 : vector<8x128xf32>
    %cst_45 = arith.constant 1.000000e+00 : f32
    %143 = vector.broadcast %cst_45 : f32 to vector<8x128xf32>
    %144 = arith.subf %143, %136 : vector<8x128xf32>
    %145 = arith.mulf %144, %142 : vector<8x128xf32>
    %146 = arith.mulf %136, %112 : vector<8x128xf32>
    %147 = arith.addf %145, %146 : vector<8x128xf32>
    %c4_i32 = arith.constant 4 : i32
    %c0_46 = arith.constant 0 : index
    %c0_47 = arith.constant 0 : index
    %148 = vector.load %arg8[%c0_46, %c0_47] : memref<8x128xf32, #tpu.memory_space<vmem>>, vector<8x128xf32>
    tpu.vector_store %arg8[%c0_46, %c0_47], %147 {strides = array<i32>} : memref<8x128xf32, #tpu.memory_space<vmem>>, vector<8x128xf32>,
    %c1_i32_48 = arith.constant 1 : i32
    %149 = arith.cmpi eq, %arg1, %c1_i32_48 : i32
    %150 = arith.extui %149 : i1 to i32
    %c0_i32_49 = arith.constant 0 : i32
    %151 = arith.cmpi ne, %150, %c0_i32_49 : i32
    scf.if %151 {
      %c0_50 = arith.constant 0 : index
      %c0_51 = arith.constant 0 : index
      %152 = vector.load %arg5[%c0_50, %c0_51] : memref<128x128xf32, #tpu.memory_space<vmem>>, vector<128x128xf32>
      %cst_52 = arith.constant dense<0.000000e+00> : vector<8x128xf32>
      %153 = tpu.matmul %147, %152, %cst_52 {dimension_numbers = #tpu.dot_dimension_numbers<[1], [0], [0], [1], [0, 0, 1, 1], [], []>} : vector<8x128xf32>, vector<128x128xf32>, vector<8x128xf32> -> vector<8x128xf32>
      %c0_53 = arith.constant 0 : index
      %c0_54 = arith.constant 0 : index
      %154 = vector.load %arg6[%c0_53, %c0_54] : memref<1x128xf32, #tpu.memory_space<vmem>>, vector<1x128xf32>
      %155 = vector.broadcast %154 : vector<1x128xf32> to vector<8x128xf32>
      %156 = arith.addf %153, %155 : vector<8x128xf32>
      %157 = arith.negf %156 : vector<8x128xf32>
      %158 = math.exp %157 : vector<8x128xf32>
      %cst_55 = arith.constant 1.000000e+00 : f32
      %159 = vector.broadcast %cst_55 : f32 to vector<8x128xf32>
      %160 = arith.addf %159, %158 : vector<8x128xf32>
      %161 = arith.divf %159, %160 : vector<8x128xf32>
      %c0_56 = arith.constant 0 : index
      %c0_57 = arith.constant 0 : index
      %162 = vector.load %arg7[%c0_56, %c0_57] : memref<8x128xf32, #tpu.memory_space<vmem>>, vector<8x128xf32>
      tpu.vector_store %arg7[%c0_56, %c0_57], %161 {strides = array<i32>} : memref<8x128xf32, #tpu.memory_space<vmem>>, vector<8x128xf32>,
    } else {
    }
    return
  }
  func.func @transform_0(%arg0: i32, %arg1: i32) -> (i32, i32, i32) {
    %c0_i32 = arith.constant 0 : i32
    %c0_i32_0 = arith.constant 0 : i32
    return %arg1, %arg0, %c0_i32 : i32, i32, i32
  }
  func.func @transform_1(%arg0: i32, %arg1: i32) -> (i32, i32) {
    %c0_i32 = arith.constant 0 : i32
    %c0_i32_0 = arith.constant 0 : i32
    %c0_i32_1 = arith.constant 0 : i32
    return %c0_i32, %c0_i32_0 : i32, i32
  }
  func.func @transform_2(%arg0: i32, %arg1: i32) -> (i32, i32) {
    %c0_i32 = arith.constant 0 : i32
    %c0_i32_0 = arith.constant 0 : i32
    %c0_i32_1 = arith.constant 0 : i32
    return %c0_i32, %c0_i32_0 : i32, i32
  }
  func.func @transform_3(%arg0: i32, %arg1: i32) -> (i32, i32) {
    %c0_i32 = arith.constant 0 : i32
    %c0_i32_0 = arith.constant 0 : i32
    %c0_i32_1 = arith.constant 0 : i32
    return %c0_i32, %c0_i32_0 : i32, i32
  }
  func.func @transform_4(%arg0: i32, %arg1: i32) -> (i32, i32) {
    %c0_i32 = arith.constant 0 : i32
    %c0_i32_0 = arith.constant 0 : i32
    %c0_i32_1 = arith.constant 0 : i32
    return %c0_i32, %c0_i32_0 : i32, i32
  }
  func.func @transform_5(%arg0: i32, %arg1: i32) -> (i32, i32) {
    %c0_i32 = arith.constant 0 : i32
    %c0_i32_0 = arith.constant 0 : i32
    return %arg0, %c0_i32 : i32, i32
  }
}

</mosaic_0001>

<llo_original>
// kernel: rnn_gru_forward.2
$region0: #{rnn_gru_forward.2}
  #allocation0 [shape = 'u32[]', space=smem, size = 0x4, offset = 0x4, fixed_abs, tag = 'smem constant byte address 0x4 - core index']
  #allocation1 [shape = 'u32[72,128]{1,0:T(1,128)}', space=vmem, size = 0x9000, scoped, tag = 'internal scratch']
  %s0 = inlined_call_operand.vmem [shape: f32[64,128], index: 0, kind: input, shape index: {}]
  %s1 = inlined_call_operand.vmem [shape: f32[128,384], index: 1, kind: input, shape index: {}]
  %s2 = inlined_call_operand.vmem [shape: f32[1,384], index: 2, kind: input, shape index: {}]
  %s3 = inlined_call_operand.vmem [shape: f32[64,384], index: 3, kind: output, shape index: {}]
  %s4 = sld [smem:[#allocation0]]
  $region117: #{rnn_gru_forward.2} parent=0
    _
  %s6 = ssub.s32 1, %s4
  %s7 = scalar_select 0, %s6, %s4
  $region1: #{rnn_gru_forward.2} parent=0
    #allocation2 [shape = 'u8[131072]{0}', space=vmem, size = 0x20000, scoped, tag = 'input window, operand 1']
    #allocation3 [shape = 'u8[65536]{0}', space=vmem, size = 0x10000, scoped, tag = 'output window, operand 0']
    loop: start=0, step=1, limit=5
    $region2: #{rnn_gru_forward.2} parent=1 // loop_pre_header
      _
    $region3: #{rnn_gru_forward.2} parent=1 // loop_header
      %s9 = sphi 0, %s13
      %p10 = scmp.ge.s32.totalorder %s9, 5
      %s16 = sphi 0, %s28
      %s17 = sphi 0, %s24
      %s18 = sphi 0, %s16
      %s19 = sphi 0, %s17
      %s20 = sphi 0, %s18
      %s21 = sphi 0, %s19
      %s31 = sphi 0, %s33
      %s34 = sphi 0, %s31
      %s35 = sphi 0, %s34
      %s51 = sphi 0, %s35
      %s57 = sphi 0, %s59
      %s60 = sphi 0, %s57
      %s61 = sphi 0, %s60
      %s77 = sphi 0, %s61
      %s83 = sphi 0, %s85
      %s86 = sphi 0, %s83
      %s87 = sphi 0, %s86
      %s103 = sphi 0, %s87
      %s111 = sphi 0, %s113
      %s114 = sphi 0, %s111
      %s115 = sphi 0, %s114
      %s131 = sphi 0, %s115
    $region4: #{rnn_gru_forward.2} parent=1 // loop_header_branch
      %12 = sbr.rel (%p10) target = $region8
    $region5: #{rnn_gru_forward.2} parent=1 // loop_body
      %s14 = ssub.s32 %s9, 1
      %s15 = ssub.s32 %s9, 2
      %s22 = sadd.s32 1, %s17
      %p23 = scmp.ge.s32.totalorder %s22, 3
      %s24 = scalar_select %p23, 0, %s22
      %s25 = sadd.s32 1, %s16
      %s26 = scalar_select %p23, %s25, %s16
      %p27 = scmp.ge.s32.totalorder %s26, 1
      %s28 = scalar_select %p27, 0, %s26
      %s29 = ssub.s32 %s16, %s28
      %p30 = scmp.eq.s32.totalorder %s29, 0
      %s32 = sadd.s32 %s31, 1
      %s33 = scalar_select %p30, %s31, %s32
      %p36 = pneg %p30
      %p37 = scmp.eq.s32.totalorder %s9, 2
      %p38 = por %p36, %p37
      %p39 = scmp.ne.s32.totalorder %s31, %s34
      %p40 = scmp.eq.s32.totalorder %s9, 0
      %p41 = por %p39, %p40
      %p42 = scmp.ne.s32.totalorder %s31, %s34
      %p43 = scmp.eq.s32.totalorder %s14, 2
      %p44 = por %p42, %p43
      %p45 = scmp.ne.s32.totalorder %s34, %s35
      %p46 = scmp.eq.s32.totalorder %s14, 0
      %p47 = por %p45, %p46
      %p48 = scmp.ne.s32.totalorder %s34, %s35
      %p49 = scmp.eq.s32.totalorder %s15, 2
      %p50 = por %p48, %p49
      %p52 = scmp.ne.s32.totalorder %s35, %s51
      %p53 = scmp.eq.s32.totalorder %s15, 0
      %p54 = por %p52, %p53
      %s55 = ssub.s32 %s17, %s24
      %p56 = scmp.eq.s32.totalorder %s55, 0
      %s58 = sadd.s32 %s57, 1
      %s59 = scalar_select %p56, %s57, %s58
      %p62 = pneg %p56
      %p63 = scmp.eq.s32.totalorder %s9, 2
      %p64 = por %p62, %p63
      %p65 = scmp.ne.s32.totalorder %s57, %s60
      %p66 = scmp.eq.s32.totalorder %s9, 0
      %p67 = por %p65, %p66
      %p68 = scmp.ne.s32.totalorder %s57, %s60
      %p69 = scmp.eq.s32.totalorder %s14, 2
      %p70 = por %p68, %p69
      %p71 = scmp.ne.s32.totalorder %s60, %s61
      %p72 = scmp.eq.s32.totalorder %s14, 0
      %p73 = por %p71, %p72
      %p74 = scmp.ne.s32.totalorder %s60, %s61
      %p75 = scmp.eq.s32.totalorder %s15, 2
      %p76 = por %p74, %p75
      %p78 = scmp.ne.s32.totalorder %s61, %s77
      %p79 = scmp.eq.s32.totalorder %s15, 0
      %p80 = por %p78, %p79
      %s81 = ssub.s32 %s17, %s24
      %p82 = scmp.eq.s32.totalorder %s81, 0
      %s84 = sadd.s32 %s83, 1
      %s85 = scalar_select %p82, %s83, %s84
      %p88 = pneg %p82
      %p89 = scmp.eq.s32.totalorder %s9, 2
      %p90 = por %p88, %p89
      %p91 = scmp.ne.s32.totalorder %s83, %s86
      %p92 = scmp.eq.s32.totalorder %s9, 0
      %p93 = por %p91, %p92
      %p94 = scmp.ne.s32.totalorder %s83, %s86
      %p95 = scmp.eq.s32.totalorder %s14, 2
      %p96 = por %p94, %p95
      %p97 = scmp.ne.s32.totalorder %s86, %s87
      %p98 = scmp.eq.s32.totalorder %s14, 0
      %p99 = por %p97, %p98
      %p100 = scmp.ne.s32.totalorder %s86, %s87
      %p101 = scmp.eq.s32.totalorder %s15, 2
      %p102 = por %p100, %p101
      %p104 = scmp.ne.s32.totalorder %s87, %s103
      %p105 = scmp.eq.s32.totalorder %s15, 0
      %p106 = por %p104, %p105
      %s107 = ssub.s32 %s16, %s28
      %s108 = ssub.s32 %s17, %s24
      %s109 = sor.u32 %s107, %s108
      %p110 = scmp.eq.s32.totalorder %s109, 0
      %s112 = sadd.s32 %s111, 1
      %s113 = scalar_select %p110, %s111, %s112
      %p116 = pneg %p110
      %p117 = scmp.eq.s32.totalorder %s9, 2
      %p118 = por %p116, %p117
      %p119 = scmp.ne.s32.totalorder %s111, %s114
      %p120 = scmp.eq.s32.totalorder %s9, 0
      %p121 = por %p119, %p120
      %p122 = scmp.ne.s32.totalorder %s111, %s114
      %p123 = scmp.eq.s32.totalorder %s14, 2
      %p124 = por %p122, %p123
      %p125 = scmp.ne.s32.totalorder %s114, %s115
      %p126 = scmp.eq.s32.totalorder %s14, 0
      %p127 = por %p125, %p126
      %p128 = scmp.ne.s32.totalorder %s114, %s115
      %p129 = scmp.eq.s32.totalorder %s15, 2
      %p130 = por %p128, %p129
      %p132 = scmp.ne.s32.totalorder %s115, %s131
      %p133 = scmp.eq.s32.totalorder %s15, 0
      %p134 = por %p132, %p133
      %p135 = scmp.le.s32.totalorder 1, %s9
      %p136 = scmp.lt.s32.totalorder %s9, 4
      %p137 = pnand %p135, %p136
      %p138 = pneg %p137
      // Predicated region
      $region9: #{rnn_gru_forward.2} parent=5 // pred_check
        _
      $region10: #{rnn_gru_forward.2} parent=5 // pred_check_branch
        %140 = sbr.rel (%p137) target = $region12
      $region11: #{rnn_gru_forward.2} parent=5 // pred_region
        %s141 = ssub.s32 %s9, 1
        // Predicated region
        $region13: #{rnn_gru_forward.2} parent=11 // pred_check
          %p142 = pneg %p47
        $region14: #{rnn_gru_forward.2} parent=11 // pred_check_branch
          %144 = sbr.rel (%p142) target = $region16
        $region15: #{rnn_gru_forward.2} parent=11 // pred_region
          %s145 = smul.u32 8, %s18
          %p146 = scmp.lt.s32.totalorder %s145, 7
          %s147 = scalar_select %p146, %s145, 7
          %s148 = smul.addr %s147, 8
          %s149 = scalar_lea.vmem %s0, %s148
          %s150 = smul.u32 8, %s18
        $region16: #{rnn_gru_forward.2} parent=11 // pred_fallthru
          _
      $region12: #{rnn_gru_forward.2} parent=5 // pred_fallthru
        _
      %p151 = scmp.lt.s32.totalorder %s9, 3
      // Predicated region
      $region17: #{rnn_gru_forward.2} parent=5 // pred_check
        %p152 = pneg %p151
      $region18: #{rnn_gru_forward.2} parent=5 // pred_check_branch
        %154 = sbr.rel (%p152) target = $region20
      $region19: #{rnn_gru_forward.2} parent=5 // pred_region
        // Predicated region
        $region21: #{rnn_gru_forward.2} parent=19 // pred_check
          %p155 = pneg %p67
        $region22: #{rnn_gru_forward.2} parent=19 // pred_check_branch
          %157 = sbr.rel (%p155) target = $region24
        $region23: #{rnn_gru_forward.2} parent=19 // pred_region
          %s158 = sand.u32 %s57, 1
          %s159 = sand.u32 %s57, 1
          %s160 = smul.addr %s159, 128
          %s161 = scalar_lea.vmem [#allocation2], %s160
          %s162 = smul.addr %s17, 8
          %s163 = scalar_lea.vmem %s1, %s162
          // Predicated region
          $region25: #{rnn_gru_forward.2} parent=23 // pred_check
            _
          $region26: #{rnn_gru_forward.2} parent=23 // pred_check_branch
            %165 = sbr.rel (0) target = $region28
          $region27: #{rnn_gru_forward.2} parent=23 // pred_region
            // Predicated region
            $region29: #{rnn_gru_forward.2} parent=27 // pred_check
              _
            $region30: #{rnn_gru_forward.2} parent=27 // pred_check_branch
              %167 = sbr.rel (0) target = $region32
            $region31: #{rnn_gru_forward.2} parent=27 // pred_region
              // Predicated region
              $region44: #{rnn_gru_forward.2} parent=31 // pred_check
                _
              $region45: #{rnn_gru_forward.2} parent=31 // pred_check_branch
                %213 = sbr.rel (0) target = $region47
              $region46: #{rnn_gru_forward.2} parent=31 // pred_region
                loop: start=0, step=1, limit=1
                $region48: #{rnn_gru_forward.2} parent=46 // loop_pre_header
                  _
                $region49: #{rnn_gru_forward.2} parent=46 // loop_header
                  %s215 = sphi 0, %s219
                  %p216 = scmp.ge.s32.totalorder %s215, 1
                  %s220 = sphi %s163, %s163
                  %s221 = sphi %s161, %s161
                $region50: #{rnn_gru_forward.2} parent=46 // loop_header_branch
                  %218 = sbr.rel (%p216) target = $region54
                $region51: #{rnn_gru_forward.2} parent=46 // loop_body
                  %v222 = vld [vmem:[%s220] sm:$0xff]
                  %223 = vst [vmem:[%s221] sm:$0xff] %v222
                  %v224 = vld [vmem:[%s220 + $0x18] sm:$0xff]
                  %225 = vst [vmem:[%s221 + $0x8] sm:$0xff] %v224
                  %v226 = vld [vmem:[%s220 + $0x30] sm:$0xff]
                  %227 = vst [vmem:[%s221 + $0x10] sm:$0xff] %v226
                  %v228 = vld [vmem:[%s220 + $0x48] sm:$0xff]
                  %229 = vst [vmem:[%s221 + $0x18] sm:$0xff] %v228
                  %v230 = vld [vmem:[%s220 + $0x60] sm:$0xff]
                  %231 = vst [vmem:[%s221 + $0x20] sm:$0xff] %v230
                  %v232 = vld [vmem:[%s220 + $0x78] sm:$0xff]
                  %233 = vst [vmem:[%s221 + $0x28] sm:$0xff] %v232
                  %v234 = vld [vmem:[%s220 + $0x90] sm:$0xff]
                  %235 = vst [vmem:[%s221 + $0x30] sm:$0xff] %v234
                  %v236 = vld [vmem:[%s220 + $0xa8] sm:$0xff]
                  %237 = vst [vmem:[%s221 + $0x38] sm:$0xff] %v236
                  %v238 = vld [vmem:[%s220 + $0xc0] sm:$0xff]
                  %239 = vst [vmem:[%s221 + $0x40] sm:$0xff] %v238
                  %v240 = vld [vmem:[%s220 + $0xd8] sm:$0xff]
                  %241 = vst [vmem:[%s221 + $0x48] sm:$0xff] %v240
                  %v242 = vld [vmem:[%s220 + $0xf0] sm:$0xff]
                  %243 = vst [vmem:[%s221 + $0x50] sm:$0xff] %v242
                  %v244 = vld [vmem:[%s220 + $0x108] sm:$0xff]
                  %245 = vst [vmem:[%s221 + $0x58] sm:$0xff] %v244
                  %v246 = vld [vmem:[%s220 + $0x120] sm:$0xff]
                  %247 = vst [vmem:[%s221 + $0x60] sm:$0xff] %v246
                  %v248 = vld [vmem:[%s220 + $0x138] sm:$0xff]
                  %249 = vst [vmem:[%s221 + $0x68] sm:$0xff] %v248
                  %v250 = vld [vmem:[%s220 + $0x150] sm:$0xff]
                  %251 = vst [vmem:[%s221 + $0x70] sm:$0xff] %v250
                  %v252 = vld [vmem:[%s220 + $0x168] sm:$0xff]
                  %253 = vst [vmem:[%s221 + $0x78] sm:$0xff] %v252
                $region52: #{rnn_gru_forward.2} parent=46 // loop_footer
                  %s219 = sadd.s32 1, %s215
                $region53: #{rnn_gru_forward.2} parent=46 // loop_footer_branch
                  %214 = sbr.rel target = $region49
                $region54: #{rnn_gru_forward.2} parent=46 // loop_exit
                  _
              $region47: #{rnn_gru_forward.2} parent=31 // pred_fallthru
                _
              // Predicated region
              $region55: #{rnn_gru_forward.2} parent=31 // pred_check
                _
              $region56: #{rnn_gru_forward.2} parent=31 // pred_check_branch
                %255 = sbr.rel target = $region58
              $region57: #{rnn_gru_forward.2} parent=31 // pred_region
                _
              $region58: #{rnn_gru_forward.2} parent=31 // pred_fallthru
                _
            $region32: #{rnn_gru_forward.2} parent=27 // pred_fallthru
              _
            // Predicated region
            $region33: #{rnn_gru_forward.2} parent=27 // pred_check
              _
            $region34: #{rnn_gru_forward.2} parent=27 // pred_check_branch
              %169 = sbr.rel target = $region36
            $region35: #{rnn_gru_forward.2} parent=27 // pred_region
              %s171 = ssub.s32 256, 1
              loop: start=0, step=1, limit=1
              $region37: #{rnn_gru_forward.2} parent=35 // loop_pre_header
                _
              $region38: #{rnn_gru_forward.2} parent=35 // loop_header
                %s173 = sphi 0, %s177
                %p174 = scmp.ge.s32.totalorder %s173, 1
                %s178 = sphi %s163, %s163
                %s179 = sphi %s161, %s161
              $region39: #{rnn_gru_forward.2} parent=35 // loop_header_branch
                %176 = sbr.rel (%p174) target = $region43
              $region40: #{rnn_gru_forward.2} parent=35 // loop_body
                %v180 = vld [vmem:[%s178] sm:%s171]
                %181 = vst [vmem:[%s179] sm:%s171] %v180
                %v182 = vld [vmem:[%s178 + $0x18] sm:%s171]
                %183 = vst [vmem:[%s179 + $0x8] sm:%s171] %v182
                %v184 = vld [vmem:[%s178 + $0x30] sm:%s171]
                %185 = vst [vmem:[%s179 + $0x10] sm:%s171] %v184
                %v186 = vld [vmem:[%s178 + $0x48] sm:%s171]
                %187 = vst [vmem:[%s179 + $0x18] sm:%s171] %v186
                %v188 = vld [vmem:[%s178 + $0x60] sm:%s171]
                %189 = vst [vmem:[%s179 + $0x20] sm:%s171] %v188
                %v190 = vld [vmem:[%s178 + $0x78] sm:%s171]
                %191 = vst [vmem:[%s179 + $0x28] sm:%s171] %v190
                %v192 = vld [vmem:[%s178 + $0x90] sm:%s171]
                %193 = vst [vmem:[%s179 + $0x30] sm:%s171] %v192
                %v194 = vld [vmem:[%s178 + $0xa8] sm:%s171]
                %195 = vst [vmem:[%s179 + $0x38] sm:%s171] %v194
                %v196 = vld [vmem:[%s178 + $0xc0] sm:%s171]
                %197 = vst [vmem:[%s179 + $0x40] sm:%s171] %v196
                %v198 = vld [vmem:[%s178 + $0xd8] sm:%s171]
                %199 = vst [vmem:[%s179 + $0x48] sm:%s171] %v198
                %v200 = vld [vmem:[%s178 + $0xf0] sm:%s171]
                %201 = vst [vmem:[%s179 + $0x50] sm:%s171] %v200
                %v202 = vld [vmem:[%s178 + $0x108] sm:%s171]
                %203 = vst [vmem:[%s179 + $0x58] sm:%s171] %v202
                %v204 = vld [vmem:[%s178 + $0x120] sm:%s171]
                %205 = vst [vmem:[%s179 + $0x60] sm:%s171] %v204
                %v206 = vld [vmem:[%s178 + $0x138] sm:%s171]
                %207 = vst [vmem:[%s179 + $0x68] sm:%s171] %v206
                %v208 = vld [vmem:[%s178 + $0x150] sm:%s171]
                %209 = vst [vmem:[%s179 + $0x70] sm:%s171] %v208
                %v210 = vld [vmem:[%s178 + $0x168] sm:%s171]
                %211 = vst [vmem:[%s179 + $0x78] sm:%s171] %v210
              $region41: #{rnn_gru_forward.2} parent=35 // loop_footer
                %s177 = sadd.s32 1, %s173
              $region42: #{rnn_gru_forward.2} parent=35 // loop_footer_branch
                %172 = sbr.rel target = $region38
              $region43: #{rnn_gru_forward.2} parent=35 // loop_exit
                _
            $region36: #{rnn_gru_forward.2} parent=27 // pred_fallthru
              _
          $region28: #{rnn_gru_forward.2} parent=23 // pred_fallthru
            _
          %256 = vnop
        $region24: #{rnn_gru_forward.2} parent=19 // pred_fallthru
          _
        // Predicated region
        $region59: #{rnn_gru_forward.2} parent=19 // pred_check
          %p257 = pneg %p93
        $region60: #{rnn_gru_forward.2} parent=19 // pred_check_branch
          %259 = sbr.rel (%p257) target = $region62
        $region61: #{rnn_gru_forward.2} parent=19 // pred_region
          %p260 = scmp.lt.s32.totalorder %s17, 2
          %s261 = scalar_select %p260, %s17, 2
          %s262 = scalar_lea.vmem %s2, %s261
        $region62: #{rnn_gru_forward.2} parent=19 // pred_fallthru
          _
      $region20: #{rnn_gru_forward.2} parent=5 // pred_fallthru
        _
      %p263 = scmp.le.s32.totalorder 1, %s9
      %p264 = scmp.lt.s32.totalorder %s9, 4
      %p265 = pnand %p263, %p264
      %p266 = pneg %p265
      // Predicated region
      $region63: #{rnn_gru_forward.2} parent=5 // pred_check
        _
      $region64: #{rnn_gru_forward.2} parent=5 // pred_check_branch
        %268 = sbr.rel (%p265) target = $region66
      $region65: #{rnn_gru_forward.2} parent=5 // pred_region
        %s269 = ssub.s32 %s9, 1
        %s270 = sand.u32 %s60, 1
        %s271 = sand.u32 %s60, 1
        %s272 = smul.addr %s271, 128
        %s273 = scalar_lea.vmem [#allocation2], %s272
        // Predicated region
        $region67: #{rnn_gru_forward.2} parent=65 // pred_check
          %p274 = pneg %p73
        $region68: #{rnn_gru_forward.2} parent=65 // pred_check_branch
          %276 = sbr.rel (%p274) target = $region70
        $region69: #{rnn_gru_forward.2} parent=65 // pred_region
          _
        $region70: #{rnn_gru_forward.2} parent=65 // pred_fallthru
          _
        %s277 = smul.u32 8, %s18
        %p278 = scmp.lt.s32.totalorder %s277, 7
        %s279 = scalar_select %p278, %s277, 7
        %s280 = smul.addr %s279, 8
        %s281 = scalar_lea.vmem %s0, %s280
        %p282 = pneg %p47
        %p283 = pneg %p44
        %s284 = sand.u32 %s60, 1
        %s285 = sand.u32 %s60, 1
        %s286 = smul.addr %s285, 128
        %s287 = scalar_lea.vmem [#allocation2], %s286
        %p288 = pneg %p73
        %p289 = pneg %p70
        %p290 = scmp.lt.s32.totalorder %s19, 2
        %s291 = scalar_select %p290, %s19, 2
        %s292 = scalar_lea.vmem %s2, %s291
        %p293 = pneg %p99
        %p294 = pneg %p96
        %p295 = pneg %p127
        %p296 = pneg %p124
        %s297 = sand.u32 %s114, 1
        %s298 = sand.u32 %s114, 1
        %s299 = smul.addr %s298, 64
        %s300 = scalar_lea.vmem [#allocation3], %s299
        %s301 = smul.u32 8, %s18
        %p302 = scmp.lt.s32.totalorder %s301, 7
        %s303 = scalar_select %p302, %s301, 7
        %s304 = smul.addr %s303, 8
        %s305 = scalar_lea.vmem %s0, %s304
        %s306 = smul.u32 8, %s18
        %p307 = scmp.lt.s32.totalorder %s19, 2
        %s308 = scalar_select %p307, %s19, 2
        %s309 = scalar_lea.vmem %s2, %s308
        %s310 = smul.u32 8, %s18
        %v311 = vld [vmem:[%s305] sm:$0xff]
        %v312 = vld [vmem:[%s305 + $0x8] sm:$0xff]
        %v313 = vld [vmem:[%s305 + $0x10] sm:$0xff]
        %v314 = vld [vmem:[%s305 + $0x18] sm:$0xff]
        %v315 = vld [vmem:[%s305 + $0x20] sm:$0xff]
        %v316 = vld [vmem:[%s305 + $0x28] sm:$0xff]
        %v317 = vld [vmem:[%s305 + $0x30] sm:$0xff]
        %v318 = vld [vmem:[%s305 + $0x38] sm:$0xff]
        %v319 = vld [vmem:[%s273] sm:$0xff]
        %v320 = vld [vmem:[%s273 + $0x8] sm:$0xff]
        %v321 = vld [vmem:[%s273 + $0x10] sm:$0xff]
        %v322 = vld [vmem:[%s273 + $0x18] sm:$0xff]
        %v323 = vld [vmem:[%s273 + $0x20] sm:$0xff]
        %v324 = vld [vmem:[%s273 + $0x28] sm:$0xff]
        %v325 = vld [vmem:[%s273 + $0x30] sm:$0xff]
        %v326 = vld [vmem:[%s273 + $0x38] sm:$0xff]
        %v327 = vld [vmem:[%s273 + $0x40] sm:$0xff]
        %v328 = vld [vmem:[%s273 + $0x48] sm:$0xff]
        %v329 = vld [vmem:[%s273 + $0x50] sm:$0xff]
        %v330 = vld [vmem:[%s273 + $0x58] sm:$0xff]
        %v331 = vld [vmem:[%s273 + $0x60] sm:$0xff]
        %v332 = vld [vmem:[%s273 + $0x68] sm:$0xff]
        %v333 = vld [vmem:[%s273 + $0x70] sm:$0xff]
        %v334 = vld [vmem:[%s273 + $0x78] sm:$0xff]
        %v335 = vld [vmem:[%s309] sm:$0x1]
        %v337 = vperm.slane %v335, 0
        %339 = vmatpush.msra.mxu0 %v334
        %340 = vmatpush.msra.mxu0 %v333
        %341 = vmatpush.msra.mxu0 %v332
        %342 = vmatpush.msra.mxu0 %v331
        %343 = vmatpush.msra.mxu0 %v330
        %344 = vmatpush.msra.mxu0 %v329
        %345 = vmatpush.msra.mxu0 %v328
        %346 = vmatpush.msra.mxu0 %v327
        %347 = vmatpush.msra.mxu0 %v326
        %348 = vmatpush.msra.mxu0 %v325
        %349 = vmatpush.msra.mxu0 %v324
        %350 = vmatpush.msra.mxu0 %v323
        %351 = vmatpush.msra.mxu0 %v322
        %352 = vmatpush.msra.mxu0 %v321
        %353 = vmatpush.msra.mxu0 %v320
        %354 = vmatpush.msra.mxu0 %v319
        %355 = vmatmul.f32.gmra.mxu0 %v311
        %v356 = vpop.f32.mrf.mxu0
        %v357 = vadd.f32 %v337, %v356
        %358 = vmatmul.f32.gmra.mxu0 %v312
        %v359 = vpop.f32.mrf.mxu0
        %v360 = vadd.f32 %v337, %v359
        %361 = vmatmul.f32.gmra.mxu0 %v313
        %v362 = vpop.f32.mrf.mxu0
        %v363 = vadd.f32 %v337, %v362
        %364 = vmatmul.f32.gmra.mxu0 %v314
        %v365 = vpop.f32.mrf.mxu0
        %v366 = vadd.f32 %v337, %v365
        %367 = vmatmul.f32.gmra.mxu0 %v315
        %v368 = vpop.f32.mrf.mxu0
        %v369 = vadd.f32 %v337, %v368
        %370 = vmatmul.f32.gmra.mxu0 %v316
        %v371 = vpop.f32.mrf.mxu0
        %v372 = vadd.f32 %v337, %v371
        %373 = vmatmul.f32.gmra.mxu0 %v317
        %v374 = vpop.f32.mrf.mxu0
        %v375 = vadd.f32 %v337, %v374
        %376 = vmatmul.f32.gmra.mxu0 %v318
        %v377 = vpop.f32.mrf.mxu0
        %v378 = vadd.f32 %v337, %v377
        %379 = vdwg.mxu0
        %380 = vst [vmem:[%s300] sm:$0xff] %v357
        %381 = vst [vmem:[%s300 + $0x8] sm:$0xff] %v360
        %382 = vst [vmem:[%s300 + $0x10] sm:$0xff] %v363
        %383 = vst [vmem:[%s300 + $0x18] sm:$0xff] %v366
        %384 = vst [vmem:[%s300 + $0x20] sm:$0xff] %v369
        %385 = vst [vmem:[%s300 + $0x28] sm:$0xff] %v372
        %386 = vst [vmem:[%s300 + $0x30] sm:$0xff] %v375
        %387 = vst [vmem:[%s300 + $0x38] sm:$0xff] %v378
        %s388 = sand.u32 %s114, 1
        %s389 = sand.u32 %s114, 1
        %s390 = smul.addr %s389, 64
        %s391 = scalar_lea.vmem [#allocation3], %s390
        // Predicated region
        $region71: #{rnn_gru_forward.2} parent=65 // pred_check
          %p392 = pneg %p124
        $region72: #{rnn_gru_forward.2} parent=65 // pred_check_branch
          %394 = sbr.rel (%p392) target = $region74
        $region73: #{rnn_gru_forward.2} parent=65 // pred_region
          %s395 = smul.u32 8, %s18
          %s396 = smul.addr %s395, 3
          %s397 = sadd.s32 %s19, %s396
          %s398 = smul.addr %s397, 8
          %s399 = scalar_lea.vmem %s3, %s398
          // Predicated region
          $region75: #{rnn_gru_forward.2} parent=73 // pred_check
            _
          $region76: #{rnn_gru_forward.2} parent=73 // pred_check_branch
            %401 = sbr.rel (0) target = $region78
          $region77: #{rnn_gru_forward.2} parent=73 // pred_region
            // Predicated region
            $region79: #{rnn_gru_forward.2} parent=77 // pred_check
              _
            $region80: #{rnn_gru_forward.2} parent=77 // pred_check_branch
              %403 = sbr.rel (0) target = $region82
            $region81: #{rnn_gru_forward.2} parent=77 // pred_region
              // Predicated region
              $region94: #{rnn_gru_forward.2} parent=81 // pred_check
                _
              $region95: #{rnn_gru_forward.2} parent=81 // pred_check_branch
                %433 = sbr.rel (0) target = $region97
              $region96: #{rnn_gru_forward.2} parent=81 // pred_region
                loop: start=0, step=1, limit=1
                $region98: #{rnn_gru_forward.2} parent=96 // loop_pre_header
                  _
                $region99: #{rnn_gru_forward.2} parent=96 // loop_header
                  %s435 = sphi 0, %s439
                  %p436 = scmp.ge.s32.totalorder %s435, 1
                  %s440 = sphi %s391, %s391
                  %s441 = sphi %s399, %s399
                $region100: #{rnn_gru_forward.2} parent=96 // loop_header_branch
                  %438 = sbr.rel (%p436) target = $region104
                $region101: #{rnn_gru_forward.2} parent=96 // loop_body
                  %v442 = vld [vmem:[%s440] sm:$0xff]
                  %443 = vst [vmem:[%s441] sm:$0xff] %v442
                  %v444 = vld [vmem:[%s440 + $0x8] sm:$0xff]
                  %445 = vst [vmem:[%s441 + $0x18] sm:$0xff] %v444
                  %v446 = vld [vmem:[%s440 + $0x10] sm:$0xff]
                  %447 = vst [vmem:[%s441 + $0x30] sm:$0xff] %v446
                  %v448 = vld [vmem:[%s440 + $0x18] sm:$0xff]
                  %449 = vst [vmem:[%s441 + $0x48] sm:$0xff] %v448
                  %v450 = vld [vmem:[%s440 + $0x20] sm:$0xff]
                  %451 = vst [vmem:[%s441 + $0x60] sm:$0xff] %v450
                  %v452 = vld [vmem:[%s440 + $0x28] sm:$0xff]
                  %453 = vst [vmem:[%s441 + $0x78] sm:$0xff] %v452
                  %v454 = vld [vmem:[%s440 + $0x30] sm:$0xff]
                  %455 = vst [vmem:[%s441 + $0x90] sm:$0xff] %v454
                  %v456 = vld [vmem:[%s440 + $0x38] sm:$0xff]
                  %457 = vst [vmem:[%s441 + $0xa8] sm:$0xff] %v456
                $region102: #{rnn_gru_forward.2} parent=96 // loop_footer
                  %s439 = sadd.s32 1, %s435
                $region103: #{rnn_gru_forward.2} parent=96 // loop_footer_branch
                  %434 = sbr.rel target = $region99
                $region104: #{rnn_gru_forward.2} parent=96 // loop_exit
                  _
              $region97: #{rnn_gru_forward.2} parent=81 // pred_fallthru
                _
              // Predicated region
              $region105: #{rnn_gru_forward.2} parent=81 // pred_check
                _
              $region106: #{rnn_gru_forward.2} parent=81 // pred_check_branch
                %459 = sbr.rel target = $region108
              $region107: #{rnn_gru_forward.2} parent=81 // pred_region
                _
              $region108: #{rnn_gru_forward.2} parent=81 // pred_fallthru
                _
            $region82: #{rnn_gru_forward.2} parent=77 // pred_fallthru
              _
            // Predicated region
            $region83: #{rnn_gru_forward.2} parent=77 // pred_check
              _
            $region84: #{rnn_gru_forward.2} parent=77 // pred_check_branch
              %405 = sbr.rel target = $region86
            $region85: #{rnn_gru_forward.2} parent=77 // pred_region
              %s407 = ssub.s32 256, 1
              loop: start=0, step=1, limit=1
              $region87: #{rnn_gru_forward.2} parent=85 // loop_pre_header
                _
              $region88: #{rnn_gru_forward.2} parent=85 // loop_header
                %s409 = sphi 0, %s413
                %p410 = scmp.ge.s32.totalorder %s409, 1
                %s414 = sphi %s391, %s391
                %s415 = sphi %s399, %s399
              $region89: #{rnn_gru_forward.2} parent=85 // loop_header_branch
                %412 = sbr.rel (%p410) target = $region93
              $region90: #{rnn_gru_forward.2} parent=85 // loop_body
                %v416 = vld [vmem:[%s414] sm:%s407]
                %417 = vst [vmem:[%s415] sm:%s407] %v416
                %v418 = vld [vmem:[%s414 + $0x8] sm:%s407]
                %419 = vst [vmem:[%s415 + $0x18] sm:%s407] %v418
                %v420 = vld [vmem:[%s414 + $0x10] sm:%s407]
                %421 = vst [vmem:[%s415 + $0x30] sm:%s407] %v420
                %v422 = vld [vmem:[%s414 + $0x18] sm:%s407]
                %423 = vst [vmem:[%s415 + $0x48] sm:%s407] %v422
                %v424 = vld [vmem:[%s414 + $0x20] sm:%s407]
                %425 = vst [vmem:[%s415 + $0x60] sm:%s407] %v424
                %v426 = vld [vmem:[%s414 + $0x28] sm:%s407]
                %427 = vst [vmem:[%s415 + $0x78] sm:%s407] %v426
                %v428 = vld [vmem:[%s414 + $0x30] sm:%s407]
                %429 = vst [vmem:[%s415 + $0x90] sm:%s407] %v428
                %v430 = vld [vmem:[%s414 + $0x38] sm:%s407]
                %431 = vst [vmem:[%s415 + $0xa8] sm:%s407] %v430
              $region91: #{rnn_gru_forward.2} parent=85 // loop_footer
                %s413 = sadd.s32 1, %s409
              $region92: #{rnn_gru_forward.2} parent=85 // loop_footer_branch
                %408 = sbr.rel target = $region88
              $region93: #{rnn_gru_forward.2} parent=85 // loop_exit
                _
            $region86: #{rnn_gru_forward.2} parent=77 // pred_fallthru
              _
          $region78: #{rnn_gru_forward.2} parent=73 // pred_fallthru
            _
          %460 = vnop
        $region74: #{rnn_gru_forward.2} parent=65 // pred_fallthru
          _
      $region66: #{rnn_gru_forward.2} parent=5 // pred_fallthru
        _
      %p461 = scmp.le.s32.totalorder 2, %s9
      // Predicated region
      $region109: #{rnn_gru_forward.2} parent=5 // pred_check
        %p462 = pneg %p461
      $region110: #{rnn_gru_forward.2} parent=5 // pred_check_branch
        %464 = sbr.rel (%p462) target = $region112
      $region111: #{rnn_gru_forward.2} parent=5 // pred_region
        %s465 = ssub.s32 %s9, 2
        // Predicated region
        $region113: #{rnn_gru_forward.2} parent=111 // pred_check
          %p466 = pneg %p130
        $region114: #{rnn_gru_forward.2} parent=111 // pred_check_branch
          %468 = sbr.rel (%p466) target = $region116
        $region115: #{rnn_gru_forward.2} parent=111 // pred_region
          %s469 = sand.u32 %s115, 1
          %s470 = sand.u32 %s115, 1
          %s471 = smul.addr %s470, 64
          %s472 = scalar_lea.vmem [#allocation3], %s471
        $region116: #{rnn_gru_forward.2} parent=111 // pred_fallthru
          _
      $region112: #{rnn_gru_forward.2} parent=5 // pred_fallthru
        _
    $region6: #{rnn_gru_forward.2} parent=1 // loop_footer
      %s13 = sadd.s32 1, %s9
    $region7: #{rnn_gru_forward.2} parent=1 // loop_footer_branch
      %8 = sbr.rel target = $region3
    $region8: #{rnn_gru_forward.2} parent=1 // loop_exit
      _

// kernel: rnn_gru_forward.3
$region0: #{rnn_gru_forward.3}
  #allocation0 [shape = 'u32[]', space=smem, size = 0x4, offset = 0x4, fixed_abs, tag = 'smem constant byte address 0x4 - core index']
  #allocation1 [shape = 'u32[72,128]{1,0:T(1,128)}', space=vmem, size = 0x9000, scoped, tag = 'internal scratch']
  #allocation2 [shape = 'f32[8,128]{1,0:T(8,128)}', space=vmem, size = 0x1000, scoped, tag = 'scratch operand']
  %s0 = inlined_call_operand.vmem [shape: f32[8,8,384], index: 0, kind: input, shape index: {}]
  %s1 = inlined_call_operand.vmem [shape: f32[128,384], index: 1, kind: input, shape index: {}]
  %s2 = inlined_call_operand.vmem [shape: f32[1,128], index: 2, kind: input, shape index: {}]
  %s3 = inlined_call_operand.vmem [shape: f32[128,128], index: 3, kind: input, shape index: {}]
  %s4 = inlined_call_operand.vmem [shape: f32[1,128], index: 4, kind: input, shape index: {}]
  %s5 = inlined_call_operand.vmem [shape: f32[8,128], index: 5, kind: output, shape index: {}]
  %s6 = sld [smem:[#allocation0]]
  $region61: #{rnn_gru_forward.3} parent=0
    _
  %s8 = ssub.s32 1, %s6
  %s9 = scalar_select 0, %s8, %s6
  loop: start=0, step=1, limit=4
  $region2: #{rnn_gru_forward.3} parent=0 // loop_pre_header
    _
  $region3: #{rnn_gru_forward.3} parent=0 // loop_header
    %s11 = sphi 0, %s15
    %p12 = scmp.ge.s32.totalorder %s11, 4
    %s18 = sphi 0, %s30
    %s19 = sphi 0, %s26
    %s20 = sphi 0, %s18
    %s21 = sphi 0, %s19
    %s22 = sphi 0, %s20
    %s23 = sphi 0, %s21
    %s35 = sphi 0, %s37
    %s38 = sphi 0, %s35
    %s39 = sphi 0, %s38
    %s55 = sphi 0, %s39
    %s59 = sphi 0, %s59
    %s61 = sphi 0, %s59
    %s62 = sphi 0, %s61
    %s76 = sphi 0, %s62
    %s80 = sphi 0, %s80
    %s82 = sphi 0, %s80
    %s83 = sphi 0, %s82
    %s97 = sphi 0, %s83
    %s101 = sphi 0, %s101
    %s103 = sphi 0, %s101
    %s104 = sphi 0, %s103
    %s118 = sphi 0, %s104
    %s122 = sphi 0, %s122
    %s124 = sphi 0, %s122
    %s125 = sphi 0, %s124
    %s139 = sphi 0, %s125
    %s145 = sphi 0, %s147
    %s148 = sphi 0, %s145
    %s149 = sphi 0, %s148
    %s165 = sphi 0, %s149
  $region4: #{rnn_gru_forward.3} parent=0 // loop_header_branch
    %14 = sbr.rel (%p12) target = $region8
  $region5: #{rnn_gru_forward.3} parent=0 // loop_body
    %s16 = ssub.s32 %s11, 1
    %s17 = ssub.s32 %s11, 2
    %s24 = sadd.s32 1, %s19
    %p25 = scmp.ge.s32.totalorder %s24, 2
    %s26 = scalar_select %p25, 0, %s24
    %s27 = sadd.s32 1, %s18
    %s28 = scalar_select %p25, %s27, %s18
    %p29 = scmp.ge.s32.totalorder %s28, 1
    %s30 = scalar_select %p29, 0, %s28
    %s31 = ssub.s32 %s19, %s26
    %s32 = ssub.s32 %s18, %s30
    %s33 = sor.u32 %s31, %s32
    %p34 = scmp.eq.s32.totalorder %s33, 0
    %s36 = sadd.s32 %s35, 1
    %s37 = scalar_select %p34, %s35, %s36
    %p40 = pneg %p34
    %p41 = scmp.eq.s32.totalorder %s11, 1
    %p42 = por %p40, %p41
    %p43 = scmp.ne.s32.totalorder %s35, %s38
    %p44 = scmp.eq.s32.totalorder %s11, 0
    %p45 = por %p43, %p44
    %p46 = scmp.ne.s32.totalorder %s35, %s38
    %p47 = scmp.eq.s32.totalorder %s16, 1
    %p48 = por %p46, %p47
    %p49 = scmp.ne.s32.totalorder %s38, %s39
    %p50 = scmp.eq.s32.totalorder %s16, 0
    %p51 = por %p49, %p50
    %p52 = scmp.ne.s32.totalorder %s38, %s39
    %p53 = scmp.eq.s32.totalorder %s17, 1
    %p54 = por %p52, %p53
    %p56 = scmp.ne.s32.totalorder %s39, %s55
    %p57 = scmp.eq.s32.totalorder %s17, 0
    %p58 = por %p56, %p57
    %s60 = sadd.s32 %s59, 1
    %p63 = scmp.eq.s32.totalorder %s11, 1
    %p64 = scmp.ne.s32.totalorder %s59, %s61
    %p65 = scmp.eq.s32.totalorder %s11, 0
    %p66 = por %p64, %p65
    %p67 = scmp.ne.s32.totalorder %s59, %s61
    %p68 = scmp.eq.s32.totalorder %s16, 1
    %p69 = por %p67, %p68
    %p70 = scmp.ne.s32.totalorder %s61, %s62
    %p71 = scmp.eq.s32.totalorder %s16, 0
    %p72 = por %p70, %p71
    %p73 = scmp.ne.s32.totalorder %s61, %s62
    %p74 = scmp.eq.s32.totalorder %s17, 1
    %p75 = por %p73, %p74
    %p77 = scmp.ne.s32.totalorder %s62, %s76
    %p78 = scmp.eq.s32.totalorder %s17, 0
    %p79 = por %p77, %p78
    %s81 = sadd.s32 %s80, 1
    %p84 = scmp.eq.s32.totalorder %s11, 1
    %p85 = scmp.ne.s32.totalorder %s80, %s82
    %p86 = scmp.eq.s32.totalorder %s11, 0
    %p87 = por %p85, %p86
    %p88 = scmp.ne.s32.totalorder %s80, %s82
    %p89 = scmp.eq.s32.totalorder %s16, 1
    %p90 = por %p88, %p89
    %p91 = scmp.ne.s32.totalorder %s82, %s83
    %p92 = scmp.eq.s32.totalorder %s16, 0
    %p93 = por %p91, %p92
    %p94 = scmp.ne.s32.totalorder %s82, %s83
    %p95 = scmp.eq.s32.totalorder %s17, 1
    %p96 = por %p94, %p95
    %p98 = scmp.ne.s32.totalorder %s83, %s97
    %p99 = scmp.eq.s32.totalorder %s17, 0
    %p100 = por %p98, %p99
    %s102 = sadd.s32 %s101, 1
    %p105 = scmp.eq.s32.totalorder %s11, 1
    %p106 = scmp.ne.s32.totalorder %s101, %s103
    %p107 = scmp.eq.s32.totalorder %s11, 0
    %p108 = por %p106, %p107
    %p109 = scmp.ne.s32.totalorder %s101, %s103
    %p110 = scmp.eq.s32.totalorder %s16, 1
    %p111 = por %p109, %p110
    %p112 = scmp.ne.s32.totalorder %s103, %s104
    %p113 = scmp.eq.s32.totalorder %s16, 0
    %p114 = por %p112, %p113
    %p115 = scmp.ne.s32.totalorder %s103, %s104
    %p116 = scmp.eq.s32.totalorder %s17, 1
    %p117 = por %p115, %p116
    %p119 = scmp.ne.s32.totalorder %s104, %s118
    %p120 = scmp.eq.s32.totalorder %s17, 0
    %p121 = por %p119, %p120
    %s123 = sadd.s32 %s122, 1
    %p126 = scmp.eq.s32.totalorder %s11, 1
    %p127 = scmp.ne.s32.totalorder %s122, %s124
    %p128 = scmp.eq.s32.totalorder %s11, 0
    %p129 = por %p127, %p128
    %p130 = scmp.ne.s32.totalorder %s122, %s124
    %p131 = scmp.eq.s32.totalorder %s16, 1
    %p132 = por %p130, %p131
    %p133 = scmp.ne.s32.totalorder %s124, %s125
    %p134 = scmp.eq.s32.totalorder %s16, 0
    %p135 = por %p133, %p134
    %p136 = scmp.ne.s32.totalorder %s124, %s125
    %p137 = scmp.eq.s32.totalorder %s17, 1
    %p138 = por %p136, %p137
    %p140 = scmp.ne.s32.totalorder %s125, %s139
    %p141 = scmp.eq.s32.totalorder %s17, 0
    %p142 = por %p140, %p141
    %s143 = ssub.s32 %s18, %s30
    %p144 = scmp.eq.s32.totalorder %s143, 0
    %s146 = sadd.s32 %s145, 1
    %s147 = scalar_select %p144, %s145, %s146
    %p150 = pneg %p144
    %p151 = scmp.eq.s32.totalorder %s11, 1
    %p152 = por %p150, %p151
    %p153 = scmp.ne.s32.totalorder %s145, %s148
    %p154 = scmp.eq.s32.totalorder %s11, 0
    %p155 = por %p153, %p154
    %p156 = scmp.ne.s32.totalorder %s145, %s148
    %p157 = scmp.eq.s32.totalorder %s16, 1
    %p158 = por %p156, %p157
    %p159 = scmp.ne.s32.totalorder %s148, %s149
    %p160 = scmp.eq.s32.totalorder %s16, 0
    %p161 = por %p159, %p160
    %p162 = scmp.ne.s32.totalorder %s148, %s149
    %p163 = scmp.eq.s32.totalorder %s17, 1
    %p164 = por %p162, %p163
    %p166 = scmp.ne.s32.totalorder %s149, %s165
    %p167 = scmp.eq.s32.totalorder %s17, 0
    %p168 = por %p166, %p167
    %p169 = scmp.le.s32.totalorder 1, %s11
    %p170 = scmp.lt.s32.totalorder %s11, 3
    %p171 = pnand %p169, %p170
    %p172 = pneg %p171
    // Predicated region
    $region9: #{rnn_gru_forward.3} parent=5 // pred_check
      _
    $region10: #{rnn_gru_forward.3} parent=5 // pred_check_branch
      %174 = sbr.rel (%p171) target = $region12
    $region11: #{rnn_gru_forward.3} parent=5 // pred_region
      %s175 = ssub.s32 %s11, 1
      // Predicated region
      $region13: #{rnn_gru_forward.3} parent=11 // pred_check
        %p176 = pneg %p72
      $region14: #{rnn_gru_forward.3} parent=11 // pred_check_branch
        %178 = sbr.rel (%p176) target = $region16
      $region15: #{rnn_gru_forward.3} parent=11 // pred_region
        _
      $region16: #{rnn_gru_forward.3} parent=11 // pred_fallthru
        _
      // Predicated region
      $region17: #{rnn_gru_forward.3} parent=11 // pred_check
        %p179 = pneg %p93
      $region18: #{rnn_gru_forward.3} parent=11 // pred_check_branch
        %181 = sbr.rel (%p179) target = $region20
      $region19: #{rnn_gru_forward.3} parent=11 // pred_region
        _
      $region20: #{rnn_gru_forward.3} parent=11 // pred_fallthru
        _
      // Predicated region
      $region21: #{rnn_gru_forward.3} parent=11 // pred_check
        %p182 = pneg %p114
      $region22: #{rnn_gru_forward.3} parent=11 // pred_check_branch
        %184 = sbr.rel (%p182) target = $region24
      $region23: #{rnn_gru_forward.3} parent=11 // pred_region
        _
      $region24: #{rnn_gru_forward.3} parent=11 // pred_fallthru
        _
      // Predicated region
      $region25: #{rnn_gru_forward.3} parent=11 // pred_check
        %p185 = pneg %p135
      $region26: #{rnn_gru_forward.3} parent=11 // pred_check_branch
        %187 = sbr.rel (%p185) target = $region28
      $region27: #{rnn_gru_forward.3} parent=11 // pred_region
        _
      $region28: #{rnn_gru_forward.3} parent=11 // pred_fallthru
        _
    $region12: #{rnn_gru_forward.3} parent=5 // pred_fallthru
      _
    %p188 = scmp.lt.s32.totalorder %s11, 2
    // Predicated region
    $region29: #{rnn_gru_forward.3} parent=5 // pred_check
      %p189 = pneg %p188
    $region30: #{rnn_gru_forward.3} parent=5 // pred_check_branch
      %191 = sbr.rel (%p189) target = $region32
    $region31: #{rnn_gru_forward.3} parent=5 // pred_region
      // Predicated region
      $region33: #{rnn_gru_forward.3} parent=31 // pred_check
        %p192 = pneg %p45
      $region34: #{rnn_gru_forward.3} parent=31 // pred_check_branch
        %194 = sbr.rel (%p192) target = $region36
      $region35: #{rnn_gru_forward.3} parent=31 // pred_region
        %s195 = smul.u32 4, %s19
        %p196 = scmp.lt.s32.totalorder %s195, 7
        %s197 = scalar_select %p196, %s195, 7
        %p198 = scmp.lt.s32.totalorder %s18, 0
        %s199 = scalar_select %p198, %s18, 0
        %s200 = smul.addr %s199, 3
        %s201 = smul.addr %s197, 3
        %s202 = sadd.s32 %s200, %s201
        %s203 = smul.addr %s202, 8
        %s204 = scalar_lea.vmem %s0, %s203
        %s205 = smul.u32 4, %s19
      $region36: #{rnn_gru_forward.3} parent=31 // pred_fallthru
        _
    $region32: #{rnn_gru_forward.3} parent=5 // pred_fallthru
      _
    %p206 = scmp.le.s32.totalorder 1, %s11
    %p207 = scmp.lt.s32.totalorder %s11, 3
    %p208 = pnand %p206, %p207
    %p209 = pneg %p208
    // Predicated region
    $region37: #{rnn_gru_forward.3} parent=5 // pred_check
      _
    $region38: #{rnn_gru_forward.3} parent=5 // pred_check_branch
      %211 = sbr.rel (%p208) target = $region40
    $region39: #{rnn_gru_forward.3} parent=5 // pred_region
      %s212 = ssub.s32 %s11, 1
      %s213 = smul.u32 4, %s21
      %p214 = scmp.lt.s32.totalorder %s213, 7
      %s215 = scalar_select %p214, %s213, 7
      %p216 = scmp.lt.s32.totalorder %s20, 0
      %s217 = scalar_select %p216, %s20, 0
      %s218 = smul.addr %s217, 3
      %s219 = smul.addr %s215, 3
      %s220 = sadd.s32 %s218, %s219
      %s221 = smul.addr %s220, 8
      %s222 = scalar_lea.vmem %s0, %s221
      %p223 = pneg %p51
      %p224 = pneg %p48
      %p225 = pneg %p72
      %p226 = pneg %p69
      %p227 = pneg %p93
      %p228 = pneg %p90
      %p229 = pneg %p114
      %p230 = pneg %p111
      %p231 = pneg %p135
      %p232 = pneg %p132
      %p233 = pneg %p161
      %p234 = pneg %p158
      %p235 = scmp.lt.s32.totalorder %s20, 0
      %s236 = scalar_select %p235, %s20, 0
      %s237 = smul.addr %s236, 8
      %s238 = scalar_lea.vmem %s5, %s237
      %s239 = smul.u32 4, %s21
      %p240 = scmp.lt.s32.totalorder %s239, 7
      %s241 = scalar_select %p240, %s239, 7
      %p242 = scmp.lt.s32.totalorder %s20, 0
      %s243 = scalar_select %p242, %s20, 0
      %s244 = smul.addr %s243, 3
      %s245 = smul.addr %s241, 3
      %s246 = sadd.s32 %s244, %s245
      %s247 = smul.addr %s246, 8
      %s248 = scalar_lea.vmem %s0, %s247
      %s249 = smul.u32 4, %s21
      %p250 = scmp.lt.s32.totalorder %s20, 0
      %s251 = scalar_select %p250, %s20, 0
      %s252 = smul.addr %s251, 8
      %s253 = scalar_lea.vmem %s5, %s252
      %p254 = scmp.eq.s32.totalorder %s21, 0
      // Predicated region
      $region41: #{rnn_gru_forward.3} parent=39 // pred_check
        %p255 = pneg %p254
      $region42: #{rnn_gru_forward.3} parent=39 // pred_check_branch
        %257 = sbr.rel (%p255) target = $region44
      $region43: #{rnn_gru_forward.3} parent=39 // pred_region
        %258 = vst [vmem:[#allocation2] sm:$0xff] 0.0
        %259 = vst [vmem:[%s253] sm:$0xff] 0.0
      $region44: #{rnn_gru_forward.3} parent=39 // pred_fallthru
        _
      %v260 = vld [vmem:[%s1] sm:$0xff]
      %v261 = vld [vmem:[%s1 + $0x8] sm:$0xff]
      %v262 = vld [vmem:[%s1 + $0x10] sm:$0xff]
      %v263 = vld [vmem:[%s1 + $0x18] sm:$0xff]
      %v264 = vld [vmem:[%s1 + $0x20] sm:$0xff]
      %v265 = vld [vmem:[%s1 + $0x28] sm:$0xff]
      %v266 = vld [vmem:[%s1 + $0x30] sm:$0xff]
      %v267 = vld [vmem:[%s1 + $0x38] sm:$0xff]
      %v268 = vld [vmem:[%s1 + $0x40] sm:$0xff]
      %v269 = vld [vmem:[%s1 + $0x48] sm:$0xff]
      %v270 = vld [vmem:[%s1 + $0x50] sm:$0xff]
      %v271 = vld [vmem:[%s1 + $0x58] sm:$0xff]
      %v272 = vld [vmem:[%s1 + $0x60] sm:$0xff]
      %v273 = vld [vmem:[%s1 + $0x68] sm:$0xff]
      %v274 = vld [vmem:[%s1 + $0x70] sm:$0xff]
      %v275 = vld [vmem:[%s1 + $0x78] sm:$0xff]
      %v276 = vld [vmem:[%s1 + $0x80] sm:$0xff]
      %v277 = vld [vmem:[%s1 + $0x88] sm:$0xff]
      %v278 = vld [vmem:[%s1 + $0x90] sm:$0xff]
      %v279 = vld [vmem:[%s1 + $0x98] sm:$0xff]
      %v280 = vld [vmem:[%s1 + $0xa0] sm:$0xff]
      %v281 = vld [vmem:[%s1 + $0xa8] sm:$0xff]
      %v282 = vld [vmem:[%s1 + $0xb0] sm:$0xff]
      %v283 = vld [vmem:[%s1 + $0xb8] sm:$0xff]
      %v284 = vld [vmem:[%s1 + $0xc0] sm:$0xff]
      %v285 = vld [vmem:[%s1 + $0xc8] sm:$0xff]
      %v286 = vld [vmem:[%s1 + $0xd0] sm:$0xff]
      %v287 = vld [vmem:[%s1 + $0xd8] sm:$0xff]
      %v288 = vld [vmem:[%s1 + $0xe0] sm:$0xff]
      %v289 = vld [vmem:[%s1 + $0xe8] sm:$0xff]
      %v290 = vld [vmem:[%s1 + $0xf0] sm:$0xff]
      %v291 = vld [vmem:[%s1 + $0xf8] sm:$0xff]
      %v292 = vld [vmem:[%s1 + $0x100] sm:$0xff]
      %v293 = vld [vmem:[%s1 + $0x108] sm:$0xff]
      %v294 = vld [vmem:[%s1 + $0x110] sm:$0xff]
      %v295 = vld [vmem:[%s1 + $0x118] sm:$0xff]
      %v296 = vld [vmem:[%s1 + $0x120] sm:$0xff]
      %v297 = vld [vmem:[%s1 + $0x128] sm:$0xff]
      %v298 = vld [vmem:[%s1 + $0x130] sm:$0xff]
      %v299 = vld [vmem:[%s1 + $0x138] sm:$0xff]
      %v300 = vld [vmem:[%s1 + $0x140] sm:$0xff]
      %v301 = vld [vmem:[%s1 + $0x148] sm:$0xff]
      %v302 = vld [vmem:[%s1 + $0x150] sm:$0xff]
      %v303 = vld [vmem:[%s1 + $0x158] sm:$0xff]
      %v304 = vld [vmem:[%s1 + $0x160] sm:$0xff]
      %v305 = vld [vmem:[%s1 + $0x168] sm:$0xff]
      %v306 = vld [vmem:[%s1 + $0x170] sm:$0xff]
      %v307 = vld [vmem:[%s1 + $0x178] sm:$0xff]
      %v308 = vld [vmem:[%s2] sm:$0x1]
      %v310 = vperm.slane %v308, 0
      %v312 = vld [vmem:[#allocation2] sm:$0xff]
      %v313 = vld [vmem:[%s248] sm:$0xff]
      %v314 = vld [vmem:[%s248 + $0x8] sm:$0xff]
      %v315 = vld [vmem:[%s248 + $0x10] sm:$0xff]
      %316 = vmatpush.msra.mxu0 %v305
      %317 = vmatpush.msra.mxu0 %v302
      %318 = vmatpush.msra.mxu0 %v299
      %319 = vmatpush.msra.mxu0 %v296
      %320 = vmatpush.msra.mxu0 %v293
      %321 = vmatpush.msra.mxu0 %v290
      %322 = vmatpush.msra.mxu0 %v287
      %323 = vmatpush.msra.mxu0 %v284
      %324 = vmatpush.msra.mxu0 %v281
      %325 = vmatpush.msra.mxu0 %v278
      %326 = vmatpush.msra.mxu0 %v275
      %327 = vmatpush.msra.mxu0 %v272
      %328 = vmatpush.msra.mxu0 %v269
      %329 = vmatpush.msra.mxu0 %v266
      %330 = vmatpush.msra.mxu0 %v263
      %331 = vmatpush.msra.mxu0 %v260
      %332 = vmatmul.f32.gmra.mxu0 %v312
      %v333 = vpop.f32.mrf.mxu0
      %v334 = vadd.f32 0.0, %v333
      %335 = vdwg.mxu0
      %336 = vmatpush.msra.mxu0 %v306
      %337 = vmatpush.msra.mxu0 %v303
      %338 = vmatpush.msra.mxu0 %v300
      %339 = vmatpush.msra.mxu0 %v297
      %340 = vmatpush.msra.mxu0 %v294
      %341 = vmatpush.msra.mxu0 %v291
      %342 = vmatpush.msra.mxu0 %v288
      %343 = vmatpush.msra.mxu0 %v285
      %344 = vmatpush.msra.mxu0 %v282
      %345 = vmatpush.msra.mxu0 %v279
      %346 = vmatpush.msra.mxu0 %v276
      %347 = vmatpush.msra.mxu0 %v273
      %348 = vmatpush.msra.mxu0 %v270
      %349 = vmatpush.msra.mxu0 %v267
      %350 = vmatpush.msra.mxu0 %v264
      %351 = vmatpush.msra.mxu0 %v261
      %352 = vmatmul.f32.gmra.mxu0 %v312
      %v353 = vpop.f32.mrf.mxu0
      %v354 = vadd.f32 0.0, %v353
      %355 = vdwg.mxu0
      %356 = vmatpush.msra.mxu0 %v307
      %357 = vmatpush.msra.mxu0 %v304
      %358 = vmatpush.msra.mxu0 %v301
      %359 = vmatpush.msra.mxu0 %v298
      %360 = vmatpush.msra.mxu0 %v295
      %361 = vmatpush.msra.mxu0 %v292
      %362 = vmatpush.msra.mxu0 %v289
      %363 = vmatpush.msra.mxu0 %v286
      %364 = vmatpush.msra.mxu0 %v283
      %365 = vmatpush.msra.mxu0 %v280
      %366 = vmatpush.msra.mxu0 %v277
      %367 = vmatpush.msra.mxu0 %v274
      %368 = vmatpush.msra.mxu0 %v271
      %369 = vmatpush.msra.mxu0 %v268
      %370 = vmatpush.msra.mxu0 %v265
      %371 = vmatpush.msra.mxu0 %v262
      %372 = vmatmul.f32.gmra.mxu0 %v312
      %v373 = vpop.f32.mrf.mxu0
      %v374 = vadd.f32 0.0, %v373
      %375 = vdwg.mxu0
      %v376 = vadd.f32 %v313, %v334
      %v377 = vmul.f32 %v376, 0.5
      %v378 = vtanh.pop %v377
      %v379 = vmul.f32 %v378, 0.5
      %v380 = vadd.f32 %v379, 0.5
      %v381 = vadd.f32 %v314, %v354
      %v382 = vmul.f32 %v381, 0.5
      %v383 = vtanh.pop %v382
      %v384 = vmul.f32 %v383, 0.5
      %v385 = vadd.f32 %v384, 0.5
      %v386 = vadd.f32 %v374, %v310
      %v387 = vmul.f32 %v380, %v386
      %v388 = vadd.f32 %v315, %v387
      %v389 = vtanh.pop %v388
      %v390 = vsub.f32 1.0, %v385
      %v391 = vmul.f32 %v390, %v389
      %v392 = vmul.f32 %v385, %v312
      %v393 = vadd.f32 %v391, %v392
      %s394 = scalar_lea.vmem %s248, 24
      %v395 = vld [vmem:[%s394] sm:$0xff]
      %v396 = vld [vmem:[%s394 + $0x8] sm:$0xff]
      %v397 = vld [vmem:[%s394 + $0x10] sm:$0xff]
      %398 = vmatpush.msra.mxu0 %v305
      %399 = vmatpush.msra.mxu0 %v302
      %400 = vmatpush.msra.mxu0 %v299
      %401 = vmatpush.msra.mxu0 %v296
      %402 = vmatpush.msra.mxu0 %v293
      %403 = vmatpush.msra.mxu0 %v290
      %404 = vmatpush.msra.mxu0 %v287
      %405 = vmatpush.msra.mxu0 %v284
      %406 = vmatpush.msra.mxu0 %v281
      %407 = vmatpush.msra.mxu0 %v278
      %408 = vmatpush.msra.mxu0 %v275
      %409 = vmatpush.msra.mxu0 %v272
      %410 = vmatpush.msra.mxu0 %v269
      %411 = vmatpush.msra.mxu0 %v266
      %412 = vmatpush.msra.mxu0 %v263
      %413 = vmatpush.msra.mxu0 %v260
      %414 = vmatmul.f32.gmra.mxu0 %v393
      %v415 = vpop.f32.mrf.mxu0
      %v416 = vadd.f32 0.0, %v415
      %417 = vdwg.mxu0
      %418 = vmatpush.msra.mxu0 %v306
      %419 = vmatpush.msra.mxu0 %v303
      %420 = vmatpush.msra.mxu0 %v300
      %421 = vmatpush.msra.mxu0 %v297
      %422 = vmatpush.msra.mxu0 %v294
      %423 = vmatpush.msra.mxu0 %v291
      %424 = vmatpush.msra.mxu0 %v288
      %425 = vmatpush.msra.mxu0 %v285
      %426 = vmatpush.msra.mxu0 %v282
      %427 = vmatpush.msra.mxu0 %v279
      %428 = vmatpush.msra.mxu0 %v276
      %429 = vmatpush.msra.mxu0 %v273
      %430 = vmatpush.msra.mxu0 %v270
      %431 = vmatpush.msra.mxu0 %v267
      %432 = vmatpush.msra.mxu0 %v264
      %433 = vmatpush.msra.mxu0 %v261
      %434 = vmatmul.f32.gmra.mxu0 %v393
      %v435 = vpop.f32.mrf.mxu0
      %v436 = vadd.f32 0.0, %v435
      %437 = vdwg.mxu0
      %438 = vmatpush.msra.mxu0 %v307
      %439 = vmatpush.msra.mxu0 %v304
      %440 = vmatpush.msra.mxu0 %v301
      %441 = vmatpush.msra.mxu0 %v298
      %442 = vmatpush.msra.mxu0 %v295
      %443 = vmatpush.msra.mxu0 %v292
      %444 = vmatpush.msra.mxu0 %v289
      %445 = vmatpush.msra.mxu0 %v286
      %446 = vmatpush.msra.mxu0 %v283
      %447 = vmatpush.msra.mxu0 %v280
      %448 = vmatpush.msra.mxu0 %v277
      %449 = vmatpush.msra.mxu0 %v274
      %450 = vmatpush.msra.mxu0 %v271
      %451 = vmatpush.msra.mxu0 %v268
      %452 = vmatpush.msra.mxu0 %v265
      %453 = vmatpush.msra.mxu0 %v262
      %454 = vmatmul.f32.gmra.mxu0 %v393
      %v455 = vpop.f32.mrf.mxu0
      %v456 = vadd.f32 0.0, %v455
      %457 = vdwg.mxu0
      %v458 = vadd.f32 %v395, %v416
      %v459 = vmul.f32 %v458, 0.5
      %v460 = vtanh.pop %v459
      %v461 = vmul.f32 %v460, 0.5
      %v462 = vadd.f32 %v461, 0.5
      %v463 = vadd.f32 %v396, %v436
      %v464 = vmul.f32 %v463, 0.5
      %v465 = vtanh.pop %v464
      %v466 = vmul.f32 %v465, 0.5
      %v467 = vadd.f32 %v466, 0.5
      %v468 = vadd.f32 %v456, %v310
      %v469 = vmul.f32 %v462, %v468
      %v470 = vadd.f32 %v397, %v469
      %v471 = vtanh.pop %v470
      %v472 = vsub.f32 1.0, %v467
      %v473 = vmul.f32 %v472, %v471
      %v474 = vmul.f32 %v467, %v393
      %v475 = vadd.f32 %v473, %v474
      %s476 = scalar_lea.vmem %s248, 48
      %v477 = vld [vmem:[%s476] sm:$0xff]
      %v478 = vld [vmem:[%s476 + $0x8] sm:$0xff]
      %v479 = vld [vmem:[%s476 + $0x10] sm:$0xff]
      %480 = vmatpush.msra.mxu0 %v305
      %481 = vmatpush.msra.mxu0 %v302
      %482 = vmatpush.msra.mxu0 %v299
      %483 = vmatpush.msra.mxu0 %v296
      %484 = vmatpush.msra.mxu0 %v293
      %485 = vmatpush.msra.mxu0 %v290
      %486 = vmatpush.msra.mxu0 %v287
      %487 = vmatpush.msra.mxu0 %v284
      %488 = vmatpush.msra.mxu0 %v281
      %489 = vmatpush.msra.mxu0 %v278
      %490 = vmatpush.msra.mxu0 %v275
      %491 = vmatpush.msra.mxu0 %v272
      %492 = vmatpush.msra.mxu0 %v269
      %493 = vmatpush.msra.mxu0 %v266
      %494 = vmatpush.msra.mxu0 %v263
      %495 = vmatpush.msra.mxu0 %v260
      %496 = vmatmul.f32.gmra.mxu0 %v475
      %v497 = vpop.f32.mrf.mxu0
      %v498 = vadd.f32 0.0, %v497
      %499 = vdwg.mxu0
      %500 = vmatpush.msra.mxu0 %v306
      %501 = vmatpush.msra.mxu0 %v303
      %502 = vmatpush.msra.mxu0 %v300
      %503 = vmatpush.msra.mxu0 %v297
      %504 = vmatpush.msra.mxu0 %v294
      %505 = vmatpush.msra.mxu0 %v291
      %506 = vmatpush.msra.mxu0 %v288
      %507 = vmatpush.msra.mxu0 %v285
      %508 = vmatpush.msra.mxu0 %v282
      %509 = vmatpush.msra.mxu0 %v279
      %510 = vmatpush.msra.mxu0 %v276
      %511 = vmatpush.msra.mxu0 %v273
      %512 = vmatpush.msra.mxu0 %v270
      %513 = vmatpush.msra.mxu0 %v267
      %514 = vmatpush.msra.mxu0 %v264
      %515 = vmatpush.msra.mxu0 %v261
      %516 = vmatmul.f32.gmra.mxu0 %v475
      %v517 = vpop.f32.mrf.mxu0
      %v518 = vadd.f32 0.0, %v517
      %519 = vdwg.mxu0
      %520 = vmatpush.msra.mxu0 %v307
      %521 = vmatpush.msra.mxu0 %v304
      %522 = vmatpush.msra.mxu0 %v301
      %523 = vmatpush.msra.mxu0 %v298
      %524 = vmatpush.msra.mxu0 %v295
      %525 = vmatpush.msra.mxu0 %v292
      %526 = vmatpush.msra.mxu0 %v289
      %527 = vmatpush.msra.mxu0 %v286
      %528 = vmatpush.msra.mxu0 %v283
      %529 = vmatpush.msra.mxu0 %v280
      %530 = vmatpush.msra.mxu0 %v277
      %531 = vmatpush.msra.mxu0 %v274
      %532 = vmatpush.msra.mxu0 %v271
      %533 = vmatpush.msra.mxu0 %v268
      %534 = vmatpush.msra.mxu0 %v265
      %535 = vmatpush.msra.mxu0 %v262
      %536 = vmatmul.f32.gmra.mxu0 %v475
      %v537 = vpop.f32.mrf.mxu0
      %v538 = vadd.f32 0.0, %v537
      %539 = vdwg.mxu0
      %v540 = vadd.f32 %v477, %v498
      %v541 = vmul.f32 %v540, 0.5
      %v542 = vtanh.pop %v541
      %v543 = vmul.f32 %v542, 0.5
      %v544 = vadd.f32 %v543, 0.5
      %v545 = vadd.f32 %v478, %v518
      %v546 = vmul.f32 %v545, 0.5
      %v547 = vtanh.pop %v546
      %v548 = vmul.f32 %v547, 0.5
      %v549 = vadd.f32 %v548, 0.5
      %v550 = vadd.f32 %v538, %v310
      %v551 = vmul.f32 %v544, %v550
      %v552 = vadd.f32 %v479, %v551
      %v553 = vtanh.pop %v552
      %v554 = vsub.f32 1.0, %v549
      %v555 = vmul.f32 %v554, %v553
      %v556 = vmul.f32 %v549, %v475
      %v557 = vadd.f32 %v555, %v556
      %s558 = scalar_lea.vmem %s248, 72
      %v559 = vld [vmem:[%s558] sm:$0xff]
      %v560 = vld [vmem:[%s558 + $0x8] sm:$0xff]
      %v561 = vld [vmem:[%s558 + $0x10] sm:$0xff]
      %562 = vmatpush.msra.mxu0 %v305
      %563 = vmatpush.msra.mxu0 %v302
      %564 = vmatpush.msra.mxu0 %v299
      %565 = vmatpush.msra.mxu0 %v296
      %566 = vmatpush.msra.mxu0 %v293
      %567 = vmatpush.msra.mxu0 %v290
      %568 = vmatpush.msra.mxu0 %v287
      %569 = vmatpush.msra.mxu0 %v284
      %570 = vmatpush.msra.mxu0 %v281
      %571 = vmatpush.msra.mxu0 %v278
      %572 = vmatpush.msra.mxu0 %v275
      %573 = vmatpush.msra.mxu0 %v272
      %574 = vmatpush.msra.mxu0 %v269
      %575 = vmatpush.msra.mxu0 %v266
      %576 = vmatpush.msra.mxu0 %v263
      %577 = vmatpush.msra.mxu0 %v260
      %578 = vmatmul.f32.gmra.mxu0 %v557
      %v579 = vpop.f32.mrf.mxu0
      %v580 = vadd.f32 0.0, %v579
      %581 = vdwg.mxu0
      %582 = vmatpush.msra.mxu0 %v306
      %583 = vmatpush.msra.mxu0 %v303
      %584 = vmatpush.msra.mxu0 %v300
      %585 = vmatpush.msra.mxu0 %v297
      %586 = vmatpush.msra.mxu0 %v294
      %587 = vmatpush.msra.mxu0 %v291
      %588 = vmatpush.msra.mxu0 %v288
      %589 = vmatpush.msra.mxu0 %v285
      %590 = vmatpush.msra.mxu0 %v282
      %591 = vmatpush.msra.mxu0 %v279
      %592 = vmatpush.msra.mxu0 %v276
      %593 = vmatpush.msra.mxu0 %v273
      %594 = vmatpush.msra.mxu0 %v270
      %595 = vmatpush.msra.mxu0 %v267
      %596 = vmatpush.msra.mxu0 %v264
      %597 = vmatpush.msra.mxu0 %v261
      %598 = vmatmul.f32.gmra.mxu0 %v557
      %v599 = vpop.f32.mrf.mxu0
      %v600 = vadd.f32 0.0, %v599
      %601 = vdwg.mxu0
      %602 = vmatpush.msra.mxu0 %v307
      %603 = vmatpush.msra.mxu0 %v304
      %604 = vmatpush.msra.mxu0 %v301
      %605 = vmatpush.msra.mxu0 %v298
      %606 = vmatpush.msra.mxu0 %v295
      %607 = vmatpush.msra.mxu0 %v292
      %608 = vmatpush.msra.mxu0 %v289
      %609 = vmatpush.msra.mxu0 %v286
      %610 = vmatpush.msra.mxu0 %v283
      %611 = vmatpush.msra.mxu0 %v280
      %612 = vmatpush.msra.mxu0 %v277
      %613 = vmatpush.msra.mxu0 %v274
      %614 = vmatpush.msra.mxu0 %v271
      %615 = vmatpush.msra.mxu0 %v268
      %616 = vmatpush.msra.mxu0 %v265
      %617 = vmatpush.msra.mxu0 %v262
      %618 = vmatmul.f32.gmra.mxu0 %v557
      %v619 = vpop.f32.mrf.mxu0
      %v620 = vadd.f32 0.0, %v619
      %621 = vdwg.mxu0
      %v622 = vadd.f32 %v559, %v580
      %v623 = vmul.f32 %v622, 0.5
      %v624 = vtanh.pop %v623
      %v625 = vmul.f32 %v624, 0.5
      %v626 = vadd.f32 %v625, 0.5
      %v627 = vadd.f32 %v560, %v600
      %v628 = vmul.f32 %v627, 0.5
      %v629 = vtanh.pop %v628
      %v630 = vmul.f32 %v629, 0.5
      %v631 = vadd.f32 %v630, 0.5
      %v632 = vadd.f32 %v620, %v310
      %v633 = vmul.f32 %v626, %v632
      %v634 = vadd.f32 %v561, %v633
      %v635 = vtanh.pop %v634
      %v636 = vsub.f32 1.0, %v631
      %v637 = vmul.f32 %v636, %v635
      %v638 = vmul.f32 %v631, %v557
      %v639 = vadd.f32 %v637, %v638
      %640 = vst [vmem:[#allocation2] sm:$0xff] %v639
      %p641 = scmp.eq.s32.totalorder %s21, 1
      // Predicated region
      $region45: #{rnn_gru_forward.3} parent=39 // pred_check
        %p642 = pneg %p641
      $region46: #{rnn_gru_forward.3} parent=39 // pred_check_branch
        %644 = sbr.rel (%p642) target = $region48
      $region47: #{rnn_gru_forward.3} parent=39 // pred_region
        %v645 = vld [vmem:[%s3] sm:$0xff]
        %v646 = vld [vmem:[%s3 + $0x8] sm:$0xff]
        %v647 = vld [vmem:[%s3 + $0x10] sm:$0xff]
        %v648 = vld [vmem:[%s3 + $0x18] sm:$0xff]
        %v649 = vld [vmem:[%s3 + $0x20] sm:$0xff]
        %v650 = vld [vmem:[%s3 + $0x28] sm:$0xff]
        %v651 = vld [vmem:[%s3 + $0x30] sm:$0xff]
        %v652 = vld [vmem:[%s3 + $0x38] sm:$0xff]
        %v653 = vld [vmem:[%s3 + $0x40] sm:$0xff]
        %v654 = vld [vmem:[%s3 + $0x48] sm:$0xff]
        %v655 = vld [vmem:[%s3 + $0x50] sm:$0xff]
        %v656 = vld [vmem:[%s3 + $0x58] sm:$0xff]
        %v657 = vld [vmem:[%s3 + $0x60] sm:$0xff]
        %v658 = vld [vmem:[%s3 + $0x68] sm:$0xff]
        %v659 = vld [vmem:[%s3 + $0x70] sm:$0xff]
        %v660 = vld [vmem:[%s3 + $0x78] sm:$0xff]
        %v661 = vld [vmem:[%s4] sm:$0x1]
        %v663 = vperm.slane %v661, 0
        %665 = vmatpush.msra.mxu0 %v660
        %666 = vmatpush.msra.mxu0 %v659
        %667 = vmatpush.msra.mxu0 %v658
        %668 = vmatpush.msra.mxu0 %v657
        %669 = vmatpush.msra.mxu0 %v656
        %670 = vmatpush.msra.mxu0 %v655
        %671 = vmatpush.msra.mxu0 %v654
        %672 = vmatpush.msra.mxu0 %v653
        %673 = vmatpush.msra.mxu0 %v652
        %674 = vmatpush.msra.mxu0 %v651
        %675 = vmatpush.msra.mxu0 %v650
        %676 = vmatpush.msra.mxu0 %v649
        %677 = vmatpush.msra.mxu0 %v648
        %678 = vmatpush.msra.mxu0 %v647
        %679 = vmatpush.msra.mxu0 %v646
        %680 = vmatpush.msra.mxu0 %v645
        %681 = vmatmul.f32.gmra.mxu0 %v639
        %v682 = vpop.f32.mrf.mxu0
        %v683 = vadd.f32 %v663, %v682
        %684 = vdwg.mxu0
        %v685 = vxor.u32 %v683, 2147483648
        %v686 = vmul.f32 %v685, 1.442695
        %v687 = vpow.pop %v686
        %v688 = vadd.f32 %v687, 1.0
        %v689 = vrcp.pop %v688
        %v690 = vmul.f32 %v688, %v689
        %v691 = vsub.f32 1.0, %v690
        %v692 = vmul.f32 %v689, %v691
        %v693 = vadd.f32 %v689, %v692
        %vm694 = vweird.f32 %v688
        %vm695 = vweird.f32 %v689
        %vm696 = vmor %vm694, %vm695
        %v697 = vsel %vm696, %v689, %v693
        %v698 = vand.u32 2147483647, %v688
        %vm699 = vcmp.eq.f32.partialorder %v698, 8.507059e+37
        %v700 = vand.u32 %v688, 2147483648
        %v701 = vor.u32 1.1754944e-38, %v700
        %v702 = vsel %vm699, %v701, %v697
        %v703 = vmul.f32 1.0, %v702
        %704 = vst [vmem:[%s253] sm:$0xff] %v703
      $region48: #{rnn_gru_forward.3} parent=39 // pred_fallthru
        _
      %p705 = scmp.lt.s32.totalorder %s20, 0
      %s706 = scalar_select %p705, %s20, 0
      %s707 = smul.addr %s706, 8
      %s708 = scalar_lea.vmem %s5, %s707
      // Predicated region
      $region49: #{rnn_gru_forward.3} parent=39 // pred_check
        %p709 = pneg %p158
      $region50: #{rnn_gru_forward.3} parent=39 // pred_check_branch
        %711 = sbr.rel (%p709) target = $region52
      $region51: #{rnn_gru_forward.3} parent=39 // pred_region
        _
      $region52: #{rnn_gru_forward.3} parent=39 // pred_fallthru
        _
      // Predicated region
      $region53: #{rnn_gru_forward.3} parent=39 // pred_check
        %p712 = pneg %p158
      $region54: #{rnn_gru_forward.3} parent=39 // pred_check_branch
        %714 = sbr.rel (%p712) target = $region56
      $region55: #{rnn_gru_forward.3} parent=39 // pred_region
        %p715 = scmp.lt.s32.totalorder %s20, 0
        %s716 = scalar_select %p715, %s20, 0
        %s717 = smul.addr %s716, 8
        %s718 = scalar_lea.vmem %s5, %s717
      $region56: #{rnn_gru_forward.3} parent=39 // pred_fallthru
        _
    $region40: #{rnn_gru_forward.3} parent=5 // pred_fallthru
      _
    %p719 = scmp.le.s32.totalorder 2, %s11
    // Predicated region
    $region57: #{rnn_gru_forward.3} parent=5 // pred_check
      %p720 = pneg %p719
    $region58: #{rnn_gru_forward.3} parent=5 // pred_check_branch
      %722 = sbr.rel (%p720) target = $region60
    $region59: #{rnn_gru_forward.3} parent=5 // pred_region
      %s723 = ssub.s32 %s11, 2
    $region60: #{rnn_gru_forward.3} parent=5 // pred_fallthru
      _
  $region6: #{rnn_gru_forward.3} parent=0 // loop_footer
    %s15 = sadd.s32 1, %s11
  $region7: #{rnn_gru_forward.3} parent=0 // loop_footer_branch
    %10 = sbr.rel target = $region3
  $region8: #{rnn_gru_forward.3} parent=0 // loop_exit
    _

// kernel: rnn_gru_forward.2
$region0: #{rnn_gru_forward.2}
  #allocation0 [shape = 'u32[]', space=smem, size = 0x4, offset = 0x4, fixed_abs, tag = 'smem constant byte address 0x4 - core index']
  #allocation1 [shape = 'u32[72,128]{1,0:T(1,128)}', space=vmem, size = 0x9000, scoped, tag = 'internal scratch']
  %s0 = inlined_call_operand.vmem [shape: f32[64,128], index: 0, kind: input, shape index: {}]
  %s1 = inlined_call_operand.vmem [shape: f32[128,384], index: 1, kind: input, shape index: {}]
  %s2 = inlined_call_operand.vmem [shape: f32[1,384], index: 2, kind: input, shape index: {}]
  %s3 = inlined_call_operand.vmem [shape: f32[64,384], index: 3, kind: output, shape index: {}]
  %s4 = sld [smem:[#allocation0]]
  $region117: #{rnn_gru_forward.2} parent=0
    _
  %s6 = ssub.s32 1, %s4
  %s7 = scalar_select 0, %s6, %s4
  $region1: #{rnn_gru_forward.2} parent=0
    #allocation2 [shape = 'u8[131072]{0}', space=vmem, size = 0x20000, scoped, tag = 'input window, operand 1']
    #allocation3 [shape = 'u8[65536]{0}', space=vmem, size = 0x10000, scoped, tag = 'output window, operand 0']
    loop: start=0, step=1, limit=5
    $region2: #{rnn_gru_forward.2} parent=1 // loop_pre_header
      _
    $region3: #{rnn_gru_forward.2} parent=1 // loop_header
      %s9 = sphi 0, %s13
      %p10 = scmp.ge.s32.totalorder %s9, 5
      %s16 = sphi 0, %s28
      %s17 = sphi 0, %s24
      %s18 = sphi 0, %s16
      %s19 = sphi 0, %s17
      %s20 = sphi 0, %s18
      %s21 = sphi 0, %s19
      %s31 = sphi 0, %s33
      %s34 = sphi 0, %s31
      %s35 = sphi 0, %s34
      %s51 = sphi 0, %s35
      %s57 = sphi 0, %s59
      %s60 = sphi 0, %s57
      %s61 = sphi 0, %s60
      %s77 = sphi 0, %s61
      %s83 = sphi 0, %s85
      %s86 = sphi 0, %s83
      %s87 = sphi 0, %s86
      %s103 = sphi 0, %s87
      %s111 = sphi 0, %s113
      %s114 = sphi 0, %s111
      %s115 = sphi 0, %s114
      %s131 = sphi 0, %s115
    $region4: #{rnn_gru_forward.2} parent=1 // loop_header_branch
      %12 = sbr.rel (%p10) target = $region8
    $region5: #{rnn_gru_forward.2} parent=1 // loop_body
      %s14 = ssub.s32 %s9, 1
      %s15 = ssub.s32 %s9, 2
      %s22 = sadd.s32 1, %s17
      %p23 = scmp.ge.s32.totalorder %s22, 3
      %s24 = scalar_select %p23, 0, %s22
      %s25 = sadd.s32 1, %s16
      %s26 = scalar_select %p23, %s25, %s16
      %p27 = scmp.ge.s32.totalorder %s26, 1
      %s28 = scalar_select %p27, 0, %s26
      %s29 = ssub.s32 %s16, %s28
      %p30 = scmp.eq.s32.totalorder %s29, 0
      %s32 = sadd.s32 %s31, 1
      %s33 = scalar_select %p30, %s31, %s32
      %p36 = pneg %p30
      %p37 = scmp.eq.s32.totalorder %s9, 2
      %p38 = por %p36, %p37
      %p39 = scmp.ne.s32.totalorder %s31, %s34
      %p40 = scmp.eq.s32.totalorder %s9, 0
      %p41 = por %p39, %p40
      %p42 = scmp.ne.s32.totalorder %s31, %s34
      %p43 = scmp.eq.s32.totalorder %s14, 2
      %p44 = por %p42, %p43
      %p45 = scmp.ne.s32.totalorder %s34, %s35
      %p46 = scmp.eq.s32.totalorder %s14, 0
      %p47 = por %p45, %p46
      %p48 = scmp.ne.s32.totalorder %s34, %s35
      %p49 = scmp.eq.s32.totalorder %s15, 2
      %p50 = por %p48, %p49
      %p52 = scmp.ne.s32.totalorder %s35, %s51
      %p53 = scmp.eq.s32.totalorder %s15, 0
      %p54 = por %p52, %p53
      %s55 = ssub.s32 %s17, %s24
      %p56 = scmp.eq.s32.totalorder %s55, 0
      %s58 = sadd.s32 %s57, 1
      %s59 = scalar_select %p56, %s57, %s58
      %p62 = pneg %p56
      %p63 = scmp.eq.s32.totalorder %s9, 2
      %p64 = por %p62, %p63
      %p65 = scmp.ne.s32.totalorder %s57, %s60
      %p66 = scmp.eq.s32.totalorder %s9, 0
      %p67 = por %p65, %p66
      %p68 = scmp.ne.s32.totalorder %s57, %s60
      %p69 = scmp.eq.s32.totalorder %s14, 2
      %p70 = por %p68, %p69
      %p71 = scmp.ne.s32.totalorder %s60, %s61
      %p72 = scmp.eq.s32.totalorder %s14, 0
      %p73 = por %p71, %p72
      %p74 = scmp.ne.s32.totalorder %s60, %s61
      %p75 = scmp.eq.s32.totalorder %s15, 2
      %p76 = por %p74, %p75
      %p78 = scmp.ne.s32.totalorder %s61, %s77
      %p79 = scmp.eq.s32.totalorder %s15, 0
      %p80 = por %p78, %p79
      %s81 = ssub.s32 %s17, %s24
      %p82 = scmp.eq.s32.totalorder %s81, 0
      %s84 = sadd.s32 %s83, 1
      %s85 = scalar_select %p82, %s83, %s84
      %p88 = pneg %p82
      %p89 = scmp.eq.s32.totalorder %s9, 2
      %p90 = por %p88, %p89
      %p91 = scmp.ne.s32.totalorder %s83, %s86
      %p92 = scmp.eq.s32.totalorder %s9, 0
      %p93 = por %p91, %p92
      %p94 = scmp.ne.s32.totalorder %s83, %s86
      %p95 = scmp.eq.s32.totalorder %s14, 2
      %p96 = por %p94, %p95
      %p97 = scmp.ne.s32.totalorder %s86, %s87
      %p98 = scmp.eq.s32.totalorder %s14, 0
      %p99 = por %p97, %p98
      %p100 = scmp.ne.s32.totalorder %s86, %s87
      %p101 = scmp.eq.s32.totalorder %s15, 2
      %p102 = por %p100, %p101
      %p104 = scmp.ne.s32.totalorder %s87, %s103
      %p105 = scmp.eq.s32.totalorder %s15, 0
      %p106 = por %p104, %p105
      %s107 = ssub.s32 %s16, %s28
      %s108 = ssub.s32 %s17, %s24
      %s109 = sor.u32 %s107, %s108
      %p110 = scmp.eq.s32.totalorder %s109, 0
      %s112 = sadd.s32 %s111, 1
      %s113 = scalar_select %p110, %s111, %s112
      %p116 = pneg %p110
      %p117 = scmp.eq.s32.totalorder %s9, 2
      %p118 = por %p116, %p117
      %p119 = scmp.ne.s32.totalorder %s111, %s114
      %p120 = scmp.eq.s32.totalorder %s9, 0
      %p121 = por %p119, %p120
      %p122 = scmp.ne.s32.totalorder %s111, %s114
      %p123 = scmp.eq.s32.totalorder %s14, 2
      %p124 = por %p122, %p123
      %p125 = scmp.ne.s32.totalorder %s114, %s115
      %p126 = scmp.eq.s32.totalorder %s14, 0
      %p127 = por %p125, %p126
      %p128 = scmp.ne.s32.totalorder %s114, %s115
      %p129 = scmp.eq.s32.totalorder %s15, 2
      %p130 = por %p128, %p129
      %p132 = scmp.ne.s32.totalorder %s115, %s131
      %p133 = scmp.eq.s32.totalorder %s15, 0
      %p134 = por %p132, %p133
      %p135 = scmp.le.s32.totalorder 1, %s9
      %p136 = scmp.lt.s32.totalorder %s9, 4
      %p137 = pnand %p135, %p136
      %p138 = pneg %p137
      // Predicated region
      $region9: #{rnn_gru_forward.2} parent=5 // pred_check
        _
      $region10: #{rnn_gru_forward.2} parent=5 // pred_check_branch
        %140 = sbr.rel (%p137) target = $region12
      $region11: #{rnn_gru_forward.2} parent=5 // pred_region
        %s141 = ssub.s32 %s9, 1
        // Predicated region
        $region13: #{rnn_gru_forward.2} parent=11 // pred_check
          %p142 = pneg %p47
        $region14: #{rnn_gru_forward.2} parent=11 // pred_check_branch
          %144 = sbr.rel (%p142) target = $region16
        $region15: #{rnn_gru_forward.2} parent=11 // pred_region
          %s145 = smul.u32 8, %s18
          %p146 = scmp.lt.s32.totalorder %s145, 7
          %s147 = scalar_select %p146, %s145, 7
          %s148 = smul.addr %s147, 8
          %s149 = scalar_lea.vmem %s0, %s148
          %s150 = smul.u32 8, %s18
        $region16: #{rnn_gru_forward.2} parent=11 // pred_fallthru
          _
      $region12: #{rnn_gru_forward.2} parent=5 // pred_fallthru
        _
      %p151 = scmp.lt.s32.totalorder %s9, 3
      // Predicated region
      $region17: #{rnn_gru_forward.2} parent=5 // pred_check
        %p152 = pneg %p151
      $region18: #{rnn_gru_forward.2} parent=5 // pred_check_branch
        %154 = sbr.rel (%p152) target = $region20
      $region19: #{rnn_gru_forward.2} parent=5 // pred_region
        // Predicated region
        $region21: #{rnn_gru_forward.2} parent=19 // pred_check
          %p155 = pneg %p67
        $region22: #{rnn_gru_forward.2} parent=19 // pred_check_branch
          %157 = sbr.rel (%p155) target = $region24
        $region23: #{rnn_gru_forward.2} parent=19 // pred_region
          %s158 = sand.u32 %s57, 1
          %s159 = sand.u32 %s57, 1
          %s160 = smul.addr %s159, 128
          %s161 = scalar_lea.vmem [#allocation2], %s160
          %s162 = smul.addr %s17, 8
          %s163 = scalar_lea.vmem %s1, %s162
          // Predicated region
          $region25: #{rnn_gru_forward.2} parent=23 // pred_check
            _
          $region26: #{rnn_gru_forward.2} parent=23 // pred_check_branch
            %165 = sbr.rel (0) target = $region28
          $region27: #{rnn_gru_forward.2} parent=23 // pred_region
            // Predicated region
            $region29: #{rnn_gru_forward.2} parent=27 // pred_check
              _
            $region30: #{rnn_gru_forward.2} parent=27 // pred_check_branch
              %167 = sbr.rel (0) target = $region32
            $region31: #{rnn_gru_forward.2} parent=27 // pred_region
              // Predicated region
              $region44: #{rnn_gru_forward.2} parent=31 // pred_check
                _
              $region45: #{rnn_gru_forward.2} parent=31 // pred_check_branch
                %213 = sbr.rel (0) target = $region47
              $region46: #{rnn_gru_forward.2} parent=31 // pred_region
                loop: start=0, step=1, limit=1
                $region48: #{rnn_gru_forward.2} parent=46 // loop_pre_header
                  _
                $region49: #{rnn_gru_forward.2} parent=46 // loop_header
                  %s215 = sphi 0, %s219
                  %p216 = scmp.ge.s32.totalorder %s215, 1
                  %s220 = sphi %s163, %s163
                  %s221 = sphi %s161, %s161
                $region50: #{rnn_gru_forward.2} parent=46 // loop_header_branch
                  %218 = sbr.rel (%p216) target = $region54
                $region51: #{rnn_gru_forward.2} parent=46 // loop_body
                  %v222 = vld [vmem:[%s220] sm:$0xff]
                  %223 = vst [vmem:[%s221] sm:$0xff] %v222
                  %v224 = vld [vmem:[%s220 + $0x18] sm:$0xff]
                  %225 = vst [vmem:[%s221 + $0x8] sm:$0xff] %v224
                  %v226 = vld [vmem:[%s220 + $0x30] sm:$0xff]
                  %227 = vst [vmem:[%s221 + $0x10] sm:$0xff] %v226
                  %v228 = vld [vmem:[%s220 + $0x48] sm:$0xff]
                  %229 = vst [vmem:[%s221 + $0x18] sm:$0xff] %v228
                  %v230 = vld [vmem:[%s220 + $0x60] sm:$0xff]
                  %231 = vst [vmem:[%s221 + $0x20] sm:$0xff] %v230
                  %v232 = vld [vmem:[%s220 + $0x78] sm:$0xff]
                  %233 = vst [vmem:[%s221 + $0x28] sm:$0xff] %v232
                  %v234 = vld [vmem:[%s220 + $0x90] sm:$0xff]
                  %235 = vst [vmem:[%s221 + $0x30] sm:$0xff] %v234
                  %v236 = vld [vmem:[%s220 + $0xa8] sm:$0xff]
                  %237 = vst [vmem:[%s221 + $0x38] sm:$0xff] %v236
                  %v238 = vld [vmem:[%s220 + $0xc0] sm:$0xff]
                  %239 = vst [vmem:[%s221 + $0x40] sm:$0xff] %v238
                  %v240 = vld [vmem:[%s220 + $0xd8] sm:$0xff]
                  %241 = vst [vmem:[%s221 + $0x48] sm:$0xff] %v240
                  %v242 = vld [vmem:[%s220 + $0xf0] sm:$0xff]
                  %243 = vst [vmem:[%s221 + $0x50] sm:$0xff] %v242
                  %v244 = vld [vmem:[%s220 + $0x108] sm:$0xff]
                  %245 = vst [vmem:[%s221 + $0x58] sm:$0xff] %v244
                  %v246 = vld [vmem:[%s220 + $0x120] sm:$0xff]
                  %247 = vst [vmem:[%s221 + $0x60] sm:$0xff] %v246
                  %v248 = vld [vmem:[%s220 + $0x138] sm:$0xff]
                  %249 = vst [vmem:[%s221 + $0x68] sm:$0xff] %v248
                  %v250 = vld [vmem:[%s220 + $0x150] sm:$0xff]
                  %251 = vst [vmem:[%s221 + $0x70] sm:$0xff] %v250
                  %v252 = vld [vmem:[%s220 + $0x168] sm:$0xff]
                  %253 = vst [vmem:[%s221 + $0x78] sm:$0xff] %v252
                $region52: #{rnn_gru_forward.2} parent=46 // loop_footer
                  %s219 = sadd.s32 1, %s215
                $region53: #{rnn_gru_forward.2} parent=46 // loop_footer_branch
                  %214 = sbr.rel target = $region49
                $region54: #{rnn_gru_forward.2} parent=46 // loop_exit
                  _
              $region47: #{rnn_gru_forward.2} parent=31 // pred_fallthru
                _
              // Predicated region
              $region55: #{rnn_gru_forward.2} parent=31 // pred_check
                _
              $region56: #{rnn_gru_forward.2} parent=31 // pred_check_branch
                %255 = sbr.rel target = $region58
              $region57: #{rnn_gru_forward.2} parent=31 // pred_region
                _
              $region58: #{rnn_gru_forward.2} parent=31 // pred_fallthru
                _
            $region32: #{rnn_gru_forward.2} parent=27 // pred_fallthru
              _
            // Predicated region
            $region33: #{rnn_gru_forward.2} parent=27 // pred_check
              _
            $region34: #{rnn_gru_forward.2} parent=27 // pred_check_branch
              %169 = sbr.rel target = $region36
            $region35: #{rnn_gru_forward.2} parent=27 // pred_region
              %s171 = ssub.s32 256, 1
              loop: start=0, step=1, limit=1
              $region37: #{rnn_gru_forward.2} parent=35 // loop_pre_header
                _
              $region38: #{rnn_gru_forward.2} parent=35 // loop_header
                %s173 = sphi 0, %s177
                %p174 = scmp.ge.s32.totalorder %s173, 1
                %s178 = sphi %s163, %s163
                %s179 = sphi %s161, %s161
              $region39: #{rnn_gru_forward.2} parent=35 // loop_header_branch
                %176 = sbr.rel (%p174) target = $region43
              $region40: #{rnn_gru_forward.2} parent=35 // loop_body
                %v180 = vld [vmem:[%s178] sm:%s171]
                %181 = vst [vmem:[%s179] sm:%s171] %v180
                %v182 = vld [vmem:[%s178 + $0x18] sm:%s171]
                %183 = vst [vmem:[%s179 + $0x8] sm:%s171] %v182
                %v184 = vld [vmem:[%s178 + $0x30] sm:%s171]
                %185 = vst [vmem:[%s179 + $0x10] sm:%s171] %v184
                %v186 = vld [vmem:[%s178 + $0x48] sm:%s171]
                %187 = vst [vmem:[%s179 + $0x18] sm:%s171] %v186
                %v188 = vld [vmem:[%s178 + $0x60] sm:%s171]
                %189 = vst [vmem:[%s179 + $0x20] sm:%s171] %v188
                %v190 = vld [vmem:[%s178 + $0x78] sm:%s171]
                %191 = vst [vmem:[%s179 + $0x28] sm:%s171] %v190
                %v192 = vld [vmem:[%s178 + $0x90] sm:%s171]
                %193 = vst [vmem:[%s179 + $0x30] sm:%s171] %v192
                %v194 = vld [vmem:[%s178 + $0xa8] sm:%s171]
                %195 = vst [vmem:[%s179 + $0x38] sm:%s171] %v194
                %v196 = vld [vmem:[%s178 + $0xc0] sm:%s171]
                %197 = vst [vmem:[%s179 + $0x40] sm:%s171] %v196
                %v198 = vld [vmem:[%s178 + $0xd8] sm:%s171]
                %199 = vst [vmem:[%s179 + $0x48] sm:%s171] %v198
                %v200 = vld [vmem:[%s178 + $0xf0] sm:%s171]
                %201 = vst [vmem:[%s179 + $0x50] sm:%s171] %v200
                %v202 = vld [vmem:[%s178 + $0x108] sm:%s171]
                %203 = vst [vmem:[%s179 + $0x58] sm:%s171] %v202
                %v204 = vld [vmem:[%s178 + $0x120] sm:%s171]
                %205 = vst [vmem:[%s179 + $0x60] sm:%s171] %v204
                %v206 = vld [vmem:[%s178 + $0x138] sm:%s171]
                %207 = vst [vmem:[%s179 + $0x68] sm:%s171] %v206
                %v208 = vld [vmem:[%s178 + $0x150] sm:%s171]
                %209 = vst [vmem:[%s179 + $0x70] sm:%s171] %v208
                %v210 = vld [vmem:[%s178 + $0x168] sm:%s171]
                %211 = vst [vmem:[%s179 + $0x78] sm:%s171] %v210
              $region41: #{rnn_gru_forward.2} parent=35 // loop_footer
                %s177 = sadd.s32 1, %s173
              $region42: #{rnn_gru_forward.2} parent=35 // loop_footer_branch
                %172 = sbr.rel target = $region38
              $region43: #{rnn_gru_forward.2} parent=35 // loop_exit
                _
            $region36: #{rnn_gru_forward.2} parent=27 // pred_fallthru
              _
          $region28: #{rnn_gru_forward.2} parent=23 // pred_fallthru
            _
          %256 = vnop
        $region24: #{rnn_gru_forward.2} parent=19 // pred_fallthru
          _
        // Predicated region
        $region59: #{rnn_gru_forward.2} parent=19 // pred_check
          %p257 = pneg %p93
        $region60: #{rnn_gru_forward.2} parent=19 // pred_check_branch
          %259 = sbr.rel (%p257) target = $region62
        $region61: #{rnn_gru_forward.2} parent=19 // pred_region
          %p260 = scmp.lt.s32.totalorder %s17, 2
          %s261 = scalar_select %p260, %s17, 2
          %s262 = scalar_lea.vmem %s2, %s261
        $region62: #{rnn_gru_forward.2} parent=19 // pred_fallthru
          _
      $region20: #{rnn_gru_forward.2} parent=5 // pred_fallthru
        _
      %p263 = scmp.le.s32.totalorder 1, %s9
      %p264 = scmp.lt.s32.totalorder %s9, 4
      %p265 = pnand %p263, %p264
      %p266 = pneg %p265
      // Predicated region
      $region63: #{rnn_gru_forward.2} parent=5 // pred_check
        _
      $region64: #{rnn_gru_forward.2} parent=5 // pred_check_branch
        %268 = sbr.rel (%p265) target = $region66
      $region65: #{rnn_gru_forward.2} parent=5 // pred_region
        %s269 = ssub.s32 %s9, 1
        %s270 = sand.u32 %s60, 1
        %s271 = sand.u32 %s60, 1
        %s272 = smul.addr %s271, 128
        %s273 = scalar_lea.vmem [#allocation2], %s272
        // Predicated region
        $region67: #{rnn_gru_forward.2} parent=65 // pred_check
          %p274 = pneg %p73
        $region68: #{rnn_gru_forward.2} parent=65 // pred_check_branch
          %276 = sbr.rel (%p274) target = $region70
        $region69: #{rnn_gru_forward.2} parent=65 // pred_region
          _
        $region70: #{rnn_gru_forward.2} parent=65 // pred_fallthru
          _
        %s277 = smul.u32 8, %s18
        %p278 = scmp.lt.s32.totalorder %s277, 7
        %s279 = scalar_select %p278, %s277, 7
        %s280 = smul.addr %s279, 8
        %s281 = scalar_lea.vmem %s0, %s280
        %p282 = pneg %p47
        %p283 = pneg %p44
        %s284 = sand.u32 %s60, 1
        %s285 = sand.u32 %s60, 1
        %s286 = smul.addr %s285, 128
        %s287 = scalar_lea.vmem [#allocation2], %s286
        %p288 = pneg %p73
        %p289 = pneg %p70
        %p290 = scmp.lt.s32.totalorder %s19, 2
        %s291 = scalar_select %p290, %s19, 2
        %s292 = scalar_lea.vmem %s2, %s291
        %p293 = pneg %p99
        %p294 = pneg %p96
        %p295 = pneg %p127
        %p296 = pneg %p124
        %s297 = sand.u32 %s114, 1
        %s298 = sand.u32 %s114, 1
        %s299 = smul.addr %s298, 64
        %s300 = scalar_lea.vmem [#allocation3], %s299
        %s301 = smul.u32 8, %s18
        %p302 = scmp.lt.s32.totalorder %s301, 7
        %s303 = scalar_select %p302, %s301, 7
        %s304 = smul.addr %s303, 8
        %s305 = scalar_lea.vmem %s0, %s304
        %s306 = smul.u32 8, %s18
        %p307 = scmp.lt.s32.totalorder %s19, 2
        %s308 = scalar_select %p307, %s19, 2
        %s309 = scalar_lea.vmem %s2, %s308
        %s310 = smul.u32 8, %s18
        %v311 = vld [vmem:[%s305] sm:$0xff]
        %v312 = vld [vmem:[%s305 + $0x8] sm:$0xff]
        %v313 = vld [vmem:[%s305 + $0x10] sm:$0xff]
        %v314 = vld [vmem:[%s305 + $0x18] sm:$0xff]
        %v315 = vld [vmem:[%s305 + $0x20] sm:$0xff]
        %v316 = vld [vmem:[%s305 + $0x28] sm:$0xff]
        %v317 = vld [vmem:[%s305 + $0x30] sm:$0xff]
        %v318 = vld [vmem:[%s305 + $0x38] sm:$0xff]
        %v319 = vld [vmem:[%s273] sm:$0xff]
        %v320 = vld [vmem:[%s273 + $0x8] sm:$0xff]
        %v321 = vld [vmem:[%s273 + $0x10] sm:$0xff]
        %v322 = vld [vmem:[%s273 + $0x18] sm:$0xff]
        %v323 = vld [vmem:[%s273 + $0x20] sm:$0xff]
        %v324 = vld [vmem:[%s273 + $0x28] sm:$0xff]
        %v325 = vld [vmem:[%s273 + $0x30] sm:$0xff]
        %v326 = vld [vmem:[%s273 + $0x38] sm:$0xff]
        %v327 = vld [vmem:[%s273 + $0x40] sm:$0xff]
        %v328 = vld [vmem:[%s273 + $0x48] sm:$0xff]
        %v329 = vld [vmem:[%s273 + $0x50] sm:$0xff]
        %v330 = vld [vmem:[%s273 + $0x58] sm:$0xff]
        %v331 = vld [vmem:[%s273 + $0x60] sm:$0xff]
        %v332 = vld [vmem:[%s273 + $0x68] sm:$0xff]
        %v333 = vld [vmem:[%s273 + $0x70] sm:$0xff]
        %v334 = vld [vmem:[%s273 + $0x78] sm:$0xff]
        %v335 = vld [vmem:[%s309] sm:$0x1]
        %v337 = vperm.slane %v335, 0
        %339 = vmatpush.msra.mxu0 %v334
        %340 = vmatpush.msra.mxu0 %v333
        %341 = vmatpush.msra.mxu0 %v332
        %342 = vmatpush.msra.mxu0 %v331
        %343 = vmatpush.msra.mxu0 %v330
        %344 = vmatpush.msra.mxu0 %v329
        %345 = vmatpush.msra.mxu0 %v328
        %346 = vmatpush.msra.mxu0 %v327
        %347 = vmatpush.msra.mxu0 %v326
        %348 = vmatpush.msra.mxu0 %v325
        %349 = vmatpush.msra.mxu0 %v324
        %350 = vmatpush.msra.mxu0 %v323
        %351 = vmatpush.msra.mxu0 %v322
        %352 = vmatpush.msra.mxu0 %v321
        %353 = vmatpush.msra.mxu0 %v320
        %354 = vmatpush.msra.mxu0 %v319
        %355 = vmatmul.f32.gmra.mxu0 %v311
        %v356 = vpop.f32.mrf.mxu0
        %v357 = vadd.f32 %v337, %v356
        %358 = vmatmul.f32.gmra.mxu0 %v312
        %v359 = vpop.f32.mrf.mxu0
        %v360 = vadd.f32 %v337, %v359
        %361 = vmatmul.f32.gmra.mxu0 %v313
        %v362 = vpop.f32.mrf.mxu0
        %v363 = vadd.f32 %v337, %v362
        %364 = vmatmul.f32.gmra.mxu0 %v314
        %v365 = vpop.f32.mrf.mxu0
        %v366 = vadd.f32 %v337, %v365
        %367 = vmatmul.f32.gmra.mxu0 %v315
        %v368 = vpop.f32.mrf.mxu0
        %v369 = vadd.f32 %v337, %v368
        %370 = vmatmul.f32.gmra.mxu0 %v316
        %v371 = vpop.f32.mrf.mxu0
        %v372 = vadd.f32 %v337, %v371
        %373 = vmatmul.f32.gmra.mxu0 %v317
        %v374 = vpop.f32.mrf.mxu0
        %v375 = vadd.f32 %v337, %v374
        %376 = vmatmul.f32.gmra.mxu0 %v318
        %v377 = vpop.f32.mrf.mxu0
        %v378 = vadd.f32 %v337, %v377
        %379 = vdwg.mxu0
        %380 = vst [vmem:[%s300] sm:$0xff] %v357
        %381 = vst [vmem:[%s300 + $0x8] sm:$0xff] %v360
        %382 = vst [vmem:[%s300 + $0x10] sm:$0xff] %v363
        %383 = vst [vmem:[%s300 + $0x18] sm:$0xff] %v366
        %384 = vst [vmem:[%s300 + $0x20] sm:$0xff] %v369
        %385 = vst [vmem:[%s300 + $0x28] sm:$0xff] %v372
        %386 = vst [vmem:[%s300 + $0x30] sm:$0xff] %v375
        %387 = vst [vmem:[%s300 + $0x38] sm:$0xff] %v378
        %s388 = sand.u32 %s114, 1
        %s389 = sand.u32 %s114, 1
        %s390 = smul.addr %s389, 64
        %s391 = scalar_lea.vmem [#allocation3], %s390
        // Predicated region
        $region71: #{rnn_gru_forward.2} parent=65 // pred_check
          %p392 = pneg %p124
        $region72: #{rnn_gru_forward.2} parent=65 // pred_check_branch
          %394 = sbr.rel (%p392) target = $region74
        $region73: #{rnn_gru_forward.2} parent=65 // pred_region
          %s395 = smul.u32 8, %s18
          %s396 = smul.addr %s395, 3
          %s397 = sadd.s32 %s19, %s396
          %s398 = smul.addr %s397, 8
          %s399 = scalar_lea.vmem %s3, %s398
          // Predicated region
          $region75: #{rnn_gru_forward.2} parent=73 // pred_check
            _
          $region76: #{rnn_gru_forward.2} parent=73 // pred_check_branch
            %401 = sbr.rel (0) target = $region78
          $region77: #{rnn_gru_forward.2} parent=73 // pred_region
            // Predicated region
            $region79: #{rnn_gru_forward.2} parent=77 // pred_check
              _
            $region80: #{rnn_gru_forward.2} parent=77 // pred_check_branch
              %403 = sbr.rel (0) target = $region82
            $region81: #{rnn_gru_forward.2} parent=77 // pred_region
              // Predicated region
              $region94: #{rnn_gru_forward.2} parent=81 // pred_check
                _
              $region95: #{rnn_gru_forward.2} parent=81 // pred_check_branch
                %433 = sbr.rel (0) target = $region97
              $region96: #{rnn_gru_forward.2} parent=81 // pred_region
                loop: start=0, step=1, limit=1
                $region98: #{rnn_gru_forward.2} parent=96 // loop_pre_header
                  _
                $region99: #{rnn_gru_forward.2} parent=96 // loop_header
                  %s435 = sphi 0, %s439
                  %p436 = scmp.ge.s32.totalorder %s435, 1
                  %s440 = sphi %s391, %s391
                  %s441 = sphi %s399, %s399
                $region100: #{rnn_gru_forward.2} parent=96 // loop_header_branch
                  %438 = sbr.rel (%p436) target = $region104
                $region101: #{rnn_gru_forward.2} parent=96 // loop_body
                  %v442 = vld [vmem:[%s440] sm:$0xff]
                  %443 = vst [vmem:[%s441] sm:$0xff] %v442
                  %v444 = vld [vmem:[%s440 + $0x8] sm:$0xff]
                  %445 = vst [vmem:[%s441 + $0x18] sm:$0xff] %v444
                  %v446 = vld [vmem:[%s440 + $0x10] sm:$0xff]
                  %447 = vst [vmem:[%s441 + $0x30] sm:$0xff] %v446
                  %v448 = vld [vmem:[%s440 + $0x18] sm:$0xff]
                  %449 = vst [vmem:[%s441 + $0x48] sm:$0xff] %v448
                  %v450 = vld [vmem:[%s440 + $0x20] sm:$0xff]
                  %451 = vst [vmem:[%s441 + $0x60] sm:$0xff] %v450
                  %v452 = vld [vmem:[%s440 + $0x28] sm:$0xff]
                  %453 = vst [vmem:[%s441 + $0x78] sm:$0xff] %v452
                  %v454 = vld [vmem:[%s440 + $0x30] sm:$0xff]
                  %455 = vst [vmem:[%s441 + $0x90] sm:$0xff] %v454
                  %v456 = vld [vmem:[%s440 + $0x38] sm:$0xff]
                  %457 = vst [vmem:[%s441 + $0xa8] sm:$0xff] %v456
                $region102: #{rnn_gru_forward.2} parent=96 // loop_footer
                  %s439 = sadd.s32 1, %s435
                $region103: #{rnn_gru_forward.2} parent=96 // loop_footer_branch
                  %434 = sbr.rel target = $region99
                $region104: #{rnn_gru_forward.2} parent=96 // loop_exit
                  _
              $region97: #{rnn_gru_forward.2} parent=81 // pred_fallthru
                _
              // Predicated region
              $region105: #{rnn_gru_forward.2} parent=81 // pred_check
                _
              $region106: #{rnn_gru_forward.2} parent=81 // pred_check_branch
                %459 = sbr.rel target = $region108
              $region107: #{rnn_gru_forward.2} parent=81 // pred_region
                _
              $region108: #{rnn_gru_forward.2} parent=81 // pred_fallthru
                _
            $region82: #{rnn_gru_forward.2} parent=77 // pred_fallthru
              _
            // Predicated region
            $region83: #{rnn_gru_forward.2} parent=77 // pred_check
              _
            $region84: #{rnn_gru_forward.2} parent=77 // pred_check_branch
              %405 = sbr.rel target = $region86
            $region85: #{rnn_gru_forward.2} parent=77 // pred_region
              %s407 = ssub.s32 256, 1
              loop: start=0, step=1, limit=1
              $region87: #{rnn_gru_forward.2} parent=85 // loop_pre_header
                _
              $region88: #{rnn_gru_forward.2} parent=85 // loop_header
                %s409 = sphi 0, %s413
                %p410 = scmp.ge.s32.totalorder %s409, 1
                %s414 = sphi %s391, %s391
                %s415 = sphi %s399, %s399
              $region89: #{rnn_gru_forward.2} parent=85 // loop_header_branch
                %412 = sbr.rel (%p410) target = $region93
              $region90: #{rnn_gru_forward.2} parent=85 // loop_body
                %v416 = vld [vmem:[%s414] sm:%s407]
                %417 = vst [vmem:[%s415] sm:%s407] %v416
                %v418 = vld [vmem:[%s414 + $0x8] sm:%s407]
                %419 = vst [vmem:[%s415 + $0x18] sm:%s407] %v418
                %v420 = vld [vmem:[%s414 + $0x10] sm:%s407]
                %421 = vst [vmem:[%s415 + $0x30] sm:%s407] %v420
                %v422 = vld [vmem:[%s414 + $0x18] sm:%s407]
                %423 = vst [vmem:[%s415 + $0x48] sm:%s407] %v422
                %v424 = vld [vmem:[%s414 + $0x20] sm:%s407]
                %425 = vst [vmem:[%s415 + $0x60] sm:%s407] %v424
                %v426 = vld [vmem:[%s414 + $0x28] sm:%s407]
                %427 = vst [vmem:[%s415 + $0x78] sm:%s407] %v426
                %v428 = vld [vmem:[%s414 + $0x30] sm:%s407]
                %429 = vst [vmem:[%s415 + $0x90] sm:%s407] %v428
                %v430 = vld [vmem:[%s414 + $0x38] sm:%s407]
                %431 = vst [vmem:[%s415 + $0xa8] sm:%s407] %v430
              $region91: #{rnn_gru_forward.2} parent=85 // loop_footer
                %s413 = sadd.s32 1, %s409
              $region92: #{rnn_gru_forward.2} parent=85 // loop_footer_branch
                %408 = sbr.rel target = $region88
              $region93: #{rnn_gru_forward.2} parent=85 // loop_exit
                _
            $region86: #{rnn_gru_forward.2} parent=77 // pred_fallthru
              _
          $region78: #{rnn_gru_forward.2} parent=73 // pred_fallthru
            _
          %460 = vnop
        $region74: #{rnn_gru_forward.2} parent=65 // pred_fallthru
          _
      $region66: #{rnn_gru_forward.2} parent=5 // pred_fallthru
        _
      %p461 = scmp.le.s32.totalorder 2, %s9
      // Predicated region
      $region109: #{rnn_gru_forward.2} parent=5 // pred_check
        %p462 = pneg %p461
      $region110: #{rnn_gru_forward.2} parent=5 // pred_check_branch
        %464 = sbr.rel (%p462) target = $region112
      $region111: #{rnn_gru_forward.2} parent=5 // pred_region
        %s465 = ssub.s32 %s9, 2
        // Predicated region
        $region113: #{rnn_gru_forward.2} parent=111 // pred_check
          %p466 = pneg %p130
        $region114: #{rnn_gru_forward.2} parent=111 // pred_check_branch
          %468 = sbr.rel (%p466) target = $region116
        $region115: #{rnn_gru_forward.2} parent=111 // pred_region
          %s469 = sand.u32 %s115, 1
          %s470 = sand.u32 %s115, 1
          %s471 = smul.addr %s470, 64
          %s472 = scalar_lea.vmem [#allocation3], %s471
        $region116: #{rnn_gru_forward.2} parent=111 // pred_fallthru
          _
      $region112: #{rnn_gru_forward.2} parent=5 // pred_fallthru
        _
    $region6: #{rnn_gru_forward.2} parent=1 // loop_footer
      %s13 = sadd.s32 1, %s9
    $region7: #{rnn_gru_forward.2} parent=1 // loop_footer_branch
      %8 = sbr.rel target = $region3
    $region8: #{rnn_gru_forward.2} parent=1 // loop_exit
      _

// kernel: rnn_gru_forward.3
$region0: #{rnn_gru_forward.3}
  #allocation0 [shape = 'u32[]', space=smem, size = 0x4, offset = 0x4, fixed_abs, tag = 'smem constant byte address 0x4 - core index']
  #allocation1 [shape = 'u32[72,128]{1,0:T(1,128)}', space=vmem, size = 0x9000, scoped, tag = 'internal scratch']
  #allocation2 [shape = 'f32[8,128]{1,0:T(8,128)}', space=vmem, size = 0x1000, scoped, tag = 'scratch operand']
  %s0 = inlined_call_operand.vmem [shape: f32[8,8,384], index: 0, kind: input, shape index: {}]
  %s1 = inlined_call_operand.vmem [shape: f32[128,384], index: 1, kind: input, shape index: {}]
  %s2 = inlined_call_operand.vmem [shape: f32[1,128], index: 2, kind: input, shape index: {}]
  %s3 = inlined_call_operand.vmem [shape: f32[128,128], index: 3, kind: input, shape index: {}]
  %s4 = inlined_call_operand.vmem [shape: f32[1,128], index: 4, kind: input, shape index: {}]
  %s5 = inlined_call_operand.vmem [shape: f32[8,128], index: 5, kind: output, shape index: {}]
  %s6 = sld [smem:[#allocation0]]
  $region61: #{rnn_gru_forward.3} parent=0
    _
  %s8 = ssub.s32 1, %s6
  %s9 = scalar_select 0, %s8, %s6
  loop: start=0, step=1, limit=4
  $region2: #{rnn_gru_forward.3} parent=0 // loop_pre_header
    _
  $region3: #{rnn_gru_forward.3} parent=0 // loop_header
    %s11 = sphi 0, %s15
    %p12 = scmp.ge.s32.totalorder %s11, 4
    %s18 = sphi 0, %s30
    %s19 = sphi 0, %s26
    %s20 = sphi 0, %s18
    %s21 = sphi 0, %s19
    %s22 = sphi 0, %s20
    %s23 = sphi 0, %s21
    %s35 = sphi 0, %s37
    %s38 = sphi 0, %s35
    %s39 = sphi 0, %s38
    %s55 = sphi 0, %s39
    %s59 = sphi 0, %s59
    %s61 = sphi 0, %s59
    %s62 = sphi 0, %s61
    %s76 = sphi 0, %s62
    %s80 = sphi 0, %s80
    %s82 = sphi 0, %s80
    %s83 = sphi 0, %s82
    %s97 = sphi 0, %s83
    %s101 = sphi 0, %s101
    %s103 = sphi 0, %s101
    %s104 = sphi 0, %s103
    %s118 = sphi 0, %s104
    %s122 = sphi 0, %s122
    %s124 = sphi 0, %s122
    %s125 = sphi 0, %s124
    %s139 = sphi 0, %s125
    %s145 = sphi 0, %s147
    %s148 = sphi 0, %s145
    %s149 = sphi 0, %s148
    %s165 = sphi 0, %s149
  $region4: #{rnn_gru_forward.3} parent=0 // loop_header_branch
    %14 = sbr.rel (%p12) target = $region8
  $region5: #{rnn_gru_forward.3} parent=0 // loop_body
    %s16 = ssub.s32 %s11, 1
    %s17 = ssub.s32 %s11, 2
    %s24 = sadd.s32 1, %s19
    %p25 = scmp.ge.s32.totalorder %s24, 2
    %s26 = scalar_select %p25, 0, %s24
    %s27 = sadd.s32 1, %s18
    %s28 = scalar_select %p25, %s27, %s18
    %p29 = scmp.ge.s32.totalorder %s28, 1
    %s30 = scalar_select %p29, 0, %s28
    %s31 = ssub.s32 %s19, %s26
    %s32 = ssub.s32 %s18, %s30
    %s33 = sor.u32 %s31, %s32
    %p34 = scmp.eq.s32.totalorder %s33, 0
    %s36 = sadd.s32 %s35, 1
    %s37 = scalar_select %p34, %s35, %s36
    %p40 = pneg %p34
    %p41 = scmp.eq.s32.totalorder %s11, 1
    %p42 = por %p40, %p41
    %p43 = scmp.ne.s32.totalorder %s35, %s38
    %p44 = scmp.eq.s32.totalorder %s11, 0
    %p45 = por %p43, %p44
    %p46 = scmp.ne.s32.totalorder %s35, %s38
    %p47 = scmp.eq.s32.totalorder %s16, 1
    %p48 = por %p46, %p47
    %p49 = scmp.ne.s32.totalorder %s38, %s39
    %p50 = scmp.eq.s32.totalorder %s16, 0
    %p51 = por %p49, %p50
    %p52 = scmp.ne.s32.totalorder %s38, %s39
    %p53 = scmp.eq.s32.totalorder %s17, 1
    %p54 = por %p52, %p53
    %p56 = scmp.ne.s32.totalorder %s39, %s55
    %p57 = scmp.eq.s32.totalorder %s17, 0
    %p58 = por %p56, %p57
    %s60 = sadd.s32 %s59, 1
    %p63 = scmp.eq.s32.totalorder %s11, 1
    %p64 = scmp.ne.s32.totalorder %s59, %s61
    %p65 = scmp.eq.s32.totalorder %s11, 0
    %p66 = por %p64, %p65
    %p67 = scmp.ne.s32.totalorder %s59, %s61
    %p68 = scmp.eq.s32.totalorder %s16, 1
    %p69 = por %p67, %p68
    %p70 = scmp.ne.s32.totalorder %s61, %s62
    %p71 = scmp.eq.s32.totalorder %s16, 0
    %p72 = por %p70, %p71
    %p73 = scmp.ne.s32.totalorder %s61, %s62
    %p74 = scmp.eq.s32.totalorder %s17, 1
    %p75 = por %p73, %p74
    %p77 = scmp.ne.s32.totalorder %s62, %s76
    %p78 = scmp.eq.s32.totalorder %s17, 0
    %p79 = por %p77, %p78
    %s81 = sadd.s32 %s80, 1
    %p84 = scmp.eq.s32.totalorder %s11, 1
    %p85 = scmp.ne.s32.totalorder %s80, %s82
    %p86 = scmp.eq.s32.totalorder %s11, 0
    %p87 = por %p85, %p86
    %p88 = scmp.ne.s32.totalorder %s80, %s82
    %p89 = scmp.eq.s32.totalorder %s16, 1
    %p90 = por %p88, %p89
    %p91 = scmp.ne.s32.totalorder %s82, %s83
    %p92 = scmp.eq.s32.totalorder %s16, 0
    %p93 = por %p91, %p92
    %p94 = scmp.ne.s32.totalorder %s82, %s83
    %p95 = scmp.eq.s32.totalorder %s17, 1
    %p96 = por %p94, %p95
    %p98 = scmp.ne.s32.totalorder %s83, %s97
    %p99 = scmp.eq.s32.totalorder %s17, 0
    %p100 = por %p98, %p99
    %s102 = sadd.s32 %s101, 1
    %p105 = scmp.eq.s32.totalorder %s11, 1
    %p106 = scmp.ne.s32.totalorder %s101, %s103
    %p107 = scmp.eq.s32.totalorder %s11, 0
    %p108 = por %p106, %p107
    %p109 = scmp.ne.s32.totalorder %s101, %s103
    %p110 = scmp.eq.s32.totalorder %s16, 1
    %p111 = por %p109, %p110
    %p112 = scmp.ne.s32.totalorder %s103, %s104
    %p113 = scmp.eq.s32.totalorder %s16, 0
    %p114 = por %p112, %p113
    %p115 = scmp.ne.s32.totalorder %s103, %s104
    %p116 = scmp.eq.s32.totalorder %s17, 1
    %p117 = por %p115, %p116
    %p119 = scmp.ne.s32.totalorder %s104, %s118
    %p120 = scmp.eq.s32.totalorder %s17, 0
    %p121 = por %p119, %p120
    %s123 = sadd.s32 %s122, 1
    %p126 = scmp.eq.s32.totalorder %s11, 1
    %p127 = scmp.ne.s32.totalorder %s122, %s124
    %p128 = scmp.eq.s32.totalorder %s11, 0
    %p129 = por %p127, %p128
    %p130 = scmp.ne.s32.totalorder %s122, %s124
    %p131 = scmp.eq.s32.totalorder %s16, 1
    %p132 = por %p130, %p131
    %p133 = scmp.ne.s32.totalorder %s124, %s125
    %p134 = scmp.eq.s32.totalorder %s16, 0
    %p135 = por %p133, %p134
    %p136 = scmp.ne.s32.totalorder %s124, %s125
    %p137 = scmp.eq.s32.totalorder %s17, 1
    %p138 = por %p136, %p137
    %p140 = scmp.ne.s32.totalorder %s125, %s139
    %p141 = scmp.eq.s32.totalorder %s17, 0
    %p142 = por %p140, %p141
    %s143 = ssub.s32 %s18, %s30
    %p144 = scmp.eq.s32.totalorder %s143, 0
    %s146 = sadd.s32 %s145, 1
    %s147 = scalar_select %p144, %s145, %s146
    %p150 = pneg %p144
    %p151 = scmp.eq.s32.totalorder %s11, 1
    %p152 = por %p150, %p151
    %p153 = scmp.ne.s32.totalorder %s145, %s148
    %p154 = scmp.eq.s32.totalorder %s11, 0
    %p155 = por %p153, %p154
    %p156 = scmp.ne.s32.totalorder %s145, %s148
    %p157 = scmp.eq.s32.totalorder %s16, 1
    %p158 = por %p156, %p157
    %p159 = scmp.ne.s32.totalorder %s148, %s149
    %p160 = scmp.eq.s32.totalorder %s16, 0
    %p161 = por %p159, %p160
    %p162 = scmp.ne.s32.totalorder %s148, %s149
    %p163 = scmp.eq.s32.totalorder %s17, 1
    %p164 = por %p162, %p163
    %p166 = scmp.ne.s32.totalorder %s149, %s165
    %p167 = scmp.eq.s32.totalorder %s17, 0
    %p168 = por %p166, %p167
    %p169 = scmp.le.s32.totalorder 1, %s11
    %p170 = scmp.lt.s32.totalorder %s11, 3
    %p171 = pnand %p169, %p170
    %p172 = pneg %p171
    // Predicated region
    $region9: #{rnn_gru_forward.3} parent=5 // pred_check
      _
    $region10: #{rnn_gru_forward.3} parent=5 // pred_check_branch
      %174 = sbr.rel (%p171) target = $region12
    $region11: #{rnn_gru_forward.3} parent=5 // pred_region
      %s175 = ssub.s32 %s11, 1
      // Predicated region
      $region13: #{rnn_gru_forward.3} parent=11 // pred_check
        %p176 = pneg %p72
      $region14: #{rnn_gru_forward.3} parent=11 // pred_check_branch
        %178 = sbr.rel (%p176) target = $region16
      $region15: #{rnn_gru_forward.3} parent=11 // pred_region
        _
      $region16: #{rnn_gru_forward.3} parent=11 // pred_fallthru
        _
      // Predicated region
      $region17: #{rnn_gru_forward.3} parent=11 // pred_check
        %p179 = pneg %p93
      $region18: #{rnn_gru_forward.3} parent=11 // pred_check_branch
        %181 = sbr.rel (%p179) target = $region20
      $region19: #{rnn_gru_forward.3} parent=11 // pred_region
        _
      $region20: #{rnn_gru_forward.3} parent=11 // pred_fallthru
        _
      // Predicated region
      $region21: #{rnn_gru_forward.3} parent=11 // pred_check
        %p182 = pneg %p114
      $region22: #{rnn_gru_forward.3} parent=11 // pred_check_branch
        %184 = sbr.rel (%p182) target = $region24
      $region23: #{rnn_gru_forward.3} parent=11 // pred_region
        _
      $region24: #{rnn_gru_forward.3} parent=11 // pred_fallthru
        _
      // Predicated region
      $region25: #{rnn_gru_forward.3} parent=11 // pred_check
        %p185 = pneg %p135
      $region26: #{rnn_gru_forward.3} parent=11 // pred_check_branch
        %187 = sbr.rel (%p185) target = $region28
      $region27: #{rnn_gru_forward.3} parent=11 // pred_region
        _
      $region28: #{rnn_gru_forward.3} parent=11 // pred_fallthru
        _
    $region12: #{rnn_gru_forward.3} parent=5 // pred_fallthru
      _
    %p188 = scmp.lt.s32.totalorder %s11, 2
    // Predicated region
    $region29: #{rnn_gru_forward.3} parent=5 // pred_check
      %p189 = pneg %p188
    $region30: #{rnn_gru_forward.3} parent=5 // pred_check_branch
      %191 = sbr.rel (%p189) target = $region32
    $region31: #{rnn_gru_forward.3} parent=5 // pred_region
      // Predicated region
      $region33: #{rnn_gru_forward.3} parent=31 // pred_check
        %p192 = pneg %p45
      $region34: #{rnn_gru_forward.3} parent=31 // pred_check_branch
        %194 = sbr.rel (%p192) target = $region36
      $region35: #{rnn_gru_forward.3} parent=31 // pred_region
        %s195 = smul.u32 4, %s19
        %p196 = scmp.lt.s32.totalorder %s195, 7
        %s197 = scalar_select %p196, %s195, 7
        %p198 = scmp.lt.s32.totalorder %s18, 0
        %s199 = scalar_select %p198, %s18, 0
        %s200 = smul.addr %s199, 3
        %s201 = smul.addr %s197, 3
        %s202 = sadd.s32 %s200, %s201
        %s203 = smul.addr %s202, 8
        %s204 = scalar_lea.vmem %s0, %s203
        %s205 = smul.u32 4, %s19
      $region36: #{rnn_gru_forward.3} parent=31 // pred_fallthru
        _
    $region32: #{rnn_gru_forward.3} parent=5 // pred_fallthru
      _
    %p206 = scmp.le.s32.totalorder 1, %s11
    %p207 = scmp.lt.s32.totalorder %s11, 3
    %p208 = pnand %p206, %p207
    %p209 = pneg %p208
    // Predicated region
    $region37: #{rnn_gru_forward.3} parent=5 // pred_check
      _
    $region38: #{rnn_gru_forward.3} parent=5 // pred_check_branch
      %211 = sbr.rel (%p208) target = $region40
    $region39: #{rnn_gru_forward.3} parent=5 // pred_region
      %s212 = ssub.s32 %s11, 1
      %s213 = smul.u32 4, %s21
      %p214 = scmp.lt.s32.totalorder %s213, 7
      %s215 = scalar_select %p214, %s213, 7
      %p216 = scmp.lt.s32.totalorder %s20, 0
      %s217 = scalar_select %p216, %s20, 0
      %s218 = smul.addr %s217, 3
      %s219 = smul.addr %s215, 3
      %s220 = sadd.s32 %s218, %s219
      %s221 = smul.addr %s220, 8
      %s222 = scalar_lea.vmem %s0, %s221
      %p223 = pneg %p51
      %p224 = pneg %p48
      %p225 = pneg %p72
      %p226 = pneg %p69
      %p227 = pneg %p93
      %p228 = pneg %p90
      %p229 = pneg %p114
      %p230 = pneg %p111
      %p231 = pneg %p135
      %p232 = pneg %p132
      %p233 = pneg %p161
      %p234 = pneg %p158
      %p235 = scmp.lt.s32.totalorder %s20, 0
      %s236 = scalar_select %p235, %s20, 0
      %s237 = smul.addr %s236, 8
      %s238 = scalar_lea.vmem %s5, %s237
      %s239 = smul.u32 4, %s21
      %p240 = scmp.lt.s32.totalorder %s239, 7
      %s241 = scalar_select %p240, %s239, 7
      %p242 = scmp.lt.s32.totalorder %s20, 0
      %s243 = scalar_select %p242, %s20, 0
      %s244 = smul.addr %s243, 3
      %s245 = smul.addr %s241, 3
      %s246 = sadd.s32 %s244, %s245
      %s247 = smul.addr %s246, 8
      %s248 = scalar_lea.vmem %s0, %s247
      %s249 = smul.u32 4, %s21
      %p250 = scmp.lt.s32.totalorder %s20, 0
      %s251 = scalar_select %p250, %s20, 0
      %s252 = smul.addr %s251, 8
      %s253 = scalar_lea.vmem %s5, %s252
      %p254 = scmp.eq.s32.totalorder %s21, 0
      // Predicated region
      $region41: #{rnn_gru_forward.3} parent=39 // pred_check
        %p255 = pneg %p254
      $region42: #{rnn_gru_forward.3} parent=39 // pred_check_branch
        %257 = sbr.rel (%p255) target = $region44
      $region43: #{rnn_gru_forward.3} parent=39 // pred_region
        %258 = vst [vmem:[#allocation2] sm:$0xff] 0.0
        %259 = vst [vmem:[%s253] sm:$0xff] 0.0
      $region44: #{rnn_gru_forward.3} parent=39 // pred_fallthru
        _
      %v260 = vld [vmem:[%s1] sm:$0xff]
      %v261 = vld [vmem:[%s1 + $0x8] sm:$0xff]
      %v262 = vld [vmem:[%s1 + $0x10] sm:$0xff]
      %v263 = vld [vmem:[%s1 + $0x18] sm:$0xff]
      %v264 = vld [vmem:[%s1 + $0x20] sm:$0xff]
      %v265 = vld [vmem:[%s1 + $0x28] sm:$0xff]
      %v266 = vld [vmem:[%s1 + $0x30] sm:$0xff]
      %v267 = vld [vmem:[%s1 + $0x38] sm:$0xff]
      %v268 = vld [vmem:[%s1 + $0x40] sm:$0xff]
      %v269 = vld [vmem:[%s1 + $0x48] sm:$0xff]
      %v270 = vld [vmem:[%s1 + $0x50] sm:$0xff]
      %v271 = vld [vmem:[%s1 + $0x58] sm:$0xff]
      %v272 = vld [vmem:[%s1 + $0x60] sm:$0xff]
      %v273 = vld [vmem:[%s1 + $0x68] sm:$0xff]
      %v274 = vld [vmem:[%s1 + $0x70] sm:$0xff]
      %v275 = vld [vmem:[%s1 + $0x78] sm:$0xff]
      %v276 = vld [vmem:[%s1 + $0x80] sm:$0xff]
      %v277 = vld [vmem:[%s1 + $0x88] sm:$0xff]
      %v278 = vld [vmem:[%s1 + $0x90] sm:$0xff]
      %v279 = vld [vmem:[%s1 + $0x98] sm:$0xff]
      %v280 = vld [vmem:[%s1 + $0xa0] sm:$0xff]
      %v281 = vld [vmem:[%s1 + $0xa8] sm:$0xff]
      %v282 = vld [vmem:[%s1 + $0xb0] sm:$0xff]
      %v283 = vld [vmem:[%s1 + $0xb8] sm:$0xff]
      %v284 = vld [vmem:[%s1 + $0xc0] sm:$0xff]
      %v285 = vld [vmem:[%s1 + $0xc8] sm:$0xff]
      %v286 = vld [vmem:[%s1 + $0xd0] sm:$0xff]
      %v287 = vld [vmem:[%s1 + $0xd8] sm:$0xff]
      %v288 = vld [vmem:[%s1 + $0xe0] sm:$0xff]
      %v289 = vld [vmem:[%s1 + $0xe8] sm:$0xff]
      %v290 = vld [vmem:[%s1 + $0xf0] sm:$0xff]
      %v291 = vld [vmem:[%s1 + $0xf8] sm:$0xff]
      %v292 = vld [vmem:[%s1 + $0x100] sm:$0xff]
      %v293 = vld [vmem:[%s1 + $0x108] sm:$0xff]
      %v294 = vld [vmem:[%s1 + $0x110] sm:$0xff]
      %v295 = vld [vmem:[%s1 + $0x118] sm:$0xff]
      %v296 = vld [vmem:[%s1 + $0x120] sm:$0xff]
      %v297 = vld [vmem:[%s1 + $0x128] sm:$0xff]
      %v298 = vld [vmem:[%s1 + $0x130] sm:$0xff]
      %v299 = vld [vmem:[%s1 + $0x138] sm:$0xff]
      %v300 = vld [vmem:[%s1 + $0x140] sm:$0xff]
      %v301 = vld [vmem:[%s1 + $0x148] sm:$0xff]
      %v302 = vld [vmem:[%s1 + $0x150] sm:$0xff]
      %v303 = vld [vmem:[%s1 + $0x158] sm:$0xff]
      %v304 = vld [vmem:[%s1 + $0x160] sm:$0xff]
      %v305 = vld [vmem:[%s1 + $0x168] sm:$0xff]
      %v306 = vld [vmem:[%s1 + $0x170] sm:$0xff]
      %v307 = vld [vmem:[%s1 + $0x178] sm:$0xff]
      %v308 = vld [vmem:[%s2] sm:$0x1]
      %v310 = vperm.slane %v308, 0
      %v312 = vld [vmem:[#allocation2] sm:$0xff]
      %v313 = vld [vmem:[%s248] sm:$0xff]
      %v314 = vld [vmem:[%s248 + $0x8] sm:$0xff]
      %v315 = vld [vmem:[%s248 + $0x10] sm:$0xff]
      %316 = vmatpush.msra.mxu0 %v305
      %317 = vmatpush.msra.mxu0 %v302
      %318 = vmatpush.msra.mxu0 %v299
      %319 = vmatpush.msra.mxu0 %v296
      %320 = vmatpush.msra.mxu0 %v293
      %321 = vmatpush.msra.mxu0 %v290
      %322 = vmatpush.msra.mxu0 %v287
      %323 = vmatpush.msra.mxu0 %v284
      %324 = vmatpush.msra.mxu0 %v281
      %325 = vmatpush.msra.mxu0 %v278
      %326 = vmatpush.msra.mxu0 %v275
      %327 = vmatpush.msra.mxu0 %v272
      %328 = vmatpush.msra.mxu0 %v269
      %329 = vmatpush.msra.mxu0 %v266
      %330 = vmatpush.msra.mxu0 %v263
      %331 = vmatpush.msra.mxu0 %v260
      %332 = vmatmul.f32.gmra.mxu0 %v312
      %v333 = vpop.f32.mrf.mxu0
      %v334 = vadd.f32 0.0, %v333
      %335 = vdwg.mxu0
      %336 = vmatpush.msra.mxu0 %v306
      %337 = vmatpush.msra.mxu0 %v303
      %338 = vmatpush.msra.mxu0 %v300
      %339 = vmatpush.msra.mxu0 %v297
      %340 = vmatpush.msra.mxu0 %v294
      %341 = vmatpush.msra.mxu0 %v291
      %342 = vmatpush.msra.mxu0 %v288
      %343 = vmatpush.msra.mxu0 %v285
      %344 = vmatpush.msra.mxu0 %v282
      %345 = vmatpush.msra.mxu0 %v279
      %346 = vmatpush.msra.mxu0 %v276
      %347 = vmatpush.msra.mxu0 %v273
      %348 = vmatpush.msra.mxu0 %v270
      %349 = vmatpush.msra.mxu0 %v267
      %350 = vmatpush.msra.mxu0 %v264
      %351 = vmatpush.msra.mxu0 %v261
      %352 = vmatmul.f32.gmra.mxu0 %v312
      %v353 = vpop.f32.mrf.mxu0
      %v354 = vadd.f32 0.0, %v353
      %355 = vdwg.mxu0
      %356 = vmatpush.msra.mxu0 %v307
      %357 = vmatpush.msra.mxu0 %v304
      %358 = vmatpush.msra.mxu0 %v301
      %359 = vmatpush.msra.mxu0 %v298
      %360 = vmatpush.msra.mxu0 %v295
      %361 = vmatpush.msra.mxu0 %v292
      %362 = vmatpush.msra.mxu0 %v289
      %363 = vmatpush.msra.mxu0 %v286
      %364 = vmatpush.msra.mxu0 %v283
      %365 = vmatpush.msra.mxu0 %v280
      %366 = vmatpush.msra.mxu0 %v277
      %367 = vmatpush.msra.mxu0 %v274
      %368 = vmatpush.msra.mxu0 %v271
      %369 = vmatpush.msra.mxu0 %v268
      %370 = vmatpush.msra.mxu0 %v265
      %371 = vmatpush.msra.mxu0 %v262
      %372 = vmatmul.f32.gmra.mxu0 %v312
      %v373 = vpop.f32.mrf.mxu0
      %v374 = vadd.f32 0.0, %v373
      %375 = vdwg.mxu0
      %v376 = vadd.f32 %v313, %v334
      %v377 = vmul.f32 %v376, 0.5
      %v378 = vtanh.pop %v377
      %v379 = vmul.f32 %v378, 0.5
      %v380 = vadd.f32 %v379, 0.5
      %v381 = vadd.f32 %v314, %v354
      %v382 = vmul.f32 %v381, 0.5
      %v383 = vtanh.pop %v382
      %v384 = vmul.f32 %v383, 0.5
      %v385 = vadd.f32 %v384, 0.5
      %v386 = vadd.f32 %v374, %v310
      %v387 = vmul.f32 %v380, %v386
      %v388 = vadd.f32 %v315, %v387
      %v389 = vtanh.pop %v388
      %v390 = vsub.f32 1.0, %v385
      %v391 = vmul.f32 %v390, %v389
      %v392 = vmul.f32 %v385, %v312
      %v393 = vadd.f32 %v391, %v392
      %s394 = scalar_lea.vmem %s248, 24
      %v395 = vld [vmem:[%s394] sm:$0xff]
      %v396 = vld [vmem:[%s394 + $0x8] sm:$0xff]
      %v397 = vld [vmem:[%s394 + $0x10] sm:$0xff]
      %398 = vmatpush.msra.mxu0 %v305
      %399 = vmatpush.msra.mxu0 %v302
      %400 = vmatpush.msra.mxu0 %v299
      %401 = vmatpush.msra.mxu0 %v296
      %402 = vmatpush.msra.mxu0 %v293
      %403 = vmatpush.msra.mxu0 %v290
      %404 = vmatpush.msra.mxu0 %v287
      %405 = vmatpush.msra.mxu0 %v284
      %406 = vmatpush.msra.mxu0 %v281
      %407 = vmatpush.msra.mxu0 %v278
      %408 = vmatpush.msra.mxu0 %v275
      %409 = vmatpush.msra.mxu0 %v272
      %410 = vmatpush.msra.mxu0 %v269
      %411 = vmatpush.msra.mxu0 %v266
      %412 = vmatpush.msra.mxu0 %v263
      %413 = vmatpush.msra.mxu0 %v260
      %414 = vmatmul.f32.gmra.mxu0 %v393
      %v415 = vpop.f32.mrf.mxu0
      %v416 = vadd.f32 0.0, %v415
      %417 = vdwg.mxu0
      %418 = vmatpush.msra.mxu0 %v306
      %419 = vmatpush.msra.mxu0 %v303
      %420 = vmatpush.msra.mxu0 %v300
      %421 = vmatpush.msra.mxu0 %v297
      %422 = vmatpush.msra.mxu0 %v294
      %423 = vmatpush.msra.mxu0 %v291
      %424 = vmatpush.msra.mxu0 %v288
      %425 = vmatpush.msra.mxu0 %v285
      %426 = vmatpush.msra.mxu0 %v282
      %427 = vmatpush.msra.mxu0 %v279
      %428 = vmatpush.msra.mxu0 %v276
      %429 = vmatpush.msra.mxu0 %v273
      %430 = vmatpush.msra.mxu0 %v270
      %431 = vmatpush.msra.mxu0 %v267
      %432 = vmatpush.msra.mxu0 %v264
      %433 = vmatpush.msra.mxu0 %v261
      %434 = vmatmul.f32.gmra.mxu0 %v393
      %v435 = vpop.f32.mrf.mxu0
      %v436 = vadd.f32 0.0, %v435
      %437 = vdwg.mxu0
      %438 = vmatpush.msra.mxu0 %v307
      %439 = vmatpush.msra.mxu0 %v304
      %440 = vmatpush.msra.mxu0 %v301
      %441 = vmatpush.msra.mxu0 %v298
      %442 = vmatpush.msra.mxu0 %v295
      %443 = vmatpush.msra.mxu0 %v292
      %444 = vmatpush.msra.mxu0 %v289
      %445 = vmatpush.msra.mxu0 %v286
      %446 = vmatpush.msra.mxu0 %v283
      %447 = vmatpush.msra.mxu0 %v280
      %448 = vmatpush.msra.mxu0 %v277
      %449 = vmatpush.msra.mxu0 %v274
      %450 = vmatpush.msra.mxu0 %v271
      %451 = vmatpush.msra.mxu0 %v268
      %452 = vmatpush.msra.mxu0 %v265
      %453 = vmatpush.msra.mxu0 %v262
      %454 = vmatmul.f32.gmra.mxu0 %v393
      %v455 = vpop.f32.mrf.mxu0
      %v456 = vadd.f32 0.0, %v455
      %457 = vdwg.mxu0
      %v458 = vadd.f32 %v395, %v416
      %v459 = vmul.f32 %v458, 0.5
      %v460 = vtanh.pop %v459
      %v461 = vmul.f32 %v460, 0.5
      %v462 = vadd.f32 %v461, 0.5
      %v463 = vadd.f32 %v396, %v436
      %v464 = vmul.f32 %v463, 0.5
      %v465 = vtanh.pop %v464
      %v466 = vmul.f32 %v465, 0.5
      %v467 = vadd.f32 %v466, 0.5
      %v468 = vadd.f32 %v456, %v310
      %v469 = vmul.f32 %v462, %v468
      %v470 = vadd.f32 %v397, %v469
      %v471 = vtanh.pop %v470
      %v472 = vsub.f32 1.0, %v467
      %v473 = vmul.f32 %v472, %v471
      %v474 = vmul.f32 %v467, %v393
      %v475 = vadd.f32 %v473, %v474
      %s476 = scalar_lea.vmem %s248, 48
      %v477 = vld [vmem:[%s476] sm:$0xff]
      %v478 = vld [vmem:[%s476 + $0x8] sm:$0xff]
      %v479 = vld [vmem:[%s476 + $0x10] sm:$0xff]
      %480 = vmatpush.msra.mxu0 %v305
      %481 = vmatpush.msra.mxu0 %v302
      %482 = vmatpush.msra.mxu0 %v299
      %483 = vmatpush.msra.mxu0 %v296
      %484 = vmatpush.msra.mxu0 %v293
      %485 = vmatpush.msra.mxu0 %v290
      %486 = vmatpush.msra.mxu0 %v287
      %487 = vmatpush.msra.mxu0 %v284
      %488 = vmatpush.msra.mxu0 %v281
      %489 = vmatpush.msra.mxu0 %v278
      %490 = vmatpush.msra.mxu0 %v275
      %491 = vmatpush.msra.mxu0 %v272
      %492 = vmatpush.msra.mxu0 %v269
      %493 = vmatpush.msra.mxu0 %v266
      %494 = vmatpush.msra.mxu0 %v263
      %495 = vmatpush.msra.mxu0 %v260
      %496 = vmatmul.f32.gmra.mxu0 %v475
      %v497 = vpop.f32.mrf.mxu0
      %v498 = vadd.f32 0.0, %v497
      %499 = vdwg.mxu0
      %500 = vmatpush.msra.mxu0 %v306
      %501 = vmatpush.msra.mxu0 %v303
      %502 = vmatpush.msra.mxu0 %v300
      %503 = vmatpush.msra.mxu0 %v297
      %504 = vmatpush.msra.mxu0 %v294
      %505 = vmatpush.msra.mxu0 %v291
      %506 = vmatpush.msra.mxu0 %v288
      %507 = vmatpush.msra.mxu0 %v285
      %508 = vmatpush.msra.mxu0 %v282
      %509 = vmatpush.msra.mxu0 %v279
      %510 = vmatpush.msra.mxu0 %v276
      %511 = vmatpush.msra.mxu0 %v273
      %512 = vmatpush.msra.mxu0 %v270
      %513 = vmatpush.msra.mxu0 %v267
      %514 = vmatpush.msra.mxu0 %v264
      %515 = vmatpush.msra.mxu0 %v261
      %516 = vmatmul.f32.gmra.mxu0 %v475
      %v517 = vpop.f32.mrf.mxu0
      %v518 = vadd.f32 0.0, %v517
      %519 = vdwg.mxu0
      %520 = vmatpush.msra.mxu0 %v307
      %521 = vmatpush.msra.mxu0 %v304
      %522 = vmatpush.msra.mxu0 %v301
      %523 = vmatpush.msra.mxu0 %v298
      %524 = vmatpush.msra.mxu0 %v295
      %525 = vmatpush.msra.mxu0 %v292
      %526 = vmatpush.msra.mxu0 %v289
      %527 = vmatpush.msra.mxu0 %v286
      %528 = vmatpush.msra.mxu0 %v283
      %529 = vmatpush.msra.mxu0 %v280
      %530 = vmatpush.msra.mxu0 %v277
      %531 = vmatpush.msra.mxu0 %v274
      %532 = vmatpush.msra.mxu0 %v271
      %533 = vmatpush.msra.mxu0 %v268
      %534 = vmatpush.msra.mxu0 %v265
      %535 = vmatpush.msra.mxu0 %v262
      %536 = vmatmul.f32.gmra.mxu0 %v475
      %v537 = vpop.f32.mrf.mxu0
      %v538 = vadd.f32 0.0, %v537
      %539 = vdwg.mxu0
      %v540 = vadd.f32 %v477, %v498
      %v541 = vmul.f32 %v540, 0.5
      %v542 = vtanh.pop %v541
      %v543 = vmul.f32 %v542, 0.5
      %v544 = vadd.f32 %v543, 0.5
      %v545 = vadd.f32 %v478, %v518
      %v546 = vmul.f32 %v545, 0.5
      %v547 = vtanh.pop %v546
      %v548 = vmul.f32 %v547, 0.5
      %v549 = vadd.f32 %v548, 0.5
      %v550 = vadd.f32 %v538, %v310
      %v551 = vmul.f32 %v544, %v550
      %v552 = vadd.f32 %v479, %v551
      %v553 = vtanh.pop %v552
      %v554 = vsub.f32 1.0, %v549
      %v555 = vmul.f32 %v554, %v553
      %v556 = vmul.f32 %v549, %v475
      %v557 = vadd.f32 %v555, %v556
      %s558 = scalar_lea.vmem %s248, 72
      %v559 = vld [vmem:[%s558] sm:$0xff]
      %v560 = vld [vmem:[%s558 + $0x8] sm:$0xff]
      %v561 = vld [vmem:[%s558 + $0x10] sm:$0xff]
      %562 = vmatpush.msra.mxu0 %v305
      %563 = vmatpush.msra.mxu0 %v302
      %564 = vmatpush.msra.mxu0 %v299
      %565 = vmatpush.msra.mxu0 %v296
      %566 = vmatpush.msra.mxu0 %v293
      %567 = vmatpush.msra.mxu0 %v290
      %568 = vmatpush.msra.mxu0 %v287
      %569 = vmatpush.msra.mxu0 %v284
      %570 = vmatpush.msra.mxu0 %v281
      %571 = vmatpush.msra.mxu0 %v278
      %572 = vmatpush.msra.mxu0 %v275
      %573 = vmatpush.msra.mxu0 %v272
      %574 = vmatpush.msra.mxu0 %v269
      %575 = vmatpush.msra.mxu0 %v266
      %576 = vmatpush.msra.mxu0 %v263
      %577 = vmatpush.msra.mxu0 %v260
      %578 = vmatmul.f32.gmra.mxu0 %v557
      %v579 = vpop.f32.mrf.mxu0
      %v580 = vadd.f32 0.0, %v579
      %581 = vdwg.mxu0
      %582 = vmatpush.msra.mxu0 %v306
      %583 = vmatpush.msra.mxu0 %v303
      %584 = vmatpush.msra.mxu0 %v300
      %585 = vmatpush.msra.mxu0 %v297
      %586 = vmatpush.msra.mxu0 %v294
      %587 = vmatpush.msra.mxu0 %v291
      %588 = vmatpush.msra.mxu0 %v288
      %589 = vmatpush.msra.mxu0 %v285
      %590 = vmatpush.msra.mxu0 %v282
      %591 = vmatpush.msra.mxu0 %v279
      %592 = vmatpush.msra.mxu0 %v276
      %593 = vmatpush.msra.mxu0 %v273
      %594 = vmatpush.msra.mxu0 %v270
      %595 = vmatpush.msra.mxu0 %v267
      %596 = vmatpush.msra.mxu0 %v264
      %597 = vmatpush.msra.mxu0 %v261
      %598 = vmatmul.f32.gmra.mxu0 %v557
      %v599 = vpop.f32.mrf.mxu0
      %v600 = vadd.f32 0.0, %v599
      %601 = vdwg.mxu0
      %602 = vmatpush.msra.mxu0 %v307
      %603 = vmatpush.msra.mxu0 %v304
      %604 = vmatpush.msra.mxu0 %v301
      %605 = vmatpush.msra.mxu0 %v298
      %606 = vmatpush.msra.mxu0 %v295
      %607 = vmatpush.msra.mxu0 %v292
      %608 = vmatpush.msra.mxu0 %v289
      %609 = vmatpush.msra.mxu0 %v286
      %610 = vmatpush.msra.mxu0 %v283
      %611 = vmatpush.msra.mxu0 %v280
      %612 = vmatpush.msra.mxu0 %v277
      %613 = vmatpush.msra.mxu0 %v274
      %614 = vmatpush.msra.mxu0 %v271
      %615 = vmatpush.msra.mxu0 %v268
      %616 = vmatpush.msra.mxu0 %v265
      %617 = vmatpush.msra.mxu0 %v262
      %618 = vmatmul.f32.gmra.mxu0 %v557
      %v619 = vpop.f32.mrf.mxu0
      %v620 = vadd.f32 0.0, %v619
      %621 = vdwg.mxu0
      %v622 = vadd.f32 %v559, %v580
      %v623 = vmul.f32 %v622, 0.5
      %v624 = vtanh.pop %v623
      %v625 = vmul.f32 %v624, 0.5
      %v626 = vadd.f32 %v625, 0.5
      %v627 = vadd.f32 %v560, %v600
      %v628 = vmul.f32 %v627, 0.5
      %v629 = vtanh.pop %v628
      %v630 = vmul.f32 %v629, 0.5
      %v631 = vadd.f32 %v630, 0.5
      %v632 = vadd.f32 %v620, %v310
      %v633 = vmul.f32 %v626, %v632
      %v634 = vadd.f32 %v561, %v633
      %v635 = vtanh.pop %v634
      %v636 = vsub.f32 1.0, %v631
      %v637 = vmul.f32 %v636, %v635
      %v638 = vmul.f32 %v631, %v557
      %v639 = vadd.f32 %v637, %v638
      %640 = vst [vmem:[#allocation2] sm:$0xff] %v639
      %p641 = scmp.eq.s32.totalorder %s21, 1
      // Predicated region
      $region45: #{rnn_gru_forward.3} parent=39 // pred_check
        %p642 = pneg %p641
      $region46: #{rnn_gru_forward.3} parent=39 // pred_check_branch
        %644 = sbr.rel (%p642) target = $region48
      $region47: #{rnn_gru_forward.3} parent=39 // pred_region
        %v645 = vld [vmem:[%s3] sm:$0xff]
        %v646 = vld [vmem:[%s3 + $0x8] sm:$0xff]
        %v647 = vld [vmem:[%s3 + $0x10] sm:$0xff]
        %v648 = vld [vmem:[%s3 + $0x18] sm:$0xff]
        %v649 = vld [vmem:[%s3 + $0x20] sm:$0xff]
        %v650 = vld [vmem:[%s3 + $0x28] sm:$0xff]
        %v651 = vld [vmem:[%s3 + $0x30] sm:$0xff]
        %v652 = vld [vmem:[%s3 + $0x38] sm:$0xff]
        %v653 = vld [vmem:[%s3 + $0x40] sm:$0xff]
        %v654 = vld [vmem:[%s3 + $0x48] sm:$0xff]
        %v655 = vld [vmem:[%s3 + $0x50] sm:$0xff]
        %v656 = vld [vmem:[%s3 + $0x58] sm:$0xff]
        %v657 = vld [vmem:[%s3 + $0x60] sm:$0xff]
        %v658 = vld [vmem:[%s3 + $0x68] sm:$0xff]
        %v659 = vld [vmem:[%s3 + $0x70] sm:$0xff]
        %v660 = vld [vmem:[%s3 + $0x78] sm:$0xff]
        %v661 = vld [vmem:[%s4] sm:$0x1]
        %v663 = vperm.slane %v661, 0
        %665 = vmatpush.msra.mxu0 %v660
        %666 = vmatpush.msra.mxu0 %v659
        %667 = vmatpush.msra.mxu0 %v658
        %668 = vmatpush.msra.mxu0 %v657
        %669 = vmatpush.msra.mxu0 %v656
        %670 = vmatpush.msra.mxu0 %v655
        %671 = vmatpush.msra.mxu0 %v654
        %672 = vmatpush.msra.mxu0 %v653
        %673 = vmatpush.msra.mxu0 %v652
        %674 = vmatpush.msra.mxu0 %v651
        %675 = vmatpush.msra.mxu0 %v650
        %676 = vmatpush.msra.mxu0 %v649
        %677 = vmatpush.msra.mxu0 %v648
        %678 = vmatpush.msra.mxu0 %v647
        %679 = vmatpush.msra.mxu0 %v646
        %680 = vmatpush.msra.mxu0 %v645
        %681 = vmatmul.f32.gmra.mxu0 %v639
        %v682 = vpop.f32.mrf.mxu0
        %v683 = vadd.f32 %v663, %v682
        %684 = vdwg.mxu0
        %v685 = vxor.u32 %v683, 2147483648
        %v686 = vmul.f32 %v685, 1.442695
        %v687 = vpow.pop %v686
        %v688 = vadd.f32 %v687, 1.0
        %v689 = vrcp.pop %v688
        %v690 = vmul.f32 %v688, %v689
        %v691 = vsub.f32 1.0, %v690
        %v692 = vmul.f32 %v689, %v691
        %v693 = vadd.f32 %v689, %v692
        %vm694 = vweird.f32 %v688
        %vm695 = vweird.f32 %v689
        %vm696 = vmor %vm694, %vm695
        %v697 = vsel %vm696, %v689, %v693
        %v698 = vand.u32 2147483647, %v688
        %vm699 = vcmp.eq.f32.partialorder %v698, 8.507059e+37
        %v700 = vand.u32 %v688, 2147483648
        %v701 = vor.u32 1.1754944e-38, %v700
        %v702 = vsel %vm699, %v701, %v697
        %v703 = vmul.f32 1.0, %v702
        %704 = vst [vmem:[%s253] sm:$0xff] %v703
      $region48: #{rnn_gru_forward.3} parent=39 // pred_fallthru
        _
      %p705 = scmp.lt.s32.totalorder %s20, 0
      %s706 = scalar_select %p705, %s20, 0
      %s707 = smul.addr %s706, 8
      %s708 = scalar_lea.vmem %s5, %s707
      // Predicated region
      $region49: #{rnn_gru_forward.3} parent=39 // pred_check
        %p709 = pneg %p158
      $region50: #{rnn_gru_forward.3} parent=39 // pred_check_branch
        %711 = sbr.rel (%p709) target = $region52
      $region51: #{rnn_gru_forward.3} parent=39 // pred_region
        _
      $region52: #{rnn_gru_forward.3} parent=39 // pred_fallthru
        _
      // Predicated region
      $region53: #{rnn_gru_forward.3} parent=39 // pred_check
        %p712 = pneg %p158
      $region54: #{rnn_gru_forward.3} parent=39 // pred_check_branch
        %714 = sbr.rel (%p712) target = $region56
      $region55: #{rnn_gru_forward.3} parent=39 // pred_region
        %p715 = scmp.lt.s32.totalorder %s20, 0
        %s716 = scalar_select %p715, %s20, 0
        %s717 = smul.addr %s716, 8
        %s718 = scalar_lea.vmem %s5, %s717
      $region56: #{rnn_gru_forward.3} parent=39 // pred_fallthru
        _
    $region40: #{rnn_gru_forward.3} parent=5 // pred_fallthru
      _
    %p719 = scmp.le.s32.totalorder 2, %s11
    // Predicated region
    $region57: #{rnn_gru_forward.3} parent=5 // pred_check
      %p720 = pneg %p719
    $region58: #{rnn_gru_forward.3} parent=5 // pred_check_branch
      %722 = sbr.rel (%p720) target = $region60
    $region59: #{rnn_gru_forward.3} parent=5 // pred_region
      %s723 = ssub.s32 %s11, 2
    $region60: #{rnn_gru_forward.3} parent=5 // pred_fallthru
      _
  $region6: #{rnn_gru_forward.3} parent=0 // loop_footer
    %s15 = sadd.s32 1, %s11
  $region7: #{rnn_gru_forward.3} parent=0 // loop_footer_branch
    %10 = sbr.rel target = $region3
  $region8: #{rnn_gru_forward.3} parent=0 // loop_exit
    _

</llo_original>
